<compile_context>
chip_gen: v6e
topology: v6e:2x2x1
jax: 0.10.0
libtpu: 0.0.40
codegen_flags: <defaults>
</compile_context>

<pallas_src>
import functools

import jax
import jax.numpy as jnp
import numpy as np
from jax.experimental import pallas as pl
from jax.experimental.pallas import tpu as pltpu

EPS = 1e-5
SLOPE = 0.0          # effective LeakyReLU slope (leakiness never forwarded)
LANE = 128           # TPU lane width; hidden/output feature dims padded to this
SMALL_ROWS = 1024    # <= this row count -> single-launch fused MLP3 kernel
TM_MAX = 2048        # max row tile for the tiled path (~4-5 MiB VMEM in flight)

BRANCHES = {'sign': 1, 'flavor': 4, 'mode': 4, 'protons': 4,
            'pions': 4, 'pi0s': 4, 'neutrons': 4}
HEAD_DIMS = tuple(BRANCHES.values())
HEAD_TOTAL = sum(HEAD_DIMS)   # 25
HEAD_PAD = LANE               # lane-dense head output width


# -----------------------------------------------------------------------------
# small helpers
# -----------------------------------------------------------------------------
def _round_up(v, m):
    return ((v + m - 1) // m) * m


def _leaky(h, slope):
    return jnp.where(h >= 0, h, slope * h)


def _pad_cols(a, n):
    return jnp.pad(a, ((0, 0), (0, n - a.shape[1])))


def _pad_rows_cols(a, m, n):
    return jnp.pad(a, ((0, m - a.shape[0]), (0, n - a.shape[1])))


# -----------------------------------------------------------------------------
# Head segment masks (constants, passed to the kernel as ordinary inputs)
# -----------------------------------------------------------------------------
def _build_head_masks(dims, pad):
    col_head = np.full((pad,), -1, np.int64)
    is_sig = np.zeros((1, pad), np.float32)
    off = 0
    for s, d in enumerate(dims):
        col_head[off:off + d] = s
        if d == 1:
            is_sig[0, off:off + d] = 1.0
        off += d
    valid = (col_head >= 0).astype(np.float32)[None, :]
    seg = np.zeros((pad, pad), np.float32)
    for j in range(pad):
        for i in range(pad):
            if (col_head[i] >= 0 and col_head[i] == col_head[j]
                    and dims[int(col_head[i])] > 1):
                seg[i, j] = 1.0
    return seg, is_sig, valid


_HEAD_SEG, _HEAD_ISSIG, _HEAD_VALID = _build_head_masks(HEAD_DIMS, HEAD_PAD)


# -----------------------------------------------------------------------------
# in-kernel building blocks
# -----------------------------------------------------------------------------
def _bn_train(h, g, b):
    """Training-mode BatchNorm1d with batch statistics (biased variance)."""
    mu = jnp.mean(h, axis=0, keepdims=True)
    var = jnp.maximum(jnp.mean(h * h, axis=0, keepdims=True) - mu * mu, 0.0)
    scale = g * jax.lax.rsqrt(var + EPS)
    return h * scale + (b - mu * scale)


def _lin_bf16(h, w, c):
    """f32 -> bf16 MXU matmul with f32 accumulation + f32 bias."""
    return jnp.dot(h.astype(jnp.bfloat16), w.astype(jnp.bfloat16),
                   preferred_element_type=jnp.float32) + c


# -----------------------------------------------------------------------------
# Pallas kernels
# -----------------------------------------------------------------------------
def mlp3_fused_kernel(*refs, n_parts, slope):
    """One-launch BN->Linear->LReLU x2 + BN->Linear for small row counts.

    Layer-0 input arrives as `n_parts` separate feature blocks (the torch
    concatenation is replaced by partial matmuls summed in VMEM)."""
    p = n_parts
    hs = refs[0:p]
    g0s = refs[p:2 * p]
    b0s = refs[2 * p:3 * p]
    w0s = refs[3 * p:4 * p]
    (c0_ref, g1_ref, b1_ref, w1_ref, c1_ref,
     g2_ref, b2_ref, w2_ref, c2_ref, o_ref) = refs[4 * p:]

    acc = None
    for h_ref, g_ref, b_ref, w_ref in zip(hs, g0s, b0s, w0s):
        hb = _bn_train(h_ref[...], g_ref[...], b_ref[...]).astype(jnp.bfloat16)
        d = jnp.dot(hb, w_ref[...].astype(jnp.bfloat16),
                    preferred_element_type=jnp.float32)
        acc = d if acc is None else acc + d
    h = _leaky(acc + c0_ref[...], slope)
    h = _leaky(_lin_bf16(_bn_train(h, g1_ref[...], b1_ref[...]),
                         w1_ref[...], c1_ref[...]), slope)
    o_ref[...] = _lin_bf16(_bn_train(h, g2_ref[...], b2_ref[...]),
                           w2_ref[...], c2_ref[...])


def tiled_layer_kernel(*refs, n_parts, slope, relu, emit_stats,
                       m_real, tm, mask_rows):
    """Row-tiled BN(scale/shift) -> Linear [-> LeakyReLU] [+ per-tile stats].

    BN batch statistics arrive as precomputed f32 scale/shift so normalisation
    happens in f32 BEFORE the bf16 cast (numerically matches the fused path)."""
    p = n_parts
    hs = refs[0:p]
    scs = refs[p:2 * p]
    shs = refs[2 * p:3 * p]
    ws = refs[3 * p:4 * p]
    c_ref = refs[4 * p]
    outs = refs[4 * p + 1:]
    y_ref = outs[0]

    acc = None
    for h_ref, s_ref, t_ref, w_ref in zip(hs, scs, shs, ws):
        hb = (h_ref[...] * s_ref[...] + t_ref[...]).astype(jnp.bfloat16)
        d = jnp.dot(hb, w_ref[...], preferred_element_type=jnp.float32)
        acc = d if acc is None else acc + d
    y = acc + c_ref[...]
    if relu:
        y = _leaky(y, slope)
    if mask_rows:
        row = pl.program_id(0) * tm + jax.lax.broadcasted_iota(
            jnp.int32, (tm, 1), 0)
        y = jnp.where(row < m_real, y, 0.0)
    y_ref[...] = y
    if emit_stats:
        outs[1][...] = jnp.sum(y, axis=0, keepdims=True)[None]
        outs[2][...] = jnp.sum(y * y, axis=0, keepdims=True)[None]


def global_heads_kernel(g_ref,
                        g0_ref, b0_ref, w0_ref, c0_ref,
                        g1_ref, b1_ref, w1_ref, c1_ref,
                        g2_ref, b2_ref, w2_ref, c2_ref,
                        hw_ref, hb_ref, seg_ref, sig_ref, val_ref,
                        o_ref, *, slope):
    """GlobalModel MLP3 + all 7 prediction heads fused into one kernel."""
    h = g_ref[...]
    h = _leaky(_lin_bf16(_bn_train(h, g0_ref[...], b0_ref[...]),
                         w0_ref[...], c0_ref[...]), slope)
    h = _leaky(_lin_bf16(_bn_train(h, g1_ref[...], b1_ref[...]),
                         w1_ref[...], c1_ref[...]), slope)
    u = _lin_bf16(_bn_train(h, g2_ref[...], b2_ref[...]),
                  w2_ref[...], c2_ref[...])

    logits = _lin_bf16(u, hw_ref[...], hb_ref[...])

    is_sig = sig_ref[...]
    valid = val_ref[...]
    # Global row max is a valid shift for every softmax segment; padded lanes
    # never leak into real segments thanks to the block-diagonal seg mask.
    z = logits - jnp.max(logits, axis=1, keepdims=True)
    e = jnp.exp(z)
    denom = (jnp.dot(e.astype(jnp.bfloat16), seg_ref[...],
                     preferred_element_type=jnp.float32)
             + is_sig + (1.0 - valid))
    softmax = e / denom
    sigmoid = 1.0 / (1.0 + jnp.exp(-logits))
    o_ref[...] = valid * (is_sig * sigmoid + (1.0 - is_sig) * softmax)


# -----------------------------------------------------------------------------
# Wrappers
# -----------------------------------------------------------------------------
def run_mlp3_fused(parts, p, slope):
    m = parts[0].shape[0]
    op = p["c2"].shape[1]
    args = (list(parts) + list(p["g0"]) + list(p["b0"]) + list(p["w0"])
            + [p["c0"], p["g1"], p["b1"], p["w1"], p["c1"],
               p["g2"], p["b2"], p["w2"], p["c2"]])
    return pl.pallas_call(
        functools.partial(mlp3_fused_kernel, n_parts=len(parts), slope=slope),
        out_shape=jax.ShapeDtypeStruct((m, op), jnp.float32),
        grid=(1,),
        in_specs=[pl.BlockSpec(a.shape, lambda i: (0, 0)) for a in args],
        out_specs=pl.BlockSpec((m, op), lambda i: (0, 0)),
    )(*args)


def _run_layer(parts, scales, shifts, ws_bf16, c, *, relu, emit_stats,
               m_real, tm, slope):
    mp = parts[0].shape[0]
    n = c.shape[1]
    t = mp // tm
    kernel = functools.partial(
        tiled_layer_kernel, n_parts=len(parts), slope=slope, relu=relu,
        emit_stats=emit_stats, m_real=m_real, tm=tm,
        mask_rows=(m_real != mp))
    in_specs = (
        [pl.BlockSpec((tm, a.shape[1]), lambda i: (i, 0)) for a in parts]
        + [pl.BlockSpec(a.shape, lambda i: (0, 0)) for a in scales]
        + [pl.BlockSpec(a.shape, lambda i: (0, 0)) for a in shifts]
        + [pl.BlockSpec(a.shape, lambda i: (0, 0)) for a in ws_bf16]
        + [pl.BlockSpec(c.shape, lambda i: (0, 0))])
    out_shape = [jax.ShapeDtypeStruct((mp, n), jnp.float32)]
    out_specs = [pl.BlockSpec((tm, n), lambda i: (i, 0))]
    if emit_stats:
        out_shape += [jax.ShapeDtypeStruct((t, 1, n), jnp.float32)] * 2
        out_specs += [pl.BlockSpec((1, 1, n), lambda i: (i, 0, 0))] * 2
    return pl.pallas_call(
        kernel, grid=(t,),
        in_specs=in_specs, out_specs=out_specs, out_shape=out_shape,
        compiler_params=pltpu.CompilerParams(
            dimension_semantics=("parallel",)),
    )(*parts, *scales, *shifts, *ws_bf16, c)


def _stats_to_affine(mu, var, g, b):
    scale = g * jax.lax.rsqrt(var + EPS)
    return scale, b - mu * scale


def run_mlp3_tiled(parts, p, slope):
    m = parts[0].shape[0]
    # Balanced row tiles capped at TM_MAX (amortises the ~0.35us/step overhead).
    t = max(1, -(-m // TM_MAX))
    tm = _round_up(-(-m // t), 8)
    mp = t * tm

    # layer 0: BN stats from a cheap XLA reduce over each (unpadded) part.
    scales0, shifts0 = [], []
    for part, g, b in zip(parts, p["g0"], p["b0"]):
        mu = jnp.mean(part, axis=0, keepdims=True)
        var = jnp.maximum(
            jnp.mean(part * part, axis=0, keepdims=True) - mu * mu, 0.0)
        sc, sh = _stats_to_affine(mu, var, g, b)
        scales0.append(sc)
        shifts0.append(sh)
    parts_p = [jnp.pad(a, ((0, mp - m), (0, 0))) for a in parts]
    h1, ps1, pq1 = _run_layer(
        parts_p, scales0, shifts0,
        [w.astype(jnp.bfloat16) for w in p["w0"]], p["c0"],
        relu=True, emit_stats=True, m_real=m, tm=tm, slope=slope)

    def from_partials(ps, pq, g, b):
        mu = jnp.sum(ps, axis=0) / m
        var = jnp.maximum(jnp.sum(pq, axis=0) / m - mu * mu, 0.0)
        return _stats_to_affine(mu, var, g, b)

    # layer 1: BN stats of h1 from per-tile partial sums.
    s1, t1 = from_partials(ps1, pq1, p["g1"], p["b1"])
    h2, ps2, pq2 = _run_layer(
        [h1], [s1], [t1], [p["w1"].astype(jnp.bfloat16)], p["c1"],
        relu=True, emit_stats=True, m_real=m, tm=tm, slope=slope)

    # layer 2 (no activation, no stats needed downstream).
    s2, t2 = from_partials(ps2, pq2, p["g2"], p["b2"])
    (h3,) = _run_layer(
        [h2], [s2], [t2], [p["w2"].astype(jnp.bfloat16)], p["c2"],
        relu=False, emit_stats=False, m_real=m, tm=tm, slope=slope)
    return h3[:m]


def run_mlp3(parts, p, slope=SLOPE, force_tiled=False):
    if (not force_tiled) and parts[0].shape[0] <= SMALL_ROWS:
        return run_mlp3_fused(parts, p, slope)
    return run_mlp3_tiled(parts, p, slope)


def run_global_heads(g_in, gp, head_w, head_b, slope=SLOPE):
    g = g_in.shape[0]
    args = [g_in,
            gp["g0"][0], gp["b0"][0], gp["w0"][0], gp["c0"],
            gp["g1"], gp["b1"], gp["w1"], gp["c1"],
            gp["g2"], gp["b2"], gp["w2"], gp["c2"],
            head_w, head_b,
            jnp.asarray(_HEAD_SEG, jnp.bfloat16),
            jnp.asarray(_HEAD_ISSIG, jnp.float32),
            jnp.asarray(_HEAD_VALID, jnp.float32)]
    return pl.pallas_call(
        functools.partial(global_heads_kernel, slope=slope),
        out_shape=jax.ShapeDtypeStruct((g, HEAD_PAD), jnp.float32),
        grid=(1,),
        in_specs=[pl.BlockSpec(a.shape, lambda i: (0, 0)) for a in args],
        out_specs=pl.BlockSpec((g, HEAD_PAD), lambda i: (0, 0)),
    )(*args)


# -----------------------------------------------------------------------------
# JAX glue
# -----------------------------------------------------------------------------
def scatter_mean(src, index, num_segments):
    summed = jax.ops.segment_sum(src, index, num_segments=num_segments)
    counts = jax.ops.segment_sum(jnp.ones((src.shape[0],), src.dtype), index,
                                 num_segments=num_segments)
    return summed / jnp.maximum(counts, 1.0)[:, None]


# -----------------------------------------------------------------------------
# Deterministic parameter construction (synthetic weights; no checkpoint load)
# -----------------------------------------------------------------------------
def _linear(key, fan_in, fan_out):
    kw, kb = jax.random.split(key)
    bound = 1.0 / np.sqrt(fan_in)
    w = jax.random.uniform(kw, (fan_in, fan_out), jnp.float32, -bound, bound)
    b = jax.random.uniform(kb, (1, fan_out), jnp.float32, -bound, bound)
    return w, b


def _bn(key, dim):
    kg, kb = jax.random.split(key)
    g = jax.random.uniform(kg, (1, dim), jnp.float32, 0.8, 1.2)
    b = jax.random.uniform(kb, (1, dim), jnp.float32, -0.1, 0.1)
    return g, b


def init_mlp3(key, part_dims, part_pad, hidden, dout):
    """BN->Linear->LReLU x2 + BN->Linear, layer-0 split into feature parts.

    All hidden/output dims are padded to 128 lanes; padded gammas/betas are
    zero so padded columns stay exactly zero through BN and matmuls."""
    din = sum(part_dims)
    hp = _round_up(hidden, LANE)
    op = _round_up(dout, LANE)
    ks = jax.random.split(key, 6)
    g0, b0 = _bn(ks[0], din)
    w0, c0 = _linear(ks[1], din, hidden)
    g1, b1 = _bn(ks[2], hidden)
    w1, c1 = _linear(ks[3], hidden, hidden)
    g2, b2 = _bn(ks[4], hidden)
    w2, c2 = _linear(ks[5], hidden, dout)

    g0_parts, b0_parts, w0_parts = [], [], []
    off = 0
    for d_real, d_pad in zip(part_dims, part_pad):
        g0_parts.append(_pad_cols(g0[:, off:off + d_real], d_pad))
        b0_parts.append(_pad_cols(b0[:, off:off + d_real], d_pad))
        w0_parts.append(_pad_rows_cols(w0[off:off + d_real], d_pad, hp))
        off += d_real
    return dict(
        g0=g0_parts, b0=b0_parts, w0=w0_parts, c0=_pad_cols(c0, hp),
        g1=_pad_cols(g1, hp), b1=_pad_cols(b1, hp),
        w1=_pad_rows_cols(w1, hp, hp), c1=_pad_cols(c1, hp),
        g2=_pad_cols(g2, hp), b2=_pad_cols(b2, hp),
        w2=_pad_rows_cols(w2, hp, op), c2=_pad_cols(c2, op))


def init_nu_model(key, node_in=9, edge_in=12, node_out=64, edge_out=64):
    keys = jax.random.split(key, 4 + len(BRANCHES))
    eop = _round_up(edge_out, LANE)
    nop = _round_up(node_out, LANE)
    params = {
        # EdgeModel:  cat([x[row], x[col], edge_attr])
        "edge":   init_mlp3(keys[0], [node_in, node_in, edge_in],
                            [node_in, node_in, edge_in], edge_out, edge_out),
        # NodeModel mlp_1: cat([x[row], e])   (e arrives 128-lane padded)
        "node1":  init_mlp3(keys[1], [node_in, edge_out], [node_in, eop],
                            node_out, node_out),
        # NodeModel mlp_2: cat([x, agg])      (agg arrives 128-lane padded)
        "node2":  init_mlp3(keys[2], [node_in, node_out], [node_in, nop],
                            node_out, node_out),
        # GlobalModel: scatter-mean(x_new)    (128-lane padded)
        "global": init_mlp3(keys[3], [node_out], [nop], node_out, node_out),
    }
    head_ws, head_bs = [], []
    for k, (_, outdim) in zip(keys[4:], BRANCHES.items()):
        w, b = _linear(k, node_out, outdim)
        head_ws.append(w)
        head_bs.append(b)
    head_w = jnp.concatenate(head_ws, axis=1)            # [node_out, 25]
    head_b = jnp.concatenate(head_bs, axis=1)            # [1, 25]
    params["head_w"] = _pad_rows_cols(head_w, nop, HEAD_PAD)
    params["head_b"] = _pad_cols(head_b, HEAD_PAD)
    return params


# -----------------------------------------------------------------------------
# NuModel forward
# -----------------------------------------------------------------------------
@functools.partial(jax.jit, static_argnames=("num_graphs", "force_tiled"))
def nu_model_forward(params, x, edge_index, edge_attr, batch, num_graphs,
                     force_tiled=False):
    x = x.astype(jnp.float32)
    edge_attr = edge_attr.astype(jnp.float32)
    row, col = edge_index[0], edge_index[1]
    # TODO(synk): x[row]/x[col] gathers stay as XLA glue (manual DMA row gather
    # via scalar-prefetched edge_index not implemented).
    x_row = x[row]
    x_col = x[col]

    # EdgeModel: edge_mlp on (x[row] | x[col] | edge_attr)  (concat-free)
    e = run_mlp3([x_row, x_col, edge_attr], params["edge"],
                 force_tiled=force_tiled)                       # [E, 128]

    # NodeModel: node_mlp_1 on (x[row] | e), scatter-mean to col,
    #            node_mlp_2 on (x | agg)
    msg = run_mlp3([x_row, e], params["node1"], force_tiled=force_tiled)
    agg = scatter_mean(msg, col, x.shape[0])                    # [N, 128]
    x_new = run_mlp3([x, agg], params["node2"], force_tiled=force_tiled)

    # GlobalModel + all 7 prediction heads fused in one kernel
    g_in = scatter_mean(x_new, batch, num_graphs)               # [G, 128]
    flat = run_global_heads(g_in, params["global"],
                            params["head_w"], params["head_b"])

    preds = {}
    off = 0
    for name, dim in BRANCHES.items():
        preds[name] = flat[:, off:off + dim]
        off += dim
    return preds


# -----------------------------------------------------------------------------
if __name__ == "__main__":
    NODE_IN, EDGE_IN, NODE_OUT, EDGE_OUT = 9, 12, 64, 64
    N_NODES, N_EDGES, N_GRAPHS = 32, 64, 4

    key = jax.random.PRNGKey(0)
    k_par, k_x, k_e, k_ei = jax.random.split(key, 4)

    params = init_nu_model(k_par, NODE_IN, EDGE_IN, NODE_OUT, EDGE_OUT)

    x = jax.random.normal(k_x, (N_NODES, NODE_IN), jnp.float32)
    edge_attr = jax.random.normal(k_e, (N_EDGES, EDGE_IN), jnp.float32)
    edge_index = jax.random.randint(k_ei, (2, N_EDGES), 0, N_NODES,
                                    dtype=jnp.int32)
    batch = jnp.repeat(jnp.arange(N_GRAPHS, dtype=jnp.int32),
                       N_NODES // N_GRAPHS)

    # Small-row fast path (single-launch fused MLP kernels).
    preds = nu_model_forward(params, x, edge_index, edge_attr, batch,
                             num_graphs=N_GRAPHS)
    preds = jax.block_until_ready(preds)

    # Force the row-tiled / partial-stats path to exercise the scalable kernels.
    preds_tiled = nu_model_forward(params, x, edge_index, edge_attr, batch,
                                   num_graphs=N_GRAPHS, force_tiled=True)
    preds_tiled = jax.block_until_ready(preds_tiled)

    # sanity: shapes, finiteness, probability ranges, softmax normalization
    for p_ in (preds, preds_tiled):
        assert p_["sign"].shape == (N_GRAPHS, 1)
        assert bool(jnp.all(jnp.isfinite(p_["sign"])))
        assert bool(jnp.all((p_["sign"] >= 0.0) & (p_["sign"] <= 1.0)))
        for name in ("flavor", "mode", "protons", "pions", "pi0s", "neutrons"):
            assert p_[name].shape == (N_GRAPHS, 4)
            assert bool(jnp.all(jnp.isfinite(p_[name])))
            assert bool(jnp.all(p_[name] >= 0.0))
            # bf16 segment-mask matmul in the softmax denominator -> ~0.5%
            assert bool(jnp.allclose(jnp.sum(p_[name], axis=1), 1.0, atol=2e-2))

    # Path agreement: both paths now run the identical bf16/f32 arithmetic; the
    # residual difference comes only from where the BN batch statistics are
    # reduced (in-kernel vs per-tile partial sums), amplified by training-mode
    # BatchNorm on small batches -> keep a loose tolerance.
    for name in preds:
        assert bool(jnp.allclose(preds[name], preds_tiled[name], atol=0.1))

    print("KERNEL_OK")
</pallas_src>

<mosaic_0001>
module attributes {stable_mosaic.version = 11 : i64} {
  func.func private @main(%arg0: i32) attributes {dimension_semantics = [#tpu.dimension_semantics<core_parallel>], iteration_bounds = array<i64: 2>, tpu.core_type = #tpu.core_type<sc_scalar_subcore>, window_params = []} {
    return
  }
}

module attributes {stable_mosaic.version = 11 : i64} {
  func.func private @main(%arg0: i32) attributes {dimension_semantics = [#tpu.dimension_semantics<core_parallel>], iteration_bounds = array<i64: 2>, tpu.core_type = #tpu.core_type<sc_scalar_subcore>, window_params = []} {
    return
  }
}

module attributes {stable_mosaic.version = 11 : i64} {
  func.func @mlp3_fused_kernel(%arg0: i32, %arg1: memref<64x9xf32, #tpu.memory_space<vmem>>, %arg2: memref<64x128xf32, #tpu.memory_space<vmem>>, %arg3: memref<1x9xf32, #tpu.memory_space<vmem>>, %arg4: memref<1x128xf32, #tpu.memory_space<vmem>>, %arg5: memref<1x9xf32, #tpu.memory_space<vmem>>, %arg6: memref<1x128xf32, #tpu.memory_space<vmem>>, %arg7: memref<9x128xf32, #tpu.memory_space<vmem>>, %arg8: memref<128x128xf32, #tpu.memory_space<vmem>>, %arg9: memref<1x128xf32, #tpu.memory_space<vmem>>, %arg10: memref<1x128xf32, #tpu.memory_space<vmem>>, %arg11: memref<1x128xf32, #tpu.memory_space<vmem>>, %arg12: memref<128x128xf32, #tpu.memory_space<vmem>>, %arg13: memref<1x128xf32, #tpu.memory_space<vmem>>, %arg14: memref<1x128xf32, #tpu.memory_space<vmem>>, %arg15: memref<1x128xf32, #tpu.memory_space<vmem>>, %arg16: memref<128x128xf32, #tpu.memory_space<vmem>>, %arg17: memref<1x128xf32, #tpu.memory_space<vmem>>, %arg18: memref<64x128xf32, #tpu.memory_space<vmem>>) attributes {dimension_semantics = [#tpu.dimension_semantics<arbitrary>], iteration_bounds = array<i64: 1>, scalar_prefetch = 0 : i64, scratch_operands = 0 : i64, tpu.core_type = #tpu.core_type<tc>, window_params = [{pipeline_mode = #tpu.pipeline_mode<synchronous>, transform_indices = @transform_0, window_bounds = array<i64: 64, 9>}, {pipeline_mode = #tpu.pipeline_mode<synchronous>, transform_indices = @transform_1, window_bounds = array<i64: 64, 128>}, {pipeline_mode = #tpu.pipeline_mode<synchronous>, transform_indices = @transform_2, window_bounds = array<i64: 1, 9>}, {pipeline_mode = #tpu.pipeline_mode<synchronous>, transform_indices = @transform_3, window_bounds = array<i64: 1, 128>}, {pipeline_mode = #tpu.pipeline_mode<synchronous>, transform_indices = @transform_4, window_bounds = array<i64: 1, 9>}, {pipeline_mode = #tpu.pipeline_mode<synchronous>, transform_indices = @transform_5, window_bounds = array<i64: 1, 128>}, {pipeline_mode = #tpu.pipeline_mode<synchronous>, transform_indices = @transform_6, window_bounds = array<i64: 9, 128>}, {pipeline_mode = #tpu.pipeline_mode<synchronous>, transform_indices = @transform_7, window_bounds = array<i64: 128, 128>}, {pipeline_mode = #tpu.pipeline_mode<synchronous>, transform_indices = @transform_8, window_bounds = array<i64: 1, 128>}, {pipeline_mode = #tpu.pipeline_mode<synchronous>, transform_indices = @transform_9, window_bounds = array<i64: 1, 128>}, {pipeline_mode = #tpu.pipeline_mode<synchronous>, transform_indices = @transform_10, window_bounds = array<i64: 1, 128>}, {pipeline_mode = #tpu.pipeline_mode<synchronous>, transform_indices = @transform_11, window_bounds = array<i64: 128, 128>}, {pipeline_mode = #tpu.pipeline_mode<synchronous>, transform_indices = @transform_12, window_bounds = array<i64: 1, 128>}, {pipeline_mode = #tpu.pipeline_mode<synchronous>, transform_indices = @transform_13, window_bounds = array<i64: 1, 128>}, {pipeline_mode = #tpu.pipeline_mode<synchronous>, transform_indices = @transform_14, window_bounds = array<i64: 1, 128>}, {pipeline_mode = #tpu.pipeline_mode<synchronous>, transform_indices = @transform_15, window_bounds = array<i64: 128, 128>}, {pipeline_mode = #tpu.pipeline_mode<synchronous>, transform_indices = @transform_16, window_bounds = array<i64: 1, 128>}, {pipeline_mode = #tpu.pipeline_mode<synchronous>, transform_indices = @transform_17, window_bounds = array<i64: 64, 128>}]} {
    %c0 = arith.constant 0 : index
    %c0_0 = arith.constant 0 : index
    %0 = vector.load %arg1[%c0, %c0_0] : memref<64x9xf32, #tpu.memory_space<vmem>>, vector<64x9xf32>
    %c0_1 = arith.constant 0 : index
    %c0_2 = arith.constant 0 : index
    %1 = vector.load %arg3[%c0_1, %c0_2] : memref<1x9xf32, #tpu.memory_space<vmem>>, vector<1x9xf32>
    %c0_3 = arith.constant 0 : index
    %c0_4 = arith.constant 0 : index
    %2 = vector.load %arg5[%c0_3, %c0_4] : memref<1x9xf32, #tpu.memory_space<vmem>>, vector<1x9xf32>
    %cst = arith.constant dense<0.000000e+00> : vector<9xf32>
    %3 = vector.multi_reduction <add>, %0, %cst [0] : vector<64x9xf32> to vector<9xf32>
    %4 = vector.shape_cast %3 : vector<9xf32> to vector<1x9xf32>
    %cst_5 = arith.constant 6.400000e+01 : f32
    %5 = vector.broadcast %cst_5 : f32 to vector<1x9xf32>
    %6 = arith.divf %4, %5 : vector<1x9xf32>
    %7 = arith.mulf %0, %0 : vector<64x9xf32>
    %cst_6 = arith.constant dense<0.000000e+00> : vector<9xf32>
    %8 = vector.multi_reduction <add>, %7, %cst_6 [0] : vector<64x9xf32> to vector<9xf32>
    %9 = vector.shape_cast %8 : vector<9xf32> to vector<1x9xf32>
    %cst_7 = arith.constant 6.400000e+01 : f32
    %10 = vector.broadcast %cst_7 : f32 to vector<1x9xf32>
    %11 = arith.divf %9, %10 : vector<1x9xf32>
    %12 = arith.mulf %6, %6 : vector<1x9xf32>
    %13 = arith.subf %11, %12 : vector<1x9xf32>
    %cst_8 = arith.constant 0.000000e+00 : f32
    %14 = vector.broadcast %cst_8 : f32 to vector<1x9xf32>
    %15 = arith.maximumf %13, %14 : vector<1x9xf32>
    %cst_9 = arith.constant 9.99999974E-6 : f32
    %16 = vector.broadcast %cst_9 : f32 to vector<1x9xf32>
    %17 = arith.addf %15, %16 : vector<1x9xf32>
    %18 = math.rsqrt %17 : vector<1x9xf32>
    %19 = arith.mulf %1, %18 : vector<1x9xf32>
    %20 = vector.broadcast %19 : vector<1x9xf32> to vector<64x9xf32>
    %21 = arith.mulf %0, %20 : vector<64x9xf32>
    %22 = arith.mulf %6, %19 : vector<1x9xf32>
    %23 = arith.subf %2, %22 : vector<1x9xf32>
    %24 = vector.broadcast %23 : vector<1x9xf32> to vector<64x9xf32>
    %25 = arith.addf %21, %24 : vector<64x9xf32>
    %26 = arith.truncf %25 : vector<64x9xf32> to vector<64x9xbf16>
    %c0_10 = arith.constant 0 : index
    %c0_11 = arith.constant 0 : index
    %27 = vector.load %arg7[%c0_10, %c0_11] : memref<9x128xf32, #tpu.memory_space<vmem>>, vector<9x128xf32>
    %28 = arith.truncf %27 : vector<9x128xf32> to vector<9x128xbf16>
    %cst_12 = arith.constant dense<0.000000e+00> : vector<64x128xf32>
    %29 = tpu.matmul %26, %28, %cst_12 {dimension_numbers = #tpu.dot_dimension_numbers<[1], [0], [0], [1], [0, 0, 1, 1], [], []>} : vector<64x9xbf16>, vector<9x128xbf16>, vector<64x128xf32> -> vector<64x128xf32>
    %c0_13 = arith.constant 0 : index
    %c0_14 = arith.constant 0 : index
    %30 = vector.load %arg2[%c0_13, %c0_14] : memref<64x128xf32, #tpu.memory_space<vmem>>, vector<64x128xf32>
    %c0_15 = arith.constant 0 : index
    %c0_16 = arith.constant 0 : index
    %31 = vector.load %arg4[%c0_15, %c0_16] : memref<1x128xf32, #tpu.memory_space<vmem>>, vector<1x128xf32>
    %c0_17 = arith.constant 0 : index
    %c0_18 = arith.constant 0 : index
    %32 = vector.load %arg6[%c0_17, %c0_18] : memref<1x128xf32, #tpu.memory_space<vmem>>, vector<1x128xf32>
    %cst_19 = arith.constant dense<0.000000e+00> : vector<128xf32>
    %33 = vector.multi_reduction <add>, %30, %cst_19 [0] : vector<64x128xf32> to vector<128xf32>
    %34 = vector.shape_cast %33 : vector<128xf32> to vector<1x128xf32>
    %cst_20 = arith.constant 6.400000e+01 : f32
    %35 = vector.broadcast %cst_20 : f32 to vector<1x128xf32>
    %36 = arith.divf %34, %35 : vector<1x128xf32>
    %37 = arith.mulf %30, %30 : vector<64x128xf32>
    %cst_21 = arith.constant dense<0.000000e+00> : vector<128xf32>
    %38 = vector.multi_reduction <add>, %37, %cst_21 [0] : vector<64x128xf32> to vector<128xf32>
    %39 = vector.shape_cast %38 : vector<128xf32> to vector<1x128xf32>
    %cst_22 = arith.constant 6.400000e+01 : f32
    %40 = vector.broadcast %cst_22 : f32 to vector<1x128xf32>
    %41 = arith.divf %39, %40 : vector<1x128xf32>
    %42 = arith.mulf %36, %36 : vector<1x128xf32>
    %43 = arith.subf %41, %42 : vector<1x128xf32>
    %cst_23 = arith.constant 0.000000e+00 : f32
    %44 = vector.broadcast %cst_23 : f32 to vector<1x128xf32>
    %45 = arith.maximumf %43, %44 : vector<1x128xf32>
    %cst_24 = arith.constant 9.99999974E-6 : f32
    %46 = vector.broadcast %cst_24 : f32 to vector<1x128xf32>
    %47 = arith.addf %45, %46 : vector<1x128xf32>
    %48 = math.rsqrt %47 : vector<1x128xf32>
    %49 = arith.mulf %31, %48 : vector<1x128xf32>
    %50 = vector.broadcast %49 : vector<1x128xf32> to vector<64x128xf32>
    %51 = arith.mulf %30, %50 : vector<64x128xf32>
    %52 = arith.mulf %36, %49 : vector<1x128xf32>
    %53 = arith.subf %32, %52 : vector<1x128xf32>
    %54 = vector.broadcast %53 : vector<1x128xf32> to vector<64x128xf32>
    %55 = arith.addf %51, %54 : vector<64x128xf32>
    %56 = arith.truncf %55 : vector<64x128xf32> to vector<64x128xbf16>
    %c0_25 = arith.constant 0 : index
    %c0_26 = arith.constant 0 : index
    %57 = vector.load %arg8[%c0_25, %c0_26] : memref<128x128xf32, #tpu.memory_space<vmem>>, vector<128x128xf32>
    %58 = arith.truncf %57 : vector<128x128xf32> to vector<128x128xbf16>
    %cst_27 = arith.constant dense<0.000000e+00> : vector<64x128xf32>
    %59 = tpu.matmul %56, %58, %cst_27 {dimension_numbers = #tpu.dot_dimension_numbers<[1], [0], [0], [1], [0, 0, 1, 1], [], []>} : vector<64x128xbf16>, vector<128x128xbf16>, vector<64x128xf32> -> vector<64x128xf32>
    %60 = arith.addf %29, %59 : vector<64x128xf32>
    %c0_28 = arith.constant 0 : index
    %c0_29 = arith.constant 0 : index
    %61 = vector.load %arg9[%c0_28, %c0_29] : memref<1x128xf32, #tpu.memory_space<vmem>>, vector<1x128xf32>
    %62 = vector.broadcast %61 : vector<1x128xf32> to vector<64x128xf32>
    %63 = arith.addf %60, %62 : vector<64x128xf32>
    %cst_30 = arith.constant 0.000000e+00 : f32
    %64 = vector.broadcast %cst_30 : f32 to vector<64x128xf32>
    %65 = arith.cmpf oge, %63, %64 : vector<64x128xf32>
    %cst_31 = arith.constant 0.000000e+00 : f32
    %66 = vector.broadcast %cst_31 : f32 to vector<64x128xf32>
    %67 = arith.mulf %66, %63 : vector<64x128xf32>
    %68 = arith.select %65, %63, %67 : vector<64x128xi1>, vector<64x128xf32>
    %c0_32 = arith.constant 0 : index
    %c0_33 = arith.constant 0 : index
    %69 = vector.load %arg10[%c0_32, %c0_33] : memref<1x128xf32, #tpu.memory_space<vmem>>, vector<1x128xf32>
    %c0_34 = arith.constant 0 : index
    %c0_35 = arith.constant 0 : index
    %70 = vector.load %arg11[%c0_34, %c0_35] : memref<1x128xf32, #tpu.memory_space<vmem>>, vector<1x128xf32>
    %cst_36 = arith.constant dense<0.000000e+00> : vector<128xf32>
    %71 = vector.multi_reduction <add>, %68, %cst_36 [0] : vector<64x128xf32> to vector<128xf32>
    %72 = vector.shape_cast %71 : vector<128xf32> to vector<1x128xf32>
    %cst_37 = arith.constant 6.400000e+01 : f32
    %73 = vector.broadcast %cst_37 : f32 to vector<1x128xf32>
    %74 = arith.divf %72, %73 : vector<1x128xf32>
    %75 = arith.mulf %68, %68 : vector<64x128xf32>
    %cst_38 = arith.constant dense<0.000000e+00> : vector<128xf32>
    %76 = vector.multi_reduction <add>, %75, %cst_38 [0] : vector<64x128xf32> to vector<128xf32>
    %77 = vector.shape_cast %76 : vector<128xf32> to vector<1x128xf32>
    %cst_39 = arith.constant 6.400000e+01 : f32
    %78 = vector.broadcast %cst_39 : f32 to vector<1x128xf32>
    %79 = arith.divf %77, %78 : vector<1x128xf32>
    %80 = arith.mulf %74, %74 : vector<1x128xf32>
    %81 = arith.subf %79, %80 : vector<1x128xf32>
    %cst_40 = arith.constant 0.000000e+00 : f32
    %82 = vector.broadcast %cst_40 : f32 to vector<1x128xf32>
    %83 = arith.maximumf %81, %82 : vector<1x128xf32>
    %cst_41 = arith.constant 9.99999974E-6 : f32
    %84 = vector.broadcast %cst_41 : f32 to vector<1x128xf32>
    %85 = arith.addf %83, %84 : vector<1x128xf32>
    %86 = math.rsqrt %85 : vector<1x128xf32>
    %87 = arith.mulf %69, %86 : vector<1x128xf32>
    %88 = vector.broadcast %87 : vector<1x128xf32> to vector<64x128xf32>
    %89 = arith.mulf %68, %88 : vector<64x128xf32>
    %90 = arith.mulf %74, %87 : vector<1x128xf32>
    %91 = arith.subf %70, %90 : vector<1x128xf32>
    %92 = vector.broadcast %91 : vector<1x128xf32> to vector<64x128xf32>
    %93 = arith.addf %89, %92 : vector<64x128xf32>
    %c0_42 = arith.constant 0 : index
    %c0_43 = arith.constant 0 : index
    %94 = vector.load %arg12[%c0_42, %c0_43] : memref<128x128xf32, #tpu.memory_space<vmem>>, vector<128x128xf32>
    %c0_44 = arith.constant 0 : index
    %c0_45 = arith.constant 0 : index
    %95 = vector.load %arg13[%c0_44, %c0_45] : memref<1x128xf32, #tpu.memory_space<vmem>>, vector<1x128xf32>
    %96 = arith.truncf %93 : vector<64x128xf32> to vector<64x128xbf16>
    %97 = arith.truncf %94 : vector<128x128xf32> to vector<128x128xbf16>
    %cst_46 = arith.constant dense<0.000000e+00> : vector<64x128xf32>
    %98 = tpu.matmul %96, %97, %cst_46 {dimension_numbers = #tpu.dot_dimension_numbers<[1], [0], [0], [1], [0, 0, 1, 1], [], []>} : vector<64x128xbf16>, vector<128x128xbf16>, vector<64x128xf32> -> vector<64x128xf32>
    %99 = vector.broadcast %95 : vector<1x128xf32> to vector<64x128xf32>
    %100 = arith.addf %98, %99 : vector<64x128xf32>
    %cst_47 = arith.constant 0.000000e+00 : f32
    %101 = vector.broadcast %cst_47 : f32 to vector<64x128xf32>
    %102 = arith.cmpf oge, %100, %101 : vector<64x128xf32>
    %cst_48 = arith.constant 0.000000e+00 : f32
    %103 = vector.broadcast %cst_48 : f32 to vector<64x128xf32>
    %104 = arith.mulf %103, %100 : vector<64x128xf32>
    %105 = arith.select %102, %100, %104 : vector<64x128xi1>, vector<64x128xf32>
    %c0_49 = arith.constant 0 : index
    %c0_50 = arith.constant 0 : index
    %106 = vector.load %arg14[%c0_49, %c0_50] : memref<1x128xf32, #tpu.memory_space<vmem>>, vector<1x128xf32>
    %c0_51 = arith.constant 0 : index
    %c0_52 = arith.constant 0 : index
    %107 = vector.load %arg15[%c0_51, %c0_52] : memref<1x128xf32, #tpu.memory_space<vmem>>, vector<1x128xf32>
    %cst_53 = arith.constant dense<0.000000e+00> : vector<128xf32>
    %108 = vector.multi_reduction <add>, %105, %cst_53 [0] : vector<64x128xf32> to vector<128xf32>
    %109 = vector.shape_cast %108 : vector<128xf32> to vector<1x128xf32>
    %cst_54 = arith.constant 6.400000e+01 : f32
    %110 = vector.broadcast %cst_54 : f32 to vector<1x128xf32>
    %111 = arith.divf %109, %110 : vector<1x128xf32>
    %112 = arith.mulf %105, %105 : vector<64x128xf32>
    %cst_55 = arith.constant dense<0.000000e+00> : vector<128xf32>
    %113 = vector.multi_reduction <add>, %112, %cst_55 [0] : vector<64x128xf32> to vector<128xf32>
    %114 = vector.shape_cast %113 : vector<128xf32> to vector<1x128xf32>
    %cst_56 = arith.constant 6.400000e+01 : f32
    %115 = vector.broadcast %cst_56 : f32 to vector<1x128xf32>
    %116 = arith.divf %114, %115 : vector<1x128xf32>
    %117 = arith.mulf %111, %111 : vector<1x128xf32>
    %118 = arith.subf %116, %117 : vector<1x128xf32>
    %cst_57 = arith.constant 0.000000e+00 : f32
    %119 = vector.broadcast %cst_57 : f32 to vector<1x128xf32>
    %120 = arith.maximumf %118, %119 : vector<1x128xf32>
    %cst_58 = arith.constant 9.99999974E-6 : f32
    %121 = vector.broadcast %cst_58 : f32 to vector<1x128xf32>
    %122 = arith.addf %120, %121 : vector<1x128xf32>
    %123 = math.rsqrt %122 : vector<1x128xf32>
    %124 = arith.mulf %106, %123 : vector<1x128xf32>
    %125 = vector.broadcast %124 : vector<1x128xf32> to vector<64x128xf32>
    %126 = arith.mulf %105, %125 : vector<64x128xf32>
    %127 = arith.mulf %111, %124 : vector<1x128xf32>
    %128 = arith.subf %107, %127 : vector<1x128xf32>
    %129 = vector.broadcast %128 : vector<1x128xf32> to vector<64x128xf32>
    %130 = arith.addf %126, %129 : vector<64x128xf32>
    %c0_59 = arith.constant 0 : index
    %c0_60 = arith.constant 0 : index
    %131 = vector.load %arg16[%c0_59, %c0_60] : memref<128x128xf32, #tpu.memory_space<vmem>>, vector<128x128xf32>
    %c0_61 = arith.constant 0 : index
    %c0_62 = arith.constant 0 : index
    %132 = vector.load %arg17[%c0_61, %c0_62] : memref<1x128xf32, #tpu.memory_space<vmem>>, vector<1x128xf32>
    %133 = arith.truncf %130 : vector<64x128xf32> to vector<64x128xbf16>
    %134 = arith.truncf %131 : vector<128x128xf32> to vector<128x128xbf16>
    %cst_63 = arith.constant dense<0.000000e+00> : vector<64x128xf32>
    %135 = tpu.matmul %133, %134, %cst_63 {dimension_numbers = #tpu.dot_dimension_numbers<[1], [0], [0], [1], [0, 0, 1, 1], [], []>} : vector<64x128xbf16>, vector<128x128xbf16>, vector<64x128xf32> -> vector<64x128xf32>
    %136 = vector.broadcast %132 : vector<1x128xf32> to vector<64x128xf32>
    %137 = arith.addf %135, %136 : vector<64x128xf32>
    %c0_64 = arith.constant 0 : index
    %c0_65 = arith.constant 0 : index
    %138 = vector.load %arg18[%c0_64, %c0_65] : memref<64x128xf32, #tpu.memory_space<vmem>>, vector<64x128xf32>
    tpu.vector_store %arg18[%c0_64, %c0_65], %137 {strides = array<i32>} : memref<64x128xf32, #tpu.memory_space<vmem>>, vector<64x128xf32>,
    return
  }
  func.func @transform_0(%arg0: i32) -> (i32, i32) {
    %c0_i32 = arith.constant 0 : i32
    %c0_i32_0 = arith.constant 0 : i32
    %c0_i32_1 = arith.constant 0 : i32
    return %c0_i32, %c0_i32_0 : i32, i32
  }
  func.func @transform_1(%arg0: i32) -> (i32, i32) {
    %c0_i32 = arith.constant 0 : i32
    %c0_i32_0 = arith.constant 0 : i32
    %c0_i32_1 = arith.constant 0 : i32
    return %c0_i32, %c0_i32_0 : i32, i32
  }
  func.func @transform_2(%arg0: i32) -> (i32, i32) {
    %c0_i32 = arith.constant 0 : i32
    %c0_i32_0 = arith.constant 0 : i32
    %c0_i32_1 = arith.constant 0 : i32
    return %c0_i32, %c0_i32_0 : i32, i32
  }
  func.func @transform_3(%arg0: i32) -> (i32, i32) {
    %c0_i32 = arith.constant 0 : i32
    %c0_i32_0 = arith.constant 0 : i32
    %c0_i32_1 = arith.constant 0 : i32
    return %c0_i32, %c0_i32_0 : i32, i32
  }
  func.func @transform_4(%arg0: i32) -> (i32, i32) {
    %c0_i32 = arith.constant 0 : i32
    %c0_i32_0 = arith.constant 0 : i32
    %c0_i32_1 = arith.constant 0 : i32
    return %c0_i32, %c0_i32_0 : i32, i32
  }
  func.func @transform_5(%arg0: i32) -> (i32, i32) {
    %c0_i32 = arith.constant 0 : i32
    %c0_i32_0 = arith.constant 0 : i32
    %c0_i32_1 = arith.constant 0 : i32
    return %c0_i32, %c0_i32_0 : i32, i32
  }
  func.func @transform_6(%arg0: i32) -> (i32, i32) {
    %c0_i32 = arith.constant 0 : i32
    %c0_i32_0 = arith.constant 0 : i32
    %c0_i32_1 = arith.constant 0 : i32
    return %c0_i32, %c0_i32_0 : i32, i32
  }
  func.func @transform_7(%arg0: i32) -> (i32, i32) {
    %c0_i32 = arith.constant 0 : i32
    %c0_i32_0 = arith.constant 0 : i32
    %c0_i32_1 = arith.constant 0 : i32
    return %c0_i32, %c0_i32_0 : i32, i32
  }
  func.func @transform_8(%arg0: i32) -> (i32, i32) {
    %c0_i32 = arith.constant 0 : i32
    %c0_i32_0 = arith.constant 0 : i32
    %c0_i32_1 = arith.constant 0 : i32
    return %c0_i32, %c0_i32_0 : i32, i32
  }
  func.func @transform_9(%arg0: i32) -> (i32, i32) {
    %c0_i32 = arith.constant 0 : i32
    %c0_i32_0 = arith.constant 0 : i32
    %c0_i32_1 = arith.constant 0 : i32
    return %c0_i32, %c0_i32_0 : i32, i32
  }
  func.func @transform_10(%arg0: i32) -> (i32, i32) {
    %c0_i32 = arith.constant 0 : i32
    %c0_i32_0 = arith.constant 0 : i32
    %c0_i32_1 = arith.constant 0 : i32
    return %c0_i32, %c0_i32_0 : i32, i32
  }
  func.func @transform_11(%arg0: i32) -> (i32, i32) {
    %c0_i32 = arith.constant 0 : i32
    %c0_i32_0 = arith.constant 0 : i32
    %c0_i32_1 = arith.constant 0 : i32
    return %c0_i32, %c0_i32_0 : i32, i32
  }
  func.func @transform_12(%arg0: i32) -> (i32, i32) {
    %c0_i32 = arith.constant 0 : i32
    %c0_i32_0 = arith.constant 0 : i32
    %c0_i32_1 = arith.constant 0 : i32
    return %c0_i32, %c0_i32_0 : i32, i32
  }
  func.func @transform_13(%arg0: i32) -> (i32, i32) {
    %c0_i32 = arith.constant 0 : i32
    %c0_i32_0 = arith.constant 0 : i32
    %c0_i32_1 = arith.constant 0 : i32
    return %c0_i32, %c0_i32_0 : i32, i32
  }
  func.func @transform_14(%arg0: i32) -> (i32, i32) {
    %c0_i32 = arith.constant 0 : i32
    %c0_i32_0 = arith.constant 0 : i32
    %c0_i32_1 = arith.constant 0 : i32
    return %c0_i32, %c0_i32_0 : i32, i32
  }
  func.func @transform_15(%arg0: i32) -> (i32, i32) {
    %c0_i32 = arith.constant 0 : i32
    %c0_i32_0 = arith.constant 0 : i32
    %c0_i32_1 = arith.constant 0 : i32
    return %c0_i32, %c0_i32_0 : i32, i32
  }
  func.func @transform_16(%arg0: i32) -> (i32, i32) {
    %c0_i32 = arith.constant 0 : i32
    %c0_i32_0 = arith.constant 0 : i32
    %c0_i32_1 = arith.constant 0 : i32
    return %c0_i32, %c0_i32_0 : i32, i32
  }
  func.func @transform_17(%arg0: i32) -> (i32, i32) {
    %c0_i32 = arith.constant 0 : i32
    %c0_i32_0 = arith.constant 0 : i32
    %c0_i32_1 = arith.constant 0 : i32
    return %c0_i32, %c0_i32_0 : i32, i32
  }
}

module attributes {stable_mosaic.version = 11 : i64} {
  func.func @mlp3_fused_kernel(%arg0: i32, %arg1: memref<64x9xf32, #tpu.memory_space<vmem>>, %arg2: memref<64x9xf32, #tpu.memory_space<vmem>>, %arg3: memref<64x12xf32, #tpu.memory_space<vmem>>, %arg4: memref<1x9xf32, #tpu.memory_space<vmem>>, %arg5: memref<1x9xf32, #tpu.memory_space<vmem>>, %arg6: memref<1x12xf32, #tpu.memory_space<vmem>>, %arg7: memref<1x9xf32, #tpu.memory_space<vmem>>, %arg8: memref<1x9xf32, #tpu.memory_space<vmem>>, %arg9: memref<1x12xf32, #tpu.memory_space<vmem>>, %arg10: memref<9x128xf32, #tpu.memory_space<vmem>>, %arg11: memref<9x128xf32, #tpu.memory_space<vmem>>, %arg12: memref<12x128xf32, #tpu.memory_space<vmem>>, %arg13: memref<1x128xf32, #tpu.memory_space<vmem>>, %arg14: memref<1x128xf32, #tpu.memory_space<vmem>>, %arg15: memref<1x128xf32, #tpu.memory_space<vmem>>, %arg16: memref<128x128xf32, #tpu.memory_space<vmem>>, %arg17: memref<1x128xf32, #tpu.memory_space<vmem>>, %arg18: memref<1x128xf32, #tpu.memory_space<vmem>>, %arg19: memref<1x128xf32, #tpu.memory_space<vmem>>, %arg20: memref<128x128xf32, #tpu.memory_space<vmem>>, %arg21: memref<1x128xf32, #tpu.memory_space<vmem>>, %arg22: memref<64x128xf32, #tpu.memory_space<vmem>>) attributes {dimension_semantics = [#tpu.dimension_semantics<arbitrary>], iteration_bounds = array<i64: 1>, scalar_prefetch = 0 : i64, scratch_operands = 0 : i64, tpu.core_type = #tpu.core_type<tc>, window_params = [{pipeline_mode = #tpu.pipeline_mode<synchronous>, transform_indices = @transform_0, window_bounds = array<i64: 64, 9>}, {pipeline_mode = #tpu.pipeline_mode<synchronous>, transform_indices = @transform_1, window_bounds = array<i64: 64, 9>}, {pipeline_mode = #tpu.pipeline_mode<synchronous>, transform_indices = @transform_2, window_bounds = array<i64: 64, 12>}, {pipeline_mode = #tpu.pipeline_mode<synchronous>, transform_indices = @transform_3, window_bounds = array<i64: 1, 9>}, {pipeline_mode = #tpu.pipeline_mode<synchronous>, transform_indices = @transform_4, window_bounds = array<i64: 1, 9>}, {pipeline_mode = #tpu.pipeline_mode<synchronous>, transform_indices = @transform_5, window_bounds = array<i64: 1, 12>}, {pipeline_mode = #tpu.pipeline_mode<synchronous>, transform_indices = @transform_6, window_bounds = array<i64: 1, 9>}, {pipeline_mode = #tpu.pipeline_mode<synchronous>, transform_indices = @transform_7, window_bounds = array<i64: 1, 9>}, {pipeline_mode = #tpu.pipeline_mode<synchronous>, transform_indices = @transform_8, window_bounds = array<i64: 1, 12>}, {pipeline_mode = #tpu.pipeline_mode<synchronous>, transform_indices = @transform_9, window_bounds = array<i64: 9, 128>}, {pipeline_mode = #tpu.pipeline_mode<synchronous>, transform_indices = @transform_10, window_bounds = array<i64: 9, 128>}, {pipeline_mode = #tpu.pipeline_mode<synchronous>, transform_indices = @transform_11, window_bounds = array<i64: 12, 128>}, {pipeline_mode = #tpu.pipeline_mode<synchronous>, transform_indices = @transform_12, window_bounds = array<i64: 1, 128>}, {pipeline_mode = #tpu.pipeline_mode<synchronous>, transform_indices = @transform_13, window_bounds = array<i64: 1, 128>}, {pipeline_mode = #tpu.pipeline_mode<synchronous>, transform_indices = @transform_14, window_bounds = array<i64: 1, 128>}, {pipeline_mode = #tpu.pipeline_mode<synchronous>, transform_indices = @transform_15, window_bounds = array<i64: 128, 128>}, {pipeline_mode = #tpu.pipeline_mode<synchronous>, transform_indices = @transform_16, window_bounds = array<i64: 1, 128>}, {pipeline_mode = #tpu.pipeline_mode<synchronous>, transform_indices = @transform_17, window_bounds = array<i64: 1, 128>}, {pipeline_mode = #tpu.pipeline_mode<synchronous>, transform_indices = @transform_18, window_bounds = array<i64: 1, 128>}, {pipeline_mode = #tpu.pipeline_mode<synchronous>, transform_indices = @transform_19, window_bounds = array<i64: 128, 128>}, {pipeline_mode = #tpu.pipeline_mode<synchronous>, transform_indices = @transform_20, window_bounds = array<i64: 1, 128>}, {pipeline_mode = #tpu.pipeline_mode<synchronous>, transform_indices = @transform_21, window_bounds = array<i64: 64, 128>}]} {
    %c0 = arith.constant 0 : index
    %c0_0 = arith.constant 0 : index
    %0 = vector.load %arg1[%c0, %c0_0] : memref<64x9xf32, #tpu.memory_space<vmem>>, vector<64x9xf32>
    %c0_1 = arith.constant 0 : index
    %c0_2 = arith.constant 0 : index
    %1 = vector.load %arg4[%c0_1, %c0_2] : memref<1x9xf32, #tpu.memory_space<vmem>>, vector<1x9xf32>
    %c0_3 = arith.constant 0 : index
    %c0_4 = arith.constant 0 : index
    %2 = vector.load %arg7[%c0_3, %c0_4] : memref<1x9xf32, #tpu.memory_space<vmem>>, vector<1x9xf32>
    %cst = arith.constant dense<0.000000e+00> : vector<9xf32>
    %3 = vector.multi_reduction <add>, %0, %cst [0] : vector<64x9xf32> to vector<9xf32>
    %4 = vector.shape_cast %3 : vector<9xf32> to vector<1x9xf32>
    %cst_5 = arith.constant 6.400000e+01 : f32
    %5 = vector.broadcast %cst_5 : f32 to vector<1x9xf32>
    %6 = arith.divf %4, %5 : vector<1x9xf32>
    %7 = arith.mulf %0, %0 : vector<64x9xf32>
    %cst_6 = arith.constant dense<0.000000e+00> : vector<9xf32>
    %8 = vector.multi_reduction <add>, %7, %cst_6 [0] : vector<64x9xf32> to vector<9xf32>
    %9 = vector.shape_cast %8 : vector<9xf32> to vector<1x9xf32>
    %cst_7 = arith.constant 6.400000e+01 : f32
    %10 = vector.broadcast %cst_7 : f32 to vector<1x9xf32>
    %11 = arith.divf %9, %10 : vector<1x9xf32>
    %12 = arith.mulf %6, %6 : vector<1x9xf32>
    %13 = arith.subf %11, %12 : vector<1x9xf32>
    %cst_8 = arith.constant 0.000000e+00 : f32
    %14 = vector.broadcast %cst_8 : f32 to vector<1x9xf32>
    %15 = arith.maximumf %13, %14 : vector<1x9xf32>
    %cst_9 = arith.constant 9.99999974E-6 : f32
    %16 = vector.broadcast %cst_9 : f32 to vector<1x9xf32>
    %17 = arith.addf %15, %16 : vector<1x9xf32>
    %18 = math.rsqrt %17 : vector<1x9xf32>
    %19 = arith.mulf %1, %18 : vector<1x9xf32>
    %20 = vector.broadcast %19 : vector<1x9xf32> to vector<64x9xf32>
    %21 = arith.mulf %0, %20 : vector<64x9xf32>
    %22 = arith.mulf %6, %19 : vector<1x9xf32>
    %23 = arith.subf %2, %22 : vector<1x9xf32>
    %24 = vector.broadcast %23 : vector<1x9xf32> to vector<64x9xf32>
    %25 = arith.addf %21, %24 : vector<64x9xf32>
    %26 = arith.truncf %25 : vector<64x9xf32> to vector<64x9xbf16>
    %c0_10 = arith.constant 0 : index
    %c0_11 = arith.constant 0 : index
    %27 = vector.load %arg10[%c0_10, %c0_11] : memref<9x128xf32, #tpu.memory_space<vmem>>, vector<9x128xf32>
    %28 = arith.truncf %27 : vector<9x128xf32> to vector<9x128xbf16>
    %cst_12 = arith.constant dense<0.000000e+00> : vector<64x128xf32>
    %29 = tpu.matmul %26, %28, %cst_12 {dimension_numbers = #tpu.dot_dimension_numbers<[1], [0], [0], [1], [0, 0, 1, 1], [], []>} : vector<64x9xbf16>, vector<9x128xbf16>, vector<64x128xf32> -> vector<64x128xf32>
    %c0_13 = arith.constant 0 : index
    %c0_14 = arith.constant 0 : index
    %30 = vector.load %arg2[%c0_13, %c0_14] : memref<64x9xf32, #tpu.memory_space<vmem>>, vector<64x9xf32>
    %c0_15 = arith.constant 0 : index
    %c0_16 = arith.constant 0 : index
    %31 = vector.load %arg5[%c0_15, %c0_16] : memref<1x9xf32, #tpu.memory_space<vmem>>, vector<1x9xf32>
    %c0_17 = arith.constant 0 : index
    %c0_18 = arith.constant 0 : index
    %32 = vector.load %arg8[%c0_17, %c0_18] : memref<1x9xf32, #tpu.memory_space<vmem>>, vector<1x9xf32>
    %cst_19 = arith.constant dense<0.000000e+00> : vector<9xf32>
    %33 = vector.multi_reduction <add>, %30, %cst_19 [0] : vector<64x9xf32> to vector<9xf32>
    %34 = vector.shape_cast %33 : vector<9xf32> to vector<1x9xf32>
    %cst_20 = arith.constant 6.400000e+01 : f32
    %35 = vector.broadcast %cst_20 : f32 to vector<1x9xf32>
    %36 = arith.divf %34, %35 : vector<1x9xf32>
    %37 = arith.mulf %30, %30 : vector<64x9xf32>
    %cst_21 = arith.constant dense<0.000000e+00> : vector<9xf32>
    %38 = vector.multi_reduction <add>, %37, %cst_21 [0] : vector<64x9xf32> to vector<9xf32>
    %39 = vector.shape_cast %38 : vector<9xf32> to vector<1x9xf32>
    %cst_22 = arith.constant 6.400000e+01 : f32
    %40 = vector.broadcast %cst_22 : f32 to vector<1x9xf32>
    %41 = arith.divf %39, %40 : vector<1x9xf32>
    %42 = arith.mulf %36, %36 : vector<1x9xf32>
    %43 = arith.subf %41, %42 : vector<1x9xf32>
    %cst_23 = arith.constant 0.000000e+00 : f32
    %44 = vector.broadcast %cst_23 : f32 to vector<1x9xf32>
    %45 = arith.maximumf %43, %44 : vector<1x9xf32>
    %cst_24 = arith.constant 9.99999974E-6 : f32
    %46 = vector.broadcast %cst_24 : f32 to vector<1x9xf32>
    %47 = arith.addf %45, %46 : vector<1x9xf32>
    %48 = math.rsqrt %47 : vector<1x9xf32>
    %49 = arith.mulf %31, %48 : vector<1x9xf32>
    %50 = vector.broadcast %49 : vector<1x9xf32> to vector<64x9xf32>
    %51 = arith.mulf %30, %50 : vector<64x9xf32>
    %52 = arith.mulf %36, %49 : vector<1x9xf32>
    %53 = arith.subf %32, %52 : vector<1x9xf32>
    %54 = vector.broadcast %53 : vector<1x9xf32> to vector<64x9xf32>
    %55 = arith.addf %51, %54 : vector<64x9xf32>
    %56 = arith.truncf %55 : vector<64x9xf32> to vector<64x9xbf16>
    %c0_25 = arith.constant 0 : index
    %c0_26 = arith.constant 0 : index
    %57 = vector.load %arg11[%c0_25, %c0_26] : memref<9x128xf32, #tpu.memory_space<vmem>>, vector<9x128xf32>
    %58 = arith.truncf %57 : vector<9x128xf32> to vector<9x128xbf16>
    %cst_27 = arith.constant dense<0.000000e+00> : vector<64x128xf32>
    %59 = tpu.matmul %56, %58, %cst_27 {dimension_numbers = #tpu.dot_dimension_numbers<[1], [0], [0], [1], [0, 0, 1, 1], [], []>} : vector<64x9xbf16>, vector<9x128xbf16>, vector<64x128xf32> -> vector<64x128xf32>
    %60 = arith.addf %29, %59 : vector<64x128xf32>
    %c0_28 = arith.constant 0 : index
    %c0_29 = arith.constant 0 : index
    %61 = vector.load %arg3[%c0_28, %c0_29] : memref<64x12xf32, #tpu.memory_space<vmem>>, vector<64x12xf32>
    %c0_30 = arith.constant 0 : index
    %c0_31 = arith.constant 0 : index
    %62 = vector.load %arg6[%c0_30, %c0_31] : memref<1x12xf32, #tpu.memory_space<vmem>>, vector<1x12xf32>
    %c0_32 = arith.constant 0 : index
    %c0_33 = arith.constant 0 : index
    %63 = vector.load %arg9[%c0_32, %c0_33] : memref<1x12xf32, #tpu.memory_space<vmem>>, vector<1x12xf32>
    %cst_34 = arith.constant dense<0.000000e+00> : vector<12xf32>
    %64 = vector.multi_reduction <add>, %61, %cst_34 [0] : vector<64x12xf32> to vector<12xf32>
    %65 = vector.shape_cast %64 : vector<12xf32> to vector<1x12xf32>
    %cst_35 = arith.constant 6.400000e+01 : f32
    %66 = vector.broadcast %cst_35 : f32 to vector<1x12xf32>
    %67 = arith.divf %65, %66 : vector<1x12xf32>
    %68 = arith.mulf %61, %61 : vector<64x12xf32>
    %cst_36 = arith.constant dense<0.000000e+00> : vector<12xf32>
    %69 = vector.multi_reduction <add>, %68, %cst_36 [0] : vector<64x12xf32> to vector<12xf32>
    %70 = vector.shape_cast %69 : vector<12xf32> to vector<1x12xf32>
    %cst_37 = arith.constant 6.400000e+01 : f32
    %71 = vector.broadcast %cst_37 : f32 to vector<1x12xf32>
    %72 = arith.divf %70, %71 : vector<1x12xf32>
    %73 = arith.mulf %67, %67 : vector<1x12xf32>
    %74 = arith.subf %72, %73 : vector<1x12xf32>
    %cst_38 = arith.constant 0.000000e+00 : f32
    %75 = vector.broadcast %cst_38 : f32 to vector<1x12xf32>
    %76 = arith.maximumf %74, %75 : vector<1x12xf32>
    %cst_39 = arith.constant 9.99999974E-6 : f32
    %77 = vector.broadcast %cst_39 : f32 to vector<1x12xf32>
    %78 = arith.addf %76, %77 : vector<1x12xf32>
    %79 = math.rsqrt %78 : vector<1x12xf32>
    %80 = arith.mulf %62, %79 : vector<1x12xf32>
    %81 = vector.broadcast %80 : vector<1x12xf32> to vector<64x12xf32>
    %82 = arith.mulf %61, %81 : vector<64x12xf32>
    %83 = arith.mulf %67, %80 : vector<1x12xf32>
    %84 = arith.subf %63, %83 : vector<1x12xf32>
    %85 = vector.broadcast %84 : vector<1x12xf32> to vector<64x12xf32>
    %86 = arith.addf %82, %85 : vector<64x12xf32>
    %87 = arith.truncf %86 : vector<64x12xf32> to vector<64x12xbf16>
    %c0_40 = arith.constant 0 : index
    %c0_41 = arith.constant 0 : index
    %88 = vector.load %arg12[%c0_40, %c0_41] : memref<12x128xf32, #tpu.memory_space<vmem>>, vector<12x128xf32>
    %89 = arith.truncf %88 : vector<12x128xf32> to vector<12x128xbf16>
    %cst_42 = arith.constant dense<0.000000e+00> : vector<64x128xf32>
    %90 = tpu.matmul %87, %89, %cst_42 {dimension_numbers = #tpu.dot_dimension_numbers<[1], [0], [0], [1], [0, 0, 1, 1], [], []>} : vector<64x12xbf16>, vector<12x128xbf16>, vector<64x128xf32> -> vector<64x128xf32>
    %91 = arith.addf %60, %90 : vector<64x128xf32>
    %c0_43 = arith.constant 0 : index
    %c0_44 = arith.constant 0 : index
    %92 = vector.load %arg13[%c0_43, %c0_44] : memref<1x128xf32, #tpu.memory_space<vmem>>, vector<1x128xf32>
    %93 = vector.broadcast %92 : vector<1x128xf32> to vector<64x128xf32>
    %94 = arith.addf %91, %93 : vector<64x128xf32>
    %cst_45 = arith.constant 0.000000e+00 : f32
    %95 = vector.broadcast %cst_45 : f32 to vector<64x128xf32>
    %96 = arith.cmpf oge, %94, %95 : vector<64x128xf32>
    %cst_46 = arith.constant 0.000000e+00 : f32
    %97 = vector.broadcast %cst_46 : f32 to vector<64x128xf32>
    %98 = arith.mulf %97, %94 : vector<64x128xf32>
    %99 = arith.select %96, %94, %98 : vector<64x128xi1>, vector<64x128xf32>
    %c0_47 = arith.constant 0 : index
    %c0_48 = arith.constant 0 : index
    %100 = vector.load %arg14[%c0_47, %c0_48] : memref<1x128xf32, #tpu.memory_space<vmem>>, vector<1x128xf32>
    %c0_49 = arith.constant 0 : index
    %c0_50 = arith.constant 0 : index
    %101 = vector.load %arg15[%c0_49, %c0_50] : memref<1x128xf32, #tpu.memory_space<vmem>>, vector<1x128xf32>
    %cst_51 = arith.constant dense<0.000000e+00> : vector<128xf32>
    %102 = vector.multi_reduction <add>, %99, %cst_51 [0] : vector<64x128xf32> to vector<128xf32>
    %103 = vector.shape_cast %102 : vector<128xf32> to vector<1x128xf32>
    %cst_52 = arith.constant 6.400000e+01 : f32
    %104 = vector.broadcast %cst_52 : f32 to vector<1x128xf32>
    %105 = arith.divf %103, %104 : vector<1x128xf32>
    %106 = arith.mulf %99, %99 : vector<64x128xf32>
    %cst_53 = arith.constant dense<0.000000e+00> : vector<128xf32>
    %107 = vector.multi_reduction <add>, %106, %cst_53 [0] : vector<64x128xf32> to vector<128xf32>
    %108 = vector.shape_cast %107 : vector<128xf32> to vector<1x128xf32>
    %cst_54 = arith.constant 6.400000e+01 : f32
    %109 = vector.broadcast %cst_54 : f32 to vector<1x128xf32>
    %110 = arith.divf %108, %109 : vector<1x128xf32>
    %111 = arith.mulf %105, %105 : vector<1x128xf32>
    %112 = arith.subf %110, %111 : vector<1x128xf32>
    %cst_55 = arith.constant 0.000000e+00 : f32
    %113 = vector.broadcast %cst_55 : f32 to vector<1x128xf32>
    %114 = arith.maximumf %112, %113 : vector<1x128xf32>
    %cst_56 = arith.constant 9.99999974E-6 : f32
    %115 = vector.broadcast %cst_56 : f32 to vector<1x128xf32>
    %116 = arith.addf %114, %115 : vector<1x128xf32>
    %117 = math.rsqrt %116 : vector<1x128xf32>
    %118 = arith.mulf %100, %117 : vector<1x128xf32>
    %119 = vector.broadcast %118 : vector<1x128xf32> to vector<64x128xf32>
    %120 = arith.mulf %99, %119 : vector<64x128xf32>
    %121 = arith.mulf %105, %118 : vector<1x128xf32>
    %122 = arith.subf %101, %121 : vector<1x128xf32>
    %123 = vector.broadcast %122 : vector<1x128xf32> to vector<64x128xf32>
    %124 = arith.addf %120, %123 : vector<64x128xf32>
    %c0_57 = arith.constant 0 : index
    %c0_58 = arith.constant 0 : index
    %125 = vector.load %arg16[%c0_57, %c0_58] : memref<128x128xf32, #tpu.memory_space<vmem>>, vector<128x128xf32>
    %c0_59 = arith.constant 0 : index
    %c0_60 = arith.constant 0 : index
    %126 = vector.load %arg17[%c0_59, %c0_60] : memref<1x128xf32, #tpu.memory_space<vmem>>, vector<1x128xf32>
    %127 = arith.truncf %124 : vector<64x128xf32> to vector<64x128xbf16>
    %128 = arith.truncf %125 : vector<128x128xf32> to vector<128x128xbf16>
    %cst_61 = arith.constant dense<0.000000e+00> : vector<64x128xf32>
    %129 = tpu.matmul %127, %128, %cst_61 {dimension_numbers = #tpu.dot_dimension_numbers<[1], [0], [0], [1], [0, 0, 1, 1], [], []>} : vector<64x128xbf16>, vector<128x128xbf16>, vector<64x128xf32> -> vector<64x128xf32>
    %130 = vector.broadcast %126 : vector<1x128xf32> to vector<64x128xf32>
    %131 = arith.addf %129, %130 : vector<64x128xf32>
    %cst_62 = arith.constant 0.000000e+00 : f32
    %132 = vector.broadcast %cst_62 : f32 to vector<64x128xf32>
    %133 = arith.cmpf oge, %131, %132 : vector<64x128xf32>
    %cst_63 = arith.constant 0.000000e+00 : f32
    %134 = vector.broadcast %cst_63 : f32 to vector<64x128xf32>
    %135 = arith.mulf %134, %131 : vector<64x128xf32>
    %136 = arith.select %133, %131, %135 : vector<64x128xi1>, vector<64x128xf32>
    %c0_64 = arith.constant 0 : index
    %c0_65 = arith.constant 0 : index
    %137 = vector.load %arg18[%c0_64, %c0_65] : memref<1x128xf32, #tpu.memory_space<vmem>>, vector<1x128xf32>
    %c0_66 = arith.constant 0 : index
    %c0_67 = arith.constant 0 : index
    %138 = vector.load %arg19[%c0_66, %c0_67] : memref<1x128xf32, #tpu.memory_space<vmem>>, vector<1x128xf32>
    %cst_68 = arith.constant dense<0.000000e+00> : vector<128xf32>
    %139 = vector.multi_reduction <add>, %136, %cst_68 [0] : vector<64x128xf32> to vector<128xf32>
    %140 = vector.shape_cast %139 : vector<128xf32> to vector<1x128xf32>
    %cst_69 = arith.constant 6.400000e+01 : f32
    %141 = vector.broadcast %cst_69 : f32 to vector<1x128xf32>
    %142 = arith.divf %140, %141 : vector<1x128xf32>
    %143 = arith.mulf %136, %136 : vector<64x128xf32>
    %cst_70 = arith.constant dense<0.000000e+00> : vector<128xf32>
    %144 = vector.multi_reduction <add>, %143, %cst_70 [0] : vector<64x128xf32> to vector<128xf32>
    %145 = vector.shape_cast %144 : vector<128xf32> to vector<1x128xf32>
    %cst_71 = arith.constant 6.400000e+01 : f32
    %146 = vector.broadcast %cst_71 : f32 to vector<1x128xf32>
    %147 = arith.divf %145, %146 : vector<1x128xf32>
    %148 = arith.mulf %142, %142 : vector<1x128xf32>
    %149 = arith.subf %147, %148 : vector<1x128xf32>
    %cst_72 = arith.constant 0.000000e+00 : f32
    %150 = vector.broadcast %cst_72 : f32 to vector<1x128xf32>
    %151 = arith.maximumf %149, %150 : vector<1x128xf32>
    %cst_73 = arith.constant 9.99999974E-6 : f32
    %152 = vector.broadcast %cst_73 : f32 to vector<1x128xf32>
    %153 = arith.addf %151, %152 : vector<1x128xf32>
    %154 = math.rsqrt %153 : vector<1x128xf32>
    %155 = arith.mulf %137, %154 : vector<1x128xf32>
    %156 = vector.broadcast %155 : vector<1x128xf32> to vector<64x128xf32>
    %157 = arith.mulf %136, %156 : vector<64x128xf32>
    %158 = arith.mulf %142, %155 : vector<1x128xf32>
    %159 = arith.subf %138, %158 : vector<1x128xf32>
    %160 = vector.broadcast %159 : vector<1x128xf32> to vector<64x128xf32>
    %161 = arith.addf %157, %160 : vector<64x128xf32>
    %c0_74 = arith.constant 0 : index
    %c0_75 = arith.constant 0 : index
    %162 = vector.load %arg20[%c0_74, %c0_75] : memref<128x128xf32, #tpu.memory_space<vmem>>, vector<128x128xf32>
    %c0_76 = arith.constant 0 : index
    %c0_77 = arith.constant 0 : index
    %163 = vector.load %arg21[%c0_76, %c0_77] : memref<1x128xf32, #tpu.memory_space<vmem>>, vector<1x128xf32>
    %164 = arith.truncf %161 : vector<64x128xf32> to vector<64x128xbf16>
    %165 = arith.truncf %162 : vector<128x128xf32> to vector<128x128xbf16>
    %cst_78 = arith.constant dense<0.000000e+00> : vector<64x128xf32>
    %166 = tpu.matmul %164, %165, %cst_78 {dimension_numbers = #tpu.dot_dimension_numbers<[1], [0], [0], [1], [0, 0, 1, 1], [], []>} : vector<64x128xbf16>, vector<128x128xbf16>, vector<64x128xf32> -> vector<64x128xf32>
    %167 = vector.broadcast %163 : vector<1x128xf32> to vector<64x128xf32>
    %168 = arith.addf %166, %167 : vector<64x128xf32>
    %c0_79 = arith.constant 0 : index
    %c0_80 = arith.constant 0 : index
    %169 = vector.load %arg22[%c0_79, %c0_80] : memref<64x128xf32, #tpu.memory_space<vmem>>, vector<64x128xf32>
    tpu.vector_store %arg22[%c0_79, %c0_80], %168 {strides = array<i32>} : memref<64x128xf32, #tpu.memory_space<vmem>>, vector<64x128xf32>,
    return
  }
  func.func @transform_0(%arg0: i32) -> (i32, i32) {
    %c0_i32 = arith.constant 0 : i32
    %c0_i32_0 = arith.constant 0 : i32
    %c0_i32_1 = arith.constant 0 : i32
    return %c0_i32, %c0_i32_0 : i32, i32
  }
  func.func @transform_1(%arg0: i32) -> (i32, i32) {
    %c0_i32 = arith.constant 0 : i32
    %c0_i32_0 = arith.constant 0 : i32
    %c0_i32_1 = arith.constant 0 : i32
    return %c0_i32, %c0_i32_0 : i32, i32
  }
  func.func @transform_2(%arg0: i32) -> (i32, i32) {
    %c0_i32 = arith.constant 0 : i32
    %c0_i32_0 = arith.constant 0 : i32
    %c0_i32_1 = arith.constant 0 : i32
    return %c0_i32, %c0_i32_0 : i32, i32
  }
  func.func @transform_3(%arg0: i32) -> (i32, i32) {
    %c0_i32 = arith.constant 0 : i32
    %c0_i32_0 = arith.constant 0 : i32
    %c0_i32_1 = arith.constant 0 : i32
    return %c0_i32, %c0_i32_0 : i32, i32
  }
  func.func @transform_4(%arg0: i32) -> (i32, i32) {
    %c0_i32 = arith.constant 0 : i32
    %c0_i32_0 = arith.constant 0 : i32
    %c0_i32_1 = arith.constant 0 : i32
    return %c0_i32, %c0_i32_0 : i32, i32
  }
  func.func @transform_5(%arg0: i32) -> (i32, i32) {
    %c0_i32 = arith.constant 0 : i32
    %c0_i32_0 = arith.constant 0 : i32
    %c0_i32_1 = arith.constant 0 : i32
    return %c0_i32, %c0_i32_0 : i32, i32
  }
  func.func @transform_6(%arg0: i32) -> (i32, i32) {
    %c0_i32 = arith.constant 0 : i32
    %c0_i32_0 = arith.constant 0 : i32
    %c0_i32_1 = arith.constant 0 : i32
    return %c0_i32, %c0_i32_0 : i32, i32
  }
  func.func @transform_7(%arg0: i32) -> (i32, i32) {
    %c0_i32 = arith.constant 0 : i32
    %c0_i32_0 = arith.constant 0 : i32
    %c0_i32_1 = arith.constant 0 : i32
    return %c0_i32, %c0_i32_0 : i32, i32
  }
  func.func @transform_8(%arg0: i32) -> (i32, i32) {
    %c0_i32 = arith.constant 0 : i32
    %c0_i32_0 = arith.constant 0 : i32
    %c0_i32_1 = arith.constant 0 : i32
    return %c0_i32, %c0_i32_0 : i32, i32
  }
  func.func @transform_9(%arg0: i32) -> (i32, i32) {
    %c0_i32 = arith.constant 0 : i32
    %c0_i32_0 = arith.constant 0 : i32
    %c0_i32_1 = arith.constant 0 : i32
    return %c0_i32, %c0_i32_0 : i32, i32
  }
  func.func @transform_10(%arg0: i32) -> (i32, i32) {
    %c0_i32 = arith.constant 0 : i32
    %c0_i32_0 = arith.constant 0 : i32
    %c0_i32_1 = arith.constant 0 : i32
    return %c0_i32, %c0_i32_0 : i32, i32
  }
  func.func @transform_11(%arg0: i32) -> (i32, i32) {
    %c0_i32 = arith.constant 0 : i32
    %c0_i32_0 = arith.constant 0 : i32
    %c0_i32_1 = arith.constant 0 : i32
    return %c0_i32, %c0_i32_0 : i32, i32
  }
  func.func @transform_12(%arg0: i32) -> (i32, i32) {
    %c0_i32 = arith.constant 0 : i32
    %c0_i32_0 = arith.constant 0 : i32
    %c0_i32_1 = arith.constant 0 : i32
    return %c0_i32, %c0_i32_0 : i32, i32
  }
  func.func @transform_13(%arg0: i32) -> (i32, i32) {
    %c0_i32 = arith.constant 0 : i32
    %c0_i32_0 = arith.constant 0 : i32
    %c0_i32_1 = arith.constant 0 : i32
    return %c0_i32, %c0_i32_0 : i32, i32
  }
  func.func @transform_14(%arg0: i32) -> (i32, i32) {
    %c0_i32 = arith.constant 0 : i32
    %c0_i32_0 = arith.constant 0 : i32
    %c0_i32_1 = arith.constant 0 : i32
    return %c0_i32, %c0_i32_0 : i32, i32
  }
  func.func @transform_15(%arg0: i32) -> (i32, i32) {
    %c0_i32 = arith.constant 0 : i32
    %c0_i32_0 = arith.constant 0 : i32
    %c0_i32_1 = arith.constant 0 : i32
    return %c0_i32, %c0_i32_0 : i32, i32
  }
  func.func @transform_16(%arg0: i32) -> (i32, i32) {
    %c0_i32 = arith.constant 0 : i32
    %c0_i32_0 = arith.constant 0 : i32
    %c0_i32_1 = arith.constant 0 : i32
    return %c0_i32, %c0_i32_0 : i32, i32
  }
  func.func @transform_17(%arg0: i32) -> (i32, i32) {
    %c0_i32 = arith.constant 0 : i32
    %c0_i32_0 = arith.constant 0 : i32
    %c0_i32_1 = arith.constant 0 : i32
    return %c0_i32, %c0_i32_0 : i32, i32
  }
  func.func @transform_18(%arg0: i32) -> (i32, i32) {
    %c0_i32 = arith.constant 0 : i32
    %c0_i32_0 = arith.constant 0 : i32
    %c0_i32_1 = arith.constant 0 : i32
    return %c0_i32, %c0_i32_0 : i32, i32
  }
  func.func @transform_19(%arg0: i32) -> (i32, i32) {
    %c0_i32 = arith.constant 0 : i32
    %c0_i32_0 = arith.constant 0 : i32
    %c0_i32_1 = arith.constant 0 : i32
    return %c0_i32, %c0_i32_0 : i32, i32
  }
  func.func @transform_20(%arg0: i32) -> (i32, i32) {
    %c0_i32 = arith.constant 0 : i32
    %c0_i32_0 = arith.constant 0 : i32
    %c0_i32_1 = arith.constant 0 : i32
    return %c0_i32, %c0_i32_0 : i32, i32
  }
  func.func @transform_21(%arg0: i32) -> (i32, i32) {
    %c0_i32 = arith.constant 0 : i32
    %c0_i32_0 = arith.constant 0 : i32
    %c0_i32_1 = arith.constant 0 : i32
    return %c0_i32, %c0_i32_0 : i32, i32
  }
}

module attributes {stable_mosaic.version = 11 : i64} {
  func.func @mlp3_fused_kernel(%arg0: i32, %arg1: memref<32x9xf32, #tpu.memory_space<vmem>>, %arg2: memref<32x128xf32, #tpu.memory_space<vmem>>, %arg3: memref<1x9xf32, #tpu.memory_space<vmem>>, %arg4: memref<1x128xf32, #tpu.memory_space<vmem>>, %arg5: memref<1x9xf32, #tpu.memory_space<vmem>>, %arg6: memref<1x128xf32, #tpu.memory_space<vmem>>, %arg7: memref<9x128xf32, #tpu.memory_space<vmem>>, %arg8: memref<128x128xf32, #tpu.memory_space<vmem>>, %arg9: memref<1x128xf32, #tpu.memory_space<vmem>>, %arg10: memref<1x128xf32, #tpu.memory_space<vmem>>, %arg11: memref<1x128xf32, #tpu.memory_space<vmem>>, %arg12: memref<128x128xf32, #tpu.memory_space<vmem>>, %arg13: memref<1x128xf32, #tpu.memory_space<vmem>>, %arg14: memref<1x128xf32, #tpu.memory_space<vmem>>, %arg15: memref<1x128xf32, #tpu.memory_space<vmem>>, %arg16: memref<128x128xf32, #tpu.memory_space<vmem>>, %arg17: memref<1x128xf32, #tpu.memory_space<vmem>>, %arg18: memref<32x128xf32, #tpu.memory_space<vmem>>) attributes {dimension_semantics = [#tpu.dimension_semantics<arbitrary>], iteration_bounds = array<i64: 1>, scalar_prefetch = 0 : i64, scratch_operands = 0 : i64, tpu.core_type = #tpu.core_type<tc>, window_params = [{pipeline_mode = #tpu.pipeline_mode<synchronous>, transform_indices = @transform_0, window_bounds = array<i64: 32, 9>}, {pipeline_mode = #tpu.pipeline_mode<synchronous>, transform_indices = @transform_1, window_bounds = array<i64: 32, 128>}, {pipeline_mode = #tpu.pipeline_mode<synchronous>, transform_indices = @transform_2, window_bounds = array<i64: 1, 9>}, {pipeline_mode = #tpu.pipeline_mode<synchronous>, transform_indices = @transform_3, window_bounds = array<i64: 1, 128>}, {pipeline_mode = #tpu.pipeline_mode<synchronous>, transform_indices = @transform_4, window_bounds = array<i64: 1, 9>}, {pipeline_mode = #tpu.pipeline_mode<synchronous>, transform_indices = @transform_5, window_bounds = array<i64: 1, 128>}, {pipeline_mode = #tpu.pipeline_mode<synchronous>, transform_indices = @transform_6, window_bounds = array<i64: 9, 128>}, {pipeline_mode = #tpu.pipeline_mode<synchronous>, transform_indices = @transform_7, window_bounds = array<i64: 128, 128>}, {pipeline_mode = #tpu.pipeline_mode<synchronous>, transform_indices = @transform_8, window_bounds = array<i64: 1, 128>}, {pipeline_mode = #tpu.pipeline_mode<synchronous>, transform_indices = @transform_9, window_bounds = array<i64: 1, 128>}, {pipeline_mode = #tpu.pipeline_mode<synchronous>, transform_indices = @transform_10, window_bounds = array<i64: 1, 128>}, {pipeline_mode = #tpu.pipeline_mode<synchronous>, transform_indices = @transform_11, window_bounds = array<i64: 128, 128>}, {pipeline_mode = #tpu.pipeline_mode<synchronous>, transform_indices = @transform_12, window_bounds = array<i64: 1, 128>}, {pipeline_mode = #tpu.pipeline_mode<synchronous>, transform_indices = @transform_13, window_bounds = array<i64: 1, 128>}, {pipeline_mode = #tpu.pipeline_mode<synchronous>, transform_indices = @transform_14, window_bounds = array<i64: 1, 128>}, {pipeline_mode = #tpu.pipeline_mode<synchronous>, transform_indices = @transform_15, window_bounds = array<i64: 128, 128>}, {pipeline_mode = #tpu.pipeline_mode<synchronous>, transform_indices = @transform_16, window_bounds = array<i64: 1, 128>}, {pipeline_mode = #tpu.pipeline_mode<synchronous>, transform_indices = @transform_17, window_bounds = array<i64: 32, 128>}]} {
    %c0 = arith.constant 0 : index
    %c0_0 = arith.constant 0 : index
    %0 = vector.load %arg1[%c0, %c0_0] : memref<32x9xf32, #tpu.memory_space<vmem>>, vector<32x9xf32>
    %c0_1 = arith.constant 0 : index
    %c0_2 = arith.constant 0 : index
    %1 = vector.load %arg3[%c0_1, %c0_2] : memref<1x9xf32, #tpu.memory_space<vmem>>, vector<1x9xf32>
    %c0_3 = arith.constant 0 : index
    %c0_4 = arith.constant 0 : index
    %2 = vector.load %arg5[%c0_3, %c0_4] : memref<1x9xf32, #tpu.memory_space<vmem>>, vector<1x9xf32>
    %cst = arith.constant dense<0.000000e+00> : vector<9xf32>
    %3 = vector.multi_reduction <add>, %0, %cst [0] : vector<32x9xf32> to vector<9xf32>
    %4 = vector.shape_cast %3 : vector<9xf32> to vector<1x9xf32>
    %cst_5 = arith.constant 3.200000e+01 : f32
    %5 = vector.broadcast %cst_5 : f32 to vector<1x9xf32>
    %6 = arith.divf %4, %5 : vector<1x9xf32>
    %7 = arith.mulf %0, %0 : vector<32x9xf32>
    %cst_6 = arith.constant dense<0.000000e+00> : vector<9xf32>
    %8 = vector.multi_reduction <add>, %7, %cst_6 [0] : vector<32x9xf32> to vector<9xf32>
    %9 = vector.shape_cast %8 : vector<9xf32> to vector<1x9xf32>
    %cst_7 = arith.constant 3.200000e+01 : f32
    %10 = vector.broadcast %cst_7 : f32 to vector<1x9xf32>
    %11 = arith.divf %9, %10 : vector<1x9xf32>
    %12 = arith.mulf %6, %6 : vector<1x9xf32>
    %13 = arith.subf %11, %12 : vector<1x9xf32>
    %cst_8 = arith.constant 0.000000e+00 : f32
    %14 = vector.broadcast %cst_8 : f32 to vector<1x9xf32>
    %15 = arith.maximumf %13, %14 : vector<1x9xf32>
    %cst_9 = arith.constant 9.99999974E-6 : f32
    %16 = vector.broadcast %cst_9 : f32 to vector<1x9xf32>
    %17 = arith.addf %15, %16 : vector<1x9xf32>
    %18 = math.rsqrt %17 : vector<1x9xf32>
    %19 = arith.mulf %1, %18 : vector<1x9xf32>
    %20 = vector.broadcast %19 : vector<1x9xf32> to vector<32x9xf32>
    %21 = arith.mulf %0, %20 : vector<32x9xf32>
    %22 = arith.mulf %6, %19 : vector<1x9xf32>
    %23 = arith.subf %2, %22 : vector<1x9xf32>
    %24 = vector.broadcast %23 : vector<1x9xf32> to vector<32x9xf32>
    %25 = arith.addf %21, %24 : vector<32x9xf32>
    %26 = arith.truncf %25 : vector<32x9xf32> to vector<32x9xbf16>
    %c0_10 = arith.constant 0 : index
    %c0_11 = arith.constant 0 : index
    %27 = vector.load %arg7[%c0_10, %c0_11] : memref<9x128xf32, #tpu.memory_space<vmem>>, vector<9x128xf32>
    %28 = arith.truncf %27 : vector<9x128xf32> to vector<9x128xbf16>
    %cst_12 = arith.constant dense<0.000000e+00> : vector<32x128xf32>
    %29 = tpu.matmul %26, %28, %cst_12 {dimension_numbers = #tpu.dot_dimension_numbers<[1], [0], [0], [1], [0, 0, 1, 1], [], []>} : vector<32x9xbf16>, vector<9x128xbf16>, vector<32x128xf32> -> vector<32x128xf32>
    %c0_13 = arith.constant 0 : index
    %c0_14 = arith.constant 0 : index
    %30 = vector.load %arg2[%c0_13, %c0_14] : memref<32x128xf32, #tpu.memory_space<vmem>>, vector<32x128xf32>
    %c0_15 = arith.constant 0 : index
    %c0_16 = arith.constant 0 : index
    %31 = vector.load %arg4[%c0_15, %c0_16] : memref<1x128xf32, #tpu.memory_space<vmem>>, vector<1x128xf32>
    %c0_17 = arith.constant 0 : index
    %c0_18 = arith.constant 0 : index
    %32 = vector.load %arg6[%c0_17, %c0_18] : memref<1x128xf32, #tpu.memory_space<vmem>>, vector<1x128xf32>
    %cst_19 = arith.constant dense<0.000000e+00> : vector<128xf32>
    %33 = vector.multi_reduction <add>, %30, %cst_19 [0] : vector<32x128xf32> to vector<128xf32>
    %34 = vector.shape_cast %33 : vector<128xf32> to vector<1x128xf32>
    %cst_20 = arith.constant 3.200000e+01 : f32
    %35 = vector.broadcast %cst_20 : f32 to vector<1x128xf32>
    %36 = arith.divf %34, %35 : vector<1x128xf32>
    %37 = arith.mulf %30, %30 : vector<32x128xf32>
    %cst_21 = arith.constant dense<0.000000e+00> : vector<128xf32>
    %38 = vector.multi_reduction <add>, %37, %cst_21 [0] : vector<32x128xf32> to vector<128xf32>
    %39 = vector.shape_cast %38 : vector<128xf32> to vector<1x128xf32>
    %cst_22 = arith.constant 3.200000e+01 : f32
    %40 = vector.broadcast %cst_22 : f32 to vector<1x128xf32>
    %41 = arith.divf %39, %40 : vector<1x128xf32>
    %42 = arith.mulf %36, %36 : vector<1x128xf32>
    %43 = arith.subf %41, %42 : vector<1x128xf32>
    %cst_23 = arith.constant 0.000000e+00 : f32
    %44 = vector.broadcast %cst_23 : f32 to vector<1x128xf32>
    %45 = arith.maximumf %43, %44 : vector<1x128xf32>
    %cst_24 = arith.constant 9.99999974E-6 : f32
    %46 = vector.broadcast %cst_24 : f32 to vector<1x128xf32>
    %47 = arith.addf %45, %46 : vector<1x128xf32>
    %48 = math.rsqrt %47 : vector<1x128xf32>
    %49 = arith.mulf %31, %48 : vector<1x128xf32>
    %50 = vector.broadcast %49 : vector<1x128xf32> to vector<32x128xf32>
    %51 = arith.mulf %30, %50 : vector<32x128xf32>
    %52 = arith.mulf %36, %49 : vector<1x128xf32>
    %53 = arith.subf %32, %52 : vector<1x128xf32>
    %54 = vector.broadcast %53 : vector<1x128xf32> to vector<32x128xf32>
    %55 = arith.addf %51, %54 : vector<32x128xf32>
    %56 = arith.truncf %55 : vector<32x128xf32> to vector<32x128xbf16>
    %c0_25 = arith.constant 0 : index
    %c0_26 = arith.constant 0 : index
    %57 = vector.load %arg8[%c0_25, %c0_26] : memref<128x128xf32, #tpu.memory_space<vmem>>, vector<128x128xf32>
    %58 = arith.truncf %57 : vector<128x128xf32> to vector<128x128xbf16>
    %cst_27 = arith.constant dense<0.000000e+00> : vector<32x128xf32>
    %59 = tpu.matmul %56, %58, %cst_27 {dimension_numbers = #tpu.dot_dimension_numbers<[1], [0], [0], [1], [0, 0, 1, 1], [], []>} : vector<32x128xbf16>, vector<128x128xbf16>, vector<32x128xf32> -> vector<32x128xf32>
    %60 = arith.addf %29, %59 : vector<32x128xf32>
    %c0_28 = arith.constant 0 : index
    %c0_29 = arith.constant 0 : index
    %61 = vector.load %arg9[%c0_28, %c0_29] : memref<1x128xf32, #tpu.memory_space<vmem>>, vector<1x128xf32>
    %62 = vector.broadcast %61 : vector<1x128xf32> to vector<32x128xf32>
    %63 = arith.addf %60, %62 : vector<32x128xf32>
    %cst_30 = arith.constant 0.000000e+00 : f32
    %64 = vector.broadcast %cst_30 : f32 to vector<32x128xf32>
    %65 = arith.cmpf oge, %63, %64 : vector<32x128xf32>
    %cst_31 = arith.constant 0.000000e+00 : f32
    %66 = vector.broadcast %cst_31 : f32 to vector<32x128xf32>
    %67 = arith.mulf %66, %63 : vector<32x128xf32>
    %68 = arith.select %65, %63, %67 : vector<32x128xi1>, vector<32x128xf32>
    %c0_32 = arith.constant 0 : index
    %c0_33 = arith.constant 0 : index
    %69 = vector.load %arg10[%c0_32, %c0_33] : memref<1x128xf32, #tpu.memory_space<vmem>>, vector<1x128xf32>
    %c0_34 = arith.constant 0 : index
    %c0_35 = arith.constant 0 : index
    %70 = vector.load %arg11[%c0_34, %c0_35] : memref<1x128xf32, #tpu.memory_space<vmem>>, vector<1x128xf32>
    %cst_36 = arith.constant dense<0.000000e+00> : vector<128xf32>
    %71 = vector.multi_reduction <add>, %68, %cst_36 [0] : vector<32x128xf32> to vector<128xf32>
    %72 = vector.shape_cast %71 : vector<128xf32> to vector<1x128xf32>
    %cst_37 = arith.constant 3.200000e+01 : f32
    %73 = vector.broadcast %cst_37 : f32 to vector<1x128xf32>
    %74 = arith.divf %72, %73 : vector<1x128xf32>
    %75 = arith.mulf %68, %68 : vector<32x128xf32>
    %cst_38 = arith.constant dense<0.000000e+00> : vector<128xf32>
    %76 = vector.multi_reduction <add>, %75, %cst_38 [0] : vector<32x128xf32> to vector<128xf32>
    %77 = vector.shape_cast %76 : vector<128xf32> to vector<1x128xf32>
    %cst_39 = arith.constant 3.200000e+01 : f32
    %78 = vector.broadcast %cst_39 : f32 to vector<1x128xf32>
    %79 = arith.divf %77, %78 : vector<1x128xf32>
    %80 = arith.mulf %74, %74 : vector<1x128xf32>
    %81 = arith.subf %79, %80 : vector<1x128xf32>
    %cst_40 = arith.constant 0.000000e+00 : f32
    %82 = vector.broadcast %cst_40 : f32 to vector<1x128xf32>
    %83 = arith.maximumf %81, %82 : vector<1x128xf32>
    %cst_41 = arith.constant 9.99999974E-6 : f32
    %84 = vector.broadcast %cst_41 : f32 to vector<1x128xf32>
    %85 = arith.addf %83, %84 : vector<1x128xf32>
    %86 = math.rsqrt %85 : vector<1x128xf32>
    %87 = arith.mulf %69, %86 : vector<1x128xf32>
    %88 = vector.broadcast %87 : vector<1x128xf32> to vector<32x128xf32>
    %89 = arith.mulf %68, %88 : vector<32x128xf32>
    %90 = arith.mulf %74, %87 : vector<1x128xf32>
    %91 = arith.subf %70, %90 : vector<1x128xf32>
    %92 = vector.broadcast %91 : vector<1x128xf32> to vector<32x128xf32>
    %93 = arith.addf %89, %92 : vector<32x128xf32>
    %c0_42 = arith.constant 0 : index
    %c0_43 = arith.constant 0 : index
    %94 = vector.load %arg12[%c0_42, %c0_43] : memref<128x128xf32, #tpu.memory_space<vmem>>, vector<128x128xf32>
    %c0_44 = arith.constant 0 : index
    %c0_45 = arith.constant 0 : index
    %95 = vector.load %arg13[%c0_44, %c0_45] : memref<1x128xf32, #tpu.memory_space<vmem>>, vector<1x128xf32>
    %96 = arith.truncf %93 : vector<32x128xf32> to vector<32x128xbf16>
    %97 = arith.truncf %94 : vector<128x128xf32> to vector<128x128xbf16>
    %cst_46 = arith.constant dense<0.000000e+00> : vector<32x128xf32>
    %98 = tpu.matmul %96, %97, %cst_46 {dimension_numbers = #tpu.dot_dimension_numbers<[1], [0], [0], [1], [0, 0, 1, 1], [], []>} : vector<32x128xbf16>, vector<128x128xbf16>, vector<32x128xf32> -> vector<32x128xf32>
    %99 = vector.broadcast %95 : vector<1x128xf32> to vector<32x128xf32>
    %100 = arith.addf %98, %99 : vector<32x128xf32>
    %cst_47 = arith.constant 0.000000e+00 : f32
    %101 = vector.broadcast %cst_47 : f32 to vector<32x128xf32>
    %102 = arith.cmpf oge, %100, %101 : vector<32x128xf32>
    %cst_48 = arith.constant 0.000000e+00 : f32
    %103 = vector.broadcast %cst_48 : f32 to vector<32x128xf32>
    %104 = arith.mulf %103, %100 : vector<32x128xf32>
    %105 = arith.select %102, %100, %104 : vector<32x128xi1>, vector<32x128xf32>
    %c0_49 = arith.constant 0 : index
    %c0_50 = arith.constant 0 : index
    %106 = vector.load %arg14[%c0_49, %c0_50] : memref<1x128xf32, #tpu.memory_space<vmem>>, vector<1x128xf32>
    %c0_51 = arith.constant 0 : index
    %c0_52 = arith.constant 0 : index
    %107 = vector.load %arg15[%c0_51, %c0_52] : memref<1x128xf32, #tpu.memory_space<vmem>>, vector<1x128xf32>
    %cst_53 = arith.constant dense<0.000000e+00> : vector<128xf32>
    %108 = vector.multi_reduction <add>, %105, %cst_53 [0] : vector<32x128xf32> to vector<128xf32>
    %109 = vector.shape_cast %108 : vector<128xf32> to vector<1x128xf32>
    %cst_54 = arith.constant 3.200000e+01 : f32
    %110 = vector.broadcast %cst_54 : f32 to vector<1x128xf32>
    %111 = arith.divf %109, %110 : vector<1x128xf32>
    %112 = arith.mulf %105, %105 : vector<32x128xf32>
    %cst_55 = arith.constant dense<0.000000e+00> : vector<128xf32>
    %113 = vector.multi_reduction <add>, %112, %cst_55 [0] : vector<32x128xf32> to vector<128xf32>
    %114 = vector.shape_cast %113 : vector<128xf32> to vector<1x128xf32>
    %cst_56 = arith.constant 3.200000e+01 : f32
    %115 = vector.broadcast %cst_56 : f32 to vector<1x128xf32>
    %116 = arith.divf %114, %115 : vector<1x128xf32>
    %117 = arith.mulf %111, %111 : vector<1x128xf32>
    %118 = arith.subf %116, %117 : vector<1x128xf32>
    %cst_57 = arith.constant 0.000000e+00 : f32
    %119 = vector.broadcast %cst_57 : f32 to vector<1x128xf32>
    %120 = arith.maximumf %118, %119 : vector<1x128xf32>
    %cst_58 = arith.constant 9.99999974E-6 : f32
    %121 = vector.broadcast %cst_58 : f32 to vector<1x128xf32>
    %122 = arith.addf %120, %121 : vector<1x128xf32>
    %123 = math.rsqrt %122 : vector<1x128xf32>
    %124 = arith.mulf %106, %123 : vector<1x128xf32>
    %125 = vector.broadcast %124 : vector<1x128xf32> to vector<32x128xf32>
    %126 = arith.mulf %105, %125 : vector<32x128xf32>
    %127 = arith.mulf %111, %124 : vector<1x128xf32>
    %128 = arith.subf %107, %127 : vector<1x128xf32>
    %129 = vector.broadcast %128 : vector<1x128xf32> to vector<32x128xf32>
    %130 = arith.addf %126, %129 : vector<32x128xf32>
    %c0_59 = arith.constant 0 : index
    %c0_60 = arith.constant 0 : index
    %131 = vector.load %arg16[%c0_59, %c0_60] : memref<128x128xf32, #tpu.memory_space<vmem>>, vector<128x128xf32>
    %c0_61 = arith.constant 0 : index
    %c0_62 = arith.constant 0 : index
    %132 = vector.load %arg17[%c0_61, %c0_62] : memref<1x128xf32, #tpu.memory_space<vmem>>, vector<1x128xf32>
    %133 = arith.truncf %130 : vector<32x128xf32> to vector<32x128xbf16>
    %134 = arith.truncf %131 : vector<128x128xf32> to vector<128x128xbf16>
    %cst_63 = arith.constant dense<0.000000e+00> : vector<32x128xf32>
    %135 = tpu.matmul %133, %134, %cst_63 {dimension_numbers = #tpu.dot_dimension_numbers<[1], [0], [0], [1], [0, 0, 1, 1], [], []>} : vector<32x128xbf16>, vector<128x128xbf16>, vector<32x128xf32> -> vector<32x128xf32>
    %136 = vector.broadcast %132 : vector<1x128xf32> to vector<32x128xf32>
    %137 = arith.addf %135, %136 : vector<32x128xf32>
    %c0_64 = arith.constant 0 : index
    %c0_65 = arith.constant 0 : index
    %138 = vector.load %arg18[%c0_64, %c0_65] : memref<32x128xf32, #tpu.memory_space<vmem>>, vector<32x128xf32>
    tpu.vector_store %arg18[%c0_64, %c0_65], %137 {strides = array<i32>} : memref<32x128xf32, #tpu.memory_space<vmem>>, vector<32x128xf32>,
    return
  }
  func.func @transform_0(%arg0: i32) -> (i32, i32) {
    %c0_i32 = arith.constant 0 : i32
    %c0_i32_0 = arith.constant 0 : i32
    %c0_i32_1 = arith.constant 0 : i32
    return %c0_i32, %c0_i32_0 : i32, i32
  }
  func.func @transform_1(%arg0: i32) -> (i32, i32) {
    %c0_i32 = arith.constant 0 : i32
    %c0_i32_0 = arith.constant 0 : i32
    %c0_i32_1 = arith.constant 0 : i32
    return %c0_i32, %c0_i32_0 : i32, i32
  }
  func.func @transform_2(%arg0: i32) -> (i32, i32) {
    %c0_i32 = arith.constant 0 : i32
    %c0_i32_0 = arith.constant 0 : i32
    %c0_i32_1 = arith.constant 0 : i32
    return %c0_i32, %c0_i32_0 : i32, i32
  }
  func.func @transform_3(%arg0: i32) -> (i32, i32) {
    %c0_i32 = arith.constant 0 : i32
    %c0_i32_0 = arith.constant 0 : i32
    %c0_i32_1 = arith.constant 0 : i32
    return %c0_i32, %c0_i32_0 : i32, i32
  }
  func.func @transform_4(%arg0: i32) -> (i32, i32) {
    %c0_i32 = arith.constant 0 : i32
    %c0_i32_0 = arith.constant 0 : i32
    %c0_i32_1 = arith.constant 0 : i32
    return %c0_i32, %c0_i32_0 : i32, i32
  }
  func.func @transform_5(%arg0: i32) -> (i32, i32) {
    %c0_i32 = arith.constant 0 : i32
    %c0_i32_0 = arith.constant 0 : i32
    %c0_i32_1 = arith.constant 0 : i32
    return %c0_i32, %c0_i32_0 : i32, i32
  }
  func.func @transform_6(%arg0: i32) -> (i32, i32) {
    %c0_i32 = arith.constant 0 : i32
    %c0_i32_0 = arith.constant 0 : i32
    %c0_i32_1 = arith.constant 0 : i32
    return %c0_i32, %c0_i32_0 : i32, i32
  }
  func.func @transform_7(%arg0: i32) -> (i32, i32) {
    %c0_i32 = arith.constant 0 : i32
    %c0_i32_0 = arith.constant 0 : i32
    %c0_i32_1 = arith.constant 0 : i32
    return %c0_i32, %c0_i32_0 : i32, i32
  }
  func.func @transform_8(%arg0: i32) -> (i32, i32) {
    %c0_i32 = arith.constant 0 : i32
    %c0_i32_0 = arith.constant 0 : i32
    %c0_i32_1 = arith.constant 0 : i32
    return %c0_i32, %c0_i32_0 : i32, i32
  }
  func.func @transform_9(%arg0: i32) -> (i32, i32) {
    %c0_i32 = arith.constant 0 : i32
    %c0_i32_0 = arith.constant 0 : i32
    %c0_i32_1 = arith.constant 0 : i32
    return %c0_i32, %c0_i32_0 : i32, i32
  }
  func.func @transform_10(%arg0: i32) -> (i32, i32) {
    %c0_i32 = arith.constant 0 : i32
    %c0_i32_0 = arith.constant 0 : i32
    %c0_i32_1 = arith.constant 0 : i32
    return %c0_i32, %c0_i32_0 : i32, i32
  }
  func.func @transform_11(%arg0: i32) -> (i32, i32) {
    %c0_i32 = arith.constant 0 : i32
    %c0_i32_0 = arith.constant 0 : i32
    %c0_i32_1 = arith.constant 0 : i32
    return %c0_i32, %c0_i32_0 : i32, i32
  }
  func.func @transform_12(%arg0: i32) -> (i32, i32) {
    %c0_i32 = arith.constant 0 : i32
    %c0_i32_0 = arith.constant 0 : i32
    %c0_i32_1 = arith.constant 0 : i32
    return %c0_i32, %c0_i32_0 : i32, i32
  }
  func.func @transform_13(%arg0: i32) -> (i32, i32) {
    %c0_i32 = arith.constant 0 : i32
    %c0_i32_0 = arith.constant 0 : i32
    %c0_i32_1 = arith.constant 0 : i32
    return %c0_i32, %c0_i32_0 : i32, i32
  }
  func.func @transform_14(%arg0: i32) -> (i32, i32) {
    %c0_i32 = arith.constant 0 : i32
    %c0_i32_0 = arith.constant 0 : i32
    %c0_i32_1 = arith.constant 0 : i32
    return %c0_i32, %c0_i32_0 : i32, i32
  }
  func.func @transform_15(%arg0: i32) -> (i32, i32) {
    %c0_i32 = arith.constant 0 : i32
    %c0_i32_0 = arith.constant 0 : i32
    %c0_i32_1 = arith.constant 0 : i32
    return %c0_i32, %c0_i32_0 : i32, i32
  }
  func.func @transform_16(%arg0: i32) -> (i32, i32) {
    %c0_i32 = arith.constant 0 : i32
    %c0_i32_0 = arith.constant 0 : i32
    %c0_i32_1 = arith.constant 0 : i32
    return %c0_i32, %c0_i32_0 : i32, i32
  }
  func.func @transform_17(%arg0: i32) -> (i32, i32) {
    %c0_i32 = arith.constant 0 : i32
    %c0_i32_0 = arith.constant 0 : i32
    %c0_i32_1 = arith.constant 0 : i32
    return %c0_i32, %c0_i32_0 : i32, i32
  }
}

module attributes {stable_mosaic.version = 11 : i64} {
  func.func @global_heads_kernel(%arg0: i32, %arg1: memref<4x128xf32, #tpu.memory_space<vmem>>, %arg2: memref<1x128xf32, #tpu.memory_space<vmem>>, %arg3: memref<1x128xf32, #tpu.memory_space<vmem>>, %arg4: memref<128x128xf32, #tpu.memory_space<vmem>>, %arg5: memref<1x128xf32, #tpu.memory_space<vmem>>, %arg6: memref<1x128xf32, #tpu.memory_space<vmem>>, %arg7: memref<1x128xf32, #tpu.memory_space<vmem>>, %arg8: memref<128x128xf32, #tpu.memory_space<vmem>>, %arg9: memref<1x128xf32, #tpu.memory_space<vmem>>, %arg10: memref<1x128xf32, #tpu.memory_space<vmem>>, %arg11: memref<1x128xf32, #tpu.memory_space<vmem>>, %arg12: memref<128x128xf32, #tpu.memory_space<vmem>>, %arg13: memref<1x128xf32, #tpu.memory_space<vmem>>, %arg14: memref<128x128xf32, #tpu.memory_space<vmem>>, %arg15: memref<1x128xf32, #tpu.memory_space<vmem>>, %arg16: memref<128x128xbf16, #tpu.memory_space<vmem>>, %arg17: memref<1x128xf32, #tpu.memory_space<vmem>>, %arg18: memref<1x128xf32, #tpu.memory_space<vmem>>, %arg19: memref<4x128xf32, #tpu.memory_space<vmem>>) attributes {dimension_semantics = [#tpu.dimension_semantics<arbitrary>], iteration_bounds = array<i64: 1>, scalar_prefetch = 0 : i64, scratch_operands = 0 : i64, tpu.core_type = #tpu.core_type<tc>, window_params = [{pipeline_mode = #tpu.pipeline_mode<synchronous>, transform_indices = @transform_0, window_bounds = array<i64: 4, 128>}, {pipeline_mode = #tpu.pipeline_mode<synchronous>, transform_indices = @transform_1, window_bounds = array<i64: 1, 128>}, {pipeline_mode = #tpu.pipeline_mode<synchronous>, transform_indices = @transform_2, window_bounds = array<i64: 1, 128>}, {pipeline_mode = #tpu.pipeline_mode<synchronous>, transform_indices = @transform_3, window_bounds = array<i64: 128, 128>}, {pipeline_mode = #tpu.pipeline_mode<synchronous>, transform_indices = @transform_4, window_bounds = array<i64: 1, 128>}, {pipeline_mode = #tpu.pipeline_mode<synchronous>, transform_indices = @transform_5, window_bounds = array<i64: 1, 128>}, {pipeline_mode = #tpu.pipeline_mode<synchronous>, transform_indices = @transform_6, window_bounds = array<i64: 1, 128>}, {pipeline_mode = #tpu.pipeline_mode<synchronous>, transform_indices = @transform_7, window_bounds = array<i64: 128, 128>}, {pipeline_mode = #tpu.pipeline_mode<synchronous>, transform_indices = @transform_8, window_bounds = array<i64: 1, 128>}, {pipeline_mode = #tpu.pipeline_mode<synchronous>, transform_indices = @transform_9, window_bounds = array<i64: 1, 128>}, {pipeline_mode = #tpu.pipeline_mode<synchronous>, transform_indices = @transform_10, window_bounds = array<i64: 1, 128>}, {pipeline_mode = #tpu.pipeline_mode<synchronous>, transform_indices = @transform_11, window_bounds = array<i64: 128, 128>}, {pipeline_mode = #tpu.pipeline_mode<synchronous>, transform_indices = @transform_12, window_bounds = array<i64: 1, 128>}, {pipeline_mode = #tpu.pipeline_mode<synchronous>, transform_indices = @transform_13, window_bounds = array<i64: 128, 128>}, {pipeline_mode = #tpu.pipeline_mode<synchronous>, transform_indices = @transform_14, window_bounds = array<i64: 1, 128>}, {pipeline_mode = #tpu.pipeline_mode<synchronous>, transform_indices = @transform_15, window_bounds = array<i64: 128, 128>}, {pipeline_mode = #tpu.pipeline_mode<synchronous>, transform_indices = @transform_16, window_bounds = array<i64: 1, 128>}, {pipeline_mode = #tpu.pipeline_mode<synchronous>, transform_indices = @transform_17, window_bounds = array<i64: 1, 128>}, {pipeline_mode = #tpu.pipeline_mode<synchronous>, transform_indices = @transform_18, window_bounds = array<i64: 4, 128>}]} {
    %c0 = arith.constant 0 : index
    %c0_0 = arith.constant 0 : index
    %0 = vector.load %arg1[%c0, %c0_0] : memref<4x128xf32, #tpu.memory_space<vmem>>, vector<4x128xf32>
    %c0_1 = arith.constant 0 : index
    %c0_2 = arith.constant 0 : index
    %1 = vector.load %arg2[%c0_1, %c0_2] : memref<1x128xf32, #tpu.memory_space<vmem>>, vector<1x128xf32>
    %c0_3 = arith.constant 0 : index
    %c0_4 = arith.constant 0 : index
    %2 = vector.load %arg3[%c0_3, %c0_4] : memref<1x128xf32, #tpu.memory_space<vmem>>, vector<1x128xf32>
    %cst = arith.constant dense<0.000000e+00> : vector<128xf32>
    %3 = vector.multi_reduction <add>, %0, %cst [0] : vector<4x128xf32> to vector<128xf32>
    %4 = vector.shape_cast %3 : vector<128xf32> to vector<1x128xf32>
    %cst_5 = arith.constant 4.000000e+00 : f32
    %5 = vector.broadcast %cst_5 : f32 to vector<1x128xf32>
    %6 = arith.divf %4, %5 : vector<1x128xf32>
    %7 = arith.mulf %0, %0 : vector<4x128xf32>
    %cst_6 = arith.constant dense<0.000000e+00> : vector<128xf32>
    %8 = vector.multi_reduction <add>, %7, %cst_6 [0] : vector<4x128xf32> to vector<128xf32>
    %9 = vector.shape_cast %8 : vector<128xf32> to vector<1x128xf32>
    %cst_7 = arith.constant 4.000000e+00 : f32
    %10 = vector.broadcast %cst_7 : f32 to vector<1x128xf32>
    %11 = arith.divf %9, %10 : vector<1x128xf32>
    %12 = arith.mulf %6, %6 : vector<1x128xf32>
    %13 = arith.subf %11, %12 : vector<1x128xf32>
    %cst_8 = arith.constant 0.000000e+00 : f32
    %14 = vector.broadcast %cst_8 : f32 to vector<1x128xf32>
    %15 = arith.maximumf %13, %14 : vector<1x128xf32>
    %cst_9 = arith.constant 9.99999974E-6 : f32
    %16 = vector.broadcast %cst_9 : f32 to vector<1x128xf32>
    %17 = arith.addf %15, %16 : vector<1x128xf32>
    %18 = math.rsqrt %17 : vector<1x128xf32>
    %19 = arith.mulf %1, %18 : vector<1x128xf32>
    %20 = vector.broadcast %19 : vector<1x128xf32> to vector<4x128xf32>
    %21 = arith.mulf %0, %20 : vector<4x128xf32>
    %22 = arith.mulf %6, %19 : vector<1x128xf32>
    %23 = arith.subf %2, %22 : vector<1x128xf32>
    %24 = vector.broadcast %23 : vector<1x128xf32> to vector<4x128xf32>
    %25 = arith.addf %21, %24 : vector<4x128xf32>
    %c0_10 = arith.constant 0 : index
    %c0_11 = arith.constant 0 : index
    %26 = vector.load %arg4[%c0_10, %c0_11] : memref<128x128xf32, #tpu.memory_space<vmem>>, vector<128x128xf32>
    %c0_12 = arith.constant 0 : index
    %c0_13 = arith.constant 0 : index
    %27 = vector.load %arg5[%c0_12, %c0_13] : memref<1x128xf32, #tpu.memory_space<vmem>>, vector<1x128xf32>
    %28 = arith.truncf %25 : vector<4x128xf32> to vector<4x128xbf16>
    %29 = arith.truncf %26 : vector<128x128xf32> to vector<128x128xbf16>
    %cst_14 = arith.constant dense<0.000000e+00> : vector<4x128xf32>
    %30 = tpu.matmul %28, %29, %cst_14 {dimension_numbers = #tpu.dot_dimension_numbers<[1], [0], [0], [1], [0, 0, 1, 1], [], []>} : vector<4x128xbf16>, vector<128x128xbf16>, vector<4x128xf32> -> vector<4x128xf32>
    %31 = vector.broadcast %27 : vector<1x128xf32> to vector<4x128xf32>
    %32 = arith.addf %30, %31 : vector<4x128xf32>
    %cst_15 = arith.constant 0.000000e+00 : f32
    %33 = vector.broadcast %cst_15 : f32 to vector<4x128xf32>
    %34 = arith.cmpf oge, %32, %33 : vector<4x128xf32>
    %cst_16 = arith.constant 0.000000e+00 : f32
    %35 = vector.broadcast %cst_16 : f32 to vector<4x128xf32>
    %36 = arith.mulf %35, %32 : vector<4x128xf32>
    %37 = arith.select %34, %32, %36 : vector<4x128xi1>, vector<4x128xf32>
    %c0_17 = arith.constant 0 : index
    %c0_18 = arith.constant 0 : index
    %38 = vector.load %arg6[%c0_17, %c0_18] : memref<1x128xf32, #tpu.memory_space<vmem>>, vector<1x128xf32>
    %c0_19 = arith.constant 0 : index
    %c0_20 = arith.constant 0 : index
    %39 = vector.load %arg7[%c0_19, %c0_20] : memref<1x128xf32, #tpu.memory_space<vmem>>, vector<1x128xf32>
    %cst_21 = arith.constant dense<0.000000e+00> : vector<128xf32>
    %40 = vector.multi_reduction <add>, %37, %cst_21 [0] : vector<4x128xf32> to vector<128xf32>
    %41 = vector.shape_cast %40 : vector<128xf32> to vector<1x128xf32>
    %cst_22 = arith.constant 4.000000e+00 : f32
    %42 = vector.broadcast %cst_22 : f32 to vector<1x128xf32>
    %43 = arith.divf %41, %42 : vector<1x128xf32>
    %44 = arith.mulf %37, %37 : vector<4x128xf32>
    %cst_23 = arith.constant dense<0.000000e+00> : vector<128xf32>
    %45 = vector.multi_reduction <add>, %44, %cst_23 [0] : vector<4x128xf32> to vector<128xf32>
    %46 = vector.shape_cast %45 : vector<128xf32> to vector<1x128xf32>
    %cst_24 = arith.constant 4.000000e+00 : f32
    %47 = vector.broadcast %cst_24 : f32 to vector<1x128xf32>
    %48 = arith.divf %46, %47 : vector<1x128xf32>
    %49 = arith.mulf %43, %43 : vector<1x128xf32>
    %50 = arith.subf %48, %49 : vector<1x128xf32>
    %cst_25 = arith.constant 0.000000e+00 : f32
    %51 = vector.broadcast %cst_25 : f32 to vector<1x128xf32>
    %52 = arith.maximumf %50, %51 : vector<1x128xf32>
    %cst_26 = arith.constant 9.99999974E-6 : f32
    %53 = vector.broadcast %cst_26 : f32 to vector<1x128xf32>
    %54 = arith.addf %52, %53 : vector<1x128xf32>
    %55 = math.rsqrt %54 : vector<1x128xf32>
    %56 = arith.mulf %38, %55 : vector<1x128xf32>
    %57 = vector.broadcast %56 : vector<1x128xf32> to vector<4x128xf32>
    %58 = arith.mulf %37, %57 : vector<4x128xf32>
    %59 = arith.mulf %43, %56 : vector<1x128xf32>
    %60 = arith.subf %39, %59 : vector<1x128xf32>
    %61 = vector.broadcast %60 : vector<1x128xf32> to vector<4x128xf32>
    %62 = arith.addf %58, %61 : vector<4x128xf32>
    %c0_27 = arith.constant 0 : index
    %c0_28 = arith.constant 0 : index
    %63 = vector.load %arg8[%c0_27, %c0_28] : memref<128x128xf32, #tpu.memory_space<vmem>>, vector<128x128xf32>
    %c0_29 = arith.constant 0 : index
    %c0_30 = arith.constant 0 : index
    %64 = vector.load %arg9[%c0_29, %c0_30] : memref<1x128xf32, #tpu.memory_space<vmem>>, vector<1x128xf32>
    %65 = arith.truncf %62 : vector<4x128xf32> to vector<4x128xbf16>
    %66 = arith.truncf %63 : vector<128x128xf32> to vector<128x128xbf16>
    %cst_31 = arith.constant dense<0.000000e+00> : vector<4x128xf32>
    %67 = tpu.matmul %65, %66, %cst_31 {dimension_numbers = #tpu.dot_dimension_numbers<[1], [0], [0], [1], [0, 0, 1, 1], [], []>} : vector<4x128xbf16>, vector<128x128xbf16>, vector<4x128xf32> -> vector<4x128xf32>
    %68 = vector.broadcast %64 : vector<1x128xf32> to vector<4x128xf32>
    %69 = arith.addf %67, %68 : vector<4x128xf32>
    %cst_32 = arith.constant 0.000000e+00 : f32
    %70 = vector.broadcast %cst_32 : f32 to vector<4x128xf32>
    %71 = arith.cmpf oge, %69, %70 : vector<4x128xf32>
    %cst_33 = arith.constant 0.000000e+00 : f32
    %72 = vector.broadcast %cst_33 : f32 to vector<4x128xf32>
    %73 = arith.mulf %72, %69 : vector<4x128xf32>
    %74 = arith.select %71, %69, %73 : vector<4x128xi1>, vector<4x128xf32>
    %c0_34 = arith.constant 0 : index
    %c0_35 = arith.constant 0 : index
    %75 = vector.load %arg10[%c0_34, %c0_35] : memref<1x128xf32, #tpu.memory_space<vmem>>, vector<1x128xf32>
    %c0_36 = arith.constant 0 : index
    %c0_37 = arith.constant 0 : index
    %76 = vector.load %arg11[%c0_36, %c0_37] : memref<1x128xf32, #tpu.memory_space<vmem>>, vector<1x128xf32>
    %cst_38 = arith.constant dense<0.000000e+00> : vector<128xf32>
    %77 = vector.multi_reduction <add>, %74, %cst_38 [0] : vector<4x128xf32> to vector<128xf32>
    %78 = vector.shape_cast %77 : vector<128xf32> to vector<1x128xf32>
    %cst_39 = arith.constant 4.000000e+00 : f32
    %79 = vector.broadcast %cst_39 : f32 to vector<1x128xf32>
    %80 = arith.divf %78, %79 : vector<1x128xf32>
    %81 = arith.mulf %74, %74 : vector<4x128xf32>
    %cst_40 = arith.constant dense<0.000000e+00> : vector<128xf32>
    %82 = vector.multi_reduction <add>, %81, %cst_40 [0] : vector<4x128xf32> to vector<128xf32>
    %83 = vector.shape_cast %82 : vector<128xf32> to vector<1x128xf32>
    %cst_41 = arith.constant 4.000000e+00 : f32
    %84 = vector.broadcast %cst_41 : f32 to vector<1x128xf32>
    %85 = arith.divf %83, %84 : vector<1x128xf32>
    %86 = arith.mulf %80, %80 : vector<1x128xf32>
    %87 = arith.subf %85, %86 : vector<1x128xf32>
    %cst_42 = arith.constant 0.000000e+00 : f32
    %88 = vector.broadcast %cst_42 : f32 to vector<1x128xf32>
    %89 = arith.maximumf %87, %88 : vector<1x128xf32>
    %cst_43 = arith.constant 9.99999974E-6 : f32
    %90 = vector.broadcast %cst_43 : f32 to vector<1x128xf32>
    %91 = arith.addf %89, %90 : vector<1x128xf32>
    %92 = math.rsqrt %91 : vector<1x128xf32>
    %93 = arith.mulf %75, %92 : vector<1x128xf32>
    %94 = vector.broadcast %93 : vector<1x128xf32> to vector<4x128xf32>
    %95 = arith.mulf %74, %94 : vector<4x128xf32>
    %96 = arith.mulf %80, %93 : vector<1x128xf32>
    %97 = arith.subf %76, %96 : vector<1x128xf32>
    %98 = vector.broadcast %97 : vector<1x128xf32> to vector<4x128xf32>
    %99 = arith.addf %95, %98 : vector<4x128xf32>
    %c0_44 = arith.constant 0 : index
    %c0_45 = arith.constant 0 : index
    %100 = vector.load %arg12[%c0_44, %c0_45] : memref<128x128xf32, #tpu.memory_space<vmem>>, vector<128x128xf32>
    %c0_46 = arith.constant 0 : index
    %c0_47 = arith.constant 0 : index
    %101 = vector.load %arg13[%c0_46, %c0_47] : memref<1x128xf32, #tpu.memory_space<vmem>>, vector<1x128xf32>
    %102 = arith.truncf %99 : vector<4x128xf32> to vector<4x128xbf16>
    %103 = arith.truncf %100 : vector<128x128xf32> to vector<128x128xbf16>
    %cst_48 = arith.constant dense<0.000000e+00> : vector<4x128xf32>
    %104 = tpu.matmul %102, %103, %cst_48 {dimension_numbers = #tpu.dot_dimension_numbers<[1], [0], [0], [1], [0, 0, 1, 1], [], []>} : vector<4x128xbf16>, vector<128x128xbf16>, vector<4x128xf32> -> vector<4x128xf32>
    %105 = vector.broadcast %101 : vector<1x128xf32> to vector<4x128xf32>
    %106 = arith.addf %104, %105 : vector<4x128xf32>
    %c0_49 = arith.constant 0 : index
    %c0_50 = arith.constant 0 : index
    %107 = vector.load %arg14[%c0_49, %c0_50] : memref<128x128xf32, #tpu.memory_space<vmem>>, vector<128x128xf32>
    %c0_51 = arith.constant 0 : index
    %c0_52 = arith.constant 0 : index
    %108 = vector.load %arg15[%c0_51, %c0_52] : memref<1x128xf32, #tpu.memory_space<vmem>>, vector<1x128xf32>
    %109 = arith.truncf %106 : vector<4x128xf32> to vector<4x128xbf16>
    %110 = arith.truncf %107 : vector<128x128xf32> to vector<128x128xbf16>
    %cst_53 = arith.constant dense<0.000000e+00> : vector<4x128xf32>
    %111 = tpu.matmul %109, %110, %cst_53 {dimension_numbers = #tpu.dot_dimension_numbers<[1], [0], [0], [1], [0, 0, 1, 1], [], []>} : vector<4x128xbf16>, vector<128x128xbf16>, vector<4x128xf32> -> vector<4x128xf32>
    %112 = vector.broadcast %108 : vector<1x128xf32> to vector<4x128xf32>
    %113 = arith.addf %111, %112 : vector<4x128xf32>
    %c0_54 = arith.constant 0 : index
    %c0_55 = arith.constant 0 : index
    %114 = vector.load %arg17[%c0_54, %c0_55] : memref<1x128xf32, #tpu.memory_space<vmem>>, vector<1x128xf32>
    %c0_56 = arith.constant 0 : index
    %c0_57 = arith.constant 0 : index
    %115 = vector.load %arg18[%c0_56, %c0_57] : memref<1x128xf32, #tpu.memory_space<vmem>>, vector<1x128xf32>
    %cst_58 = arith.constant dense<0xFF800000> : vector<4xf32>
    %116 = vector.multi_reduction <maximumf>, %113, %cst_58 [1] : vector<4x128xf32> to vector<4xf32>
    %117 = vector.shape_cast %116 : vector<4xf32> to vector<4x1xf32>
    %118 = vector.broadcast %117 : vector<4x1xf32> to vector<4x128xf32>
    %119 = arith.subf %113, %118 : vector<4x128xf32>
    %120 = math.exp %119 : vector<4x128xf32>
    %121 = arith.truncf %120 : vector<4x128xf32> to vector<4x128xbf16>
    %c0_59 = arith.constant 0 : index
    %c0_60 = arith.constant 0 : index
    %122 = vector.load %arg16[%c0_59, %c0_60] : memref<128x128xbf16, #tpu.memory_space<vmem>>, vector<128x128xbf16>
    %cst_61 = arith.constant dense<0.000000e+00> : vector<4x128xf32>
    %123 = tpu.matmul %121, %122, %cst_61 {dimension_numbers = #tpu.dot_dimension_numbers<[1], [0], [0], [1], [0, 0, 1, 1], [], []>} : vector<4x128xbf16>, vector<128x128xbf16>, vector<4x128xf32> -> vector<4x128xf32>
    %124 = vector.broadcast %114 : vector<1x128xf32> to vector<4x128xf32>
    %125 = arith.addf %123, %124 : vector<4x128xf32>
    %cst_62 = arith.constant 1.000000e+00 : f32
    %126 = vector.broadcast %cst_62 : f32 to vector<1x128xf32>
    %127 = arith.subf %126, %115 : vector<1x128xf32>
    %128 = vector.broadcast %127 : vector<1x128xf32> to vector<4x128xf32>
    %129 = arith.addf %125, %128 : vector<4x128xf32>
    %130 = arith.divf %120, %129 : vector<4x128xf32>
    %cst_63 = arith.constant 0.000000e+00 : f32
    %131 = vector.broadcast %cst_63 : f32 to vector<4x128xf32>
    %132 = arith.subf %131, %113 : vector<4x128xf32>
    %133 = math.exp %132 : vector<4x128xf32>
    %cst_64 = arith.constant 1.000000e+00 : f32
    %134 = vector.broadcast %cst_64 : f32 to vector<4x128xf32>
    %135 = arith.addf %134, %133 : vector<4x128xf32>
    %cst_65 = arith.constant 1.000000e+00 : f32
    %136 = vector.broadcast %cst_65 : f32 to vector<4x128xf32>
    %137 = arith.divf %136, %135 : vector<4x128xf32>
    %138 = vector.broadcast %114 : vector<1x128xf32> to vector<4x128xf32>
    %139 = arith.mulf %138, %137 : vector<4x128xf32>
    %cst_66 = arith.constant 1.000000e+00 : f32
    %140 = vector.broadcast %cst_66 : f32 to vector<1x128xf32>
    %141 = arith.subf %140, %114 : vector<1x128xf32>
    %142 = vector.broadcast %141 : vector<1x128xf32> to vector<4x128xf32>
    %143 = arith.mulf %142, %130 : vector<4x128xf32>
    %144 = arith.addf %139, %143 : vector<4x128xf32>
    %145 = vector.broadcast %115 : vector<1x128xf32> to vector<4x128xf32>
    %146 = arith.mulf %145, %144 : vector<4x128xf32>
    %c0_67 = arith.constant 0 : index
    %c0_68 = arith.constant 0 : index
    %147 = vector.load %arg19[%c0_67, %c0_68] : memref<4x128xf32, #tpu.memory_space<vmem>>, vector<4x128xf32>
    tpu.vector_store %arg19[%c0_67, %c0_68], %146 {strides = array<i32>} : memref<4x128xf32, #tpu.memory_space<vmem>>, vector<4x128xf32>,
    return
  }
  func.func @transform_0(%arg0: i32) -> (i32, i32) {
    %c0_i32 = arith.constant 0 : i32
    %c0_i32_0 = arith.constant 0 : i32
    %c0_i32_1 = arith.constant 0 : i32
    return %c0_i32, %c0_i32_0 : i32, i32
  }
  func.func @transform_1(%arg0: i32) -> (i32, i32) {
    %c0_i32 = arith.constant 0 : i32
    %c0_i32_0 = arith.constant 0 : i32
    %c0_i32_1 = arith.constant 0 : i32
    return %c0_i32, %c0_i32_0 : i32, i32
  }
  func.func @transform_2(%arg0: i32) -> (i32, i32) {
    %c0_i32 = arith.constant 0 : i32
    %c0_i32_0 = arith.constant 0 : i32
    %c0_i32_1 = arith.constant 0 : i32
    return %c0_i32, %c0_i32_0 : i32, i32
  }
  func.func @transform_3(%arg0: i32) -> (i32, i32) {
    %c0_i32 = arith.constant 0 : i32
    %c0_i32_0 = arith.constant 0 : i32
    %c0_i32_1 = arith.constant 0 : i32
    return %c0_i32, %c0_i32_0 : i32, i32
  }
  func.func @transform_4(%arg0: i32) -> (i32, i32) {
    %c0_i32 = arith.constant 0 : i32
    %c0_i32_0 = arith.constant 0 : i32
    %c0_i32_1 = arith.constant 0 : i32
    return %c0_i32, %c0_i32_0 : i32, i32
  }
  func.func @transform_5(%arg0: i32) -> (i32, i32) {
    %c0_i32 = arith.constant 0 : i32
    %c0_i32_0 = arith.constant 0 : i32
    %c0_i32_1 = arith.constant 0 : i32
    return %c0_i32, %c0_i32_0 : i32, i32
  }
  func.func @transform_6(%arg0: i32) -> (i32, i32) {
    %c0_i32 = arith.constant 0 : i32
    %c0_i32_0 = arith.constant 0 : i32
    %c0_i32_1 = arith.constant 0 : i32
    return %c0_i32, %c0_i32_0 : i32, i32
  }
  func.func @transform_7(%arg0: i32) -> (i32, i32) {
    %c0_i32 = arith.constant 0 : i32
    %c0_i32_0 = arith.constant 0 : i32
    %c0_i32_1 = arith.constant 0 : i32
    return %c0_i32, %c0_i32_0 : i32, i32
  }
  func.func @transform_8(%arg0: i32) -> (i32, i32) {
    %c0_i32 = arith.constant 0 : i32
    %c0_i32_0 = arith.constant 0 : i32
    %c0_i32_1 = arith.constant 0 : i32
    return %c0_i32, %c0_i32_0 : i32, i32
  }
  func.func @transform_9(%arg0: i32) -> (i32, i32) {
    %c0_i32 = arith.constant 0 : i32
    %c0_i32_0 = arith.constant 0 : i32
    %c0_i32_1 = arith.constant 0 : i32
    return %c0_i32, %c0_i32_0 : i32, i32
  }
  func.func @transform_10(%arg0: i32) -> (i32, i32) {
    %c0_i32 = arith.constant 0 : i32
    %c0_i32_0 = arith.constant 0 : i32
    %c0_i32_1 = arith.constant 0 : i32
    return %c0_i32, %c0_i32_0 : i32, i32
  }
  func.func @transform_11(%arg0: i32) -> (i32, i32) {
    %c0_i32 = arith.constant 0 : i32
    %c0_i32_0 = arith.constant 0 : i32
    %c0_i32_1 = arith.constant 0 : i32
    return %c0_i32, %c0_i32_0 : i32, i32
  }
  func.func @transform_12(%arg0: i32) -> (i32, i32) {
    %c0_i32 = arith.constant 0 : i32
    %c0_i32_0 = arith.constant 0 : i32
    %c0_i32_1 = arith.constant 0 : i32
    return %c0_i32, %c0_i32_0 : i32, i32
  }
  func.func @transform_13(%arg0: i32) -> (i32, i32) {
    %c0_i32 = arith.constant 0 : i32
    %c0_i32_0 = arith.constant 0 : i32
    %c0_i32_1 = arith.constant 0 : i32
    return %c0_i32, %c0_i32_0 : i32, i32
  }
  func.func @transform_14(%arg0: i32) -> (i32, i32) {
    %c0_i32 = arith.constant 0 : i32
    %c0_i32_0 = arith.constant 0 : i32
    %c0_i32_1 = arith.constant 0 : i32
    return %c0_i32, %c0_i32_0 : i32, i32
  }
  func.func @transform_15(%arg0: i32) -> (i32, i32) {
    %c0_i32 = arith.constant 0 : i32
    %c0_i32_0 = arith.constant 0 : i32
    %c0_i32_1 = arith.constant 0 : i32
    return %c0_i32, %c0_i32_0 : i32, i32
  }
  func.func @transform_16(%arg0: i32) -> (i32, i32) {
    %c0_i32 = arith.constant 0 : i32
    %c0_i32_0 = arith.constant 0 : i32
    %c0_i32_1 = arith.constant 0 : i32
    return %c0_i32, %c0_i32_0 : i32, i32
  }
  func.func @transform_17(%arg0: i32) -> (i32, i32) {
    %c0_i32 = arith.constant 0 : i32
    %c0_i32_0 = arith.constant 0 : i32
    %c0_i32_1 = arith.constant 0 : i32
    return %c0_i32, %c0_i32_0 : i32, i32
  }
  func.func @transform_18(%arg0: i32) -> (i32, i32) {
    %c0_i32 = arith.constant 0 : i32
    %c0_i32_0 = arith.constant 0 : i32
    %c0_i32_1 = arith.constant 0 : i32
    return %c0_i32, %c0_i32_0 : i32, i32
  }
}

</mosaic_0001>

<llo_original>
// kernel: nu_model_forward.5
$region0: #{nu_model_forward.5}
  #allocation0 [shape = 'u32[]', space=smem, size = 0x4, offset = 0x4, fixed_abs, tag = 'smem constant byte address 0x4 - core index']
  #allocation1 [shape = 'u32[144,128]{1,0:T(1,128)}', space=vmem, size = 0x12000, scoped, tag = 'internal scratch']
  %s0 = inlined_call_operand.vmem [shape: f32[64,9], index: 0, kind: input, shape index: {}]
  %s1 = inlined_call_operand.vmem [shape: f32[64,128], index: 1, kind: input, shape index: {}]
  %s2 = inlined_call_operand.vmem [shape: f32[1,9], index: 2, kind: input, shape index: {}]
  %s3 = inlined_call_operand.vmem [shape: f32[1,128], index: 3, kind: input, shape index: {}]
  %s4 = inlined_call_operand.vmem [shape: f32[1,9], index: 4, kind: input, shape index: {}]
  %s5 = inlined_call_operand.vmem [shape: f32[1,128], index: 5, kind: input, shape index: {}]
  %s6 = inlined_call_operand.vmem [shape: f32[9,128], index: 6, kind: input, shape index: {}]
  %s7 = inlined_call_operand.vmem [shape: f32[128,128], index: 7, kind: input, shape index: {}]
  %s8 = inlined_call_operand.vmem [shape: f32[1,128], index: 8, kind: input, shape index: {}]
  %s9 = inlined_call_operand.vmem [shape: f32[1,128], index: 9, kind: input, shape index: {}]
  %s10 = inlined_call_operand.vmem [shape: f32[1,128], index: 10, kind: input, shape index: {}]
  %s11 = inlined_call_operand.vmem [shape: f32[128,128], index: 11, kind: input, shape index: {}]
  %s12 = inlined_call_operand.vmem [shape: f32[1,128], index: 12, kind: input, shape index: {}]
  %s13 = inlined_call_operand.vmem [shape: f32[1,128], index: 13, kind: input, shape index: {}]
  %s14 = inlined_call_operand.vmem [shape: f32[1,128], index: 14, kind: input, shape index: {}]
  %s15 = inlined_call_operand.vmem [shape: f32[128,128], index: 15, kind: input, shape index: {}]
  %s16 = inlined_call_operand.vmem [shape: f32[1,128], index: 16, kind: input, shape index: {}]
  %s17 = inlined_call_operand.vmem [shape: f32[64,128], index: 17, kind: output, shape index: {}]
  %s18 = sld [smem:[#allocation0]]
  $region78: #{nu_model_forward.5} parent=0
    _
  %s20 = ssub.s32 1, %s18
  %s21 = scalar_select 0, %s20, %s18
  // Predicated region
  $region2: #{nu_model_forward.5} parent=0 // pred_check
    _
  $region3: #{nu_model_forward.5} parent=0 // pred_check_branch
    %23 = sbr.rel (0) target = $region5
  $region4: #{nu_model_forward.5} parent=0 // pred_region
    _
  $region5: #{nu_model_forward.5} parent=0 // pred_fallthru
    _
  // Predicated region
  $region6: #{nu_model_forward.5} parent=0 // pred_check
    _
  $region7: #{nu_model_forward.5} parent=0 // pred_check_branch
    %25 = sbr.rel (0) target = $region9
  $region8: #{nu_model_forward.5} parent=0 // pred_region
    _
  $region9: #{nu_model_forward.5} parent=0 // pred_fallthru
    _
  // Predicated region
  $region10: #{nu_model_forward.5} parent=0 // pred_check
    _
  $region11: #{nu_model_forward.5} parent=0 // pred_check_branch
    %27 = sbr.rel (0) target = $region13
  $region12: #{nu_model_forward.5} parent=0 // pred_region
    _
  $region13: #{nu_model_forward.5} parent=0 // pred_fallthru
    _
  // Predicated region
  $region14: #{nu_model_forward.5} parent=0 // pred_check
    _
  $region15: #{nu_model_forward.5} parent=0 // pred_check_branch
    %29 = sbr.rel (0) target = $region17
  $region16: #{nu_model_forward.5} parent=0 // pred_region
    _
  $region17: #{nu_model_forward.5} parent=0 // pred_fallthru
    _
  // Predicated region
  $region18: #{nu_model_forward.5} parent=0 // pred_check
    _
  $region19: #{nu_model_forward.5} parent=0 // pred_check_branch
    %31 = sbr.rel (0) target = $region21
  $region20: #{nu_model_forward.5} parent=0 // pred_region
    _
  $region21: #{nu_model_forward.5} parent=0 // pred_fallthru
    _
  // Predicated region
  $region22: #{nu_model_forward.5} parent=0 // pred_check
    _
  $region23: #{nu_model_forward.5} parent=0 // pred_check_branch
    %33 = sbr.rel (0) target = $region25
  $region24: #{nu_model_forward.5} parent=0 // pred_region
    _
  $region25: #{nu_model_forward.5} parent=0 // pred_fallthru
    _
  // Predicated region
  $region26: #{nu_model_forward.5} parent=0 // pred_check
    _
  $region27: #{nu_model_forward.5} parent=0 // pred_check_branch
    %35 = sbr.rel (0) target = $region29
  $region28: #{nu_model_forward.5} parent=0 // pred_region
    _
  $region29: #{nu_model_forward.5} parent=0 // pred_fallthru
    _
  // Predicated region
  $region30: #{nu_model_forward.5} parent=0 // pred_check
    _
  $region31: #{nu_model_forward.5} parent=0 // pred_check_branch
    %37 = sbr.rel (0) target = $region33
  $region32: #{nu_model_forward.5} parent=0 // pred_region
    _
  $region33: #{nu_model_forward.5} parent=0 // pred_fallthru
    _
  // Predicated region
  $region34: #{nu_model_forward.5} parent=0 // pred_check
    _
  $region35: #{nu_model_forward.5} parent=0 // pred_check_branch
    %39 = sbr.rel (0) target = $region37
  $region36: #{nu_model_forward.5} parent=0 // pred_region
    _
  $region37: #{nu_model_forward.5} parent=0 // pred_fallthru
    _
  // Predicated region
  $region38: #{nu_model_forward.5} parent=0 // pred_check
    _
  $region39: #{nu_model_forward.5} parent=0 // pred_check_branch
    %41 = sbr.rel (0) target = $region41
  $region40: #{nu_model_forward.5} parent=0 // pred_region
    _
  $region41: #{nu_model_forward.5} parent=0 // pred_fallthru
    _
  // Predicated region
  $region42: #{nu_model_forward.5} parent=0 // pred_check
    _
  $region43: #{nu_model_forward.5} parent=0 // pred_check_branch
    %43 = sbr.rel (0) target = $region45
  $region44: #{nu_model_forward.5} parent=0 // pred_region
    _
  $region45: #{nu_model_forward.5} parent=0 // pred_fallthru
    _
  // Predicated region
  $region46: #{nu_model_forward.5} parent=0 // pred_check
    _
  $region47: #{nu_model_forward.5} parent=0 // pred_check_branch
    %45 = sbr.rel (0) target = $region49
  $region48: #{nu_model_forward.5} parent=0 // pred_region
    _
  $region49: #{nu_model_forward.5} parent=0 // pred_fallthru
    _
  // Predicated region
  $region50: #{nu_model_forward.5} parent=0 // pred_check
    _
  $region51: #{nu_model_forward.5} parent=0 // pred_check_branch
    %47 = sbr.rel (0) target = $region53
  $region52: #{nu_model_forward.5} parent=0 // pred_region
    _
  $region53: #{nu_model_forward.5} parent=0 // pred_fallthru
    _
  // Predicated region
  $region54: #{nu_model_forward.5} parent=0 // pred_check
    _
  $region55: #{nu_model_forward.5} parent=0 // pred_check_branch
    %49 = sbr.rel (0) target = $region57
  $region56: #{nu_model_forward.5} parent=0 // pred_region
    _
  $region57: #{nu_model_forward.5} parent=0 // pred_fallthru
    _
  // Predicated region
  $region58: #{nu_model_forward.5} parent=0 // pred_check
    _
  $region59: #{nu_model_forward.5} parent=0 // pred_check_branch
    %51 = sbr.rel (0) target = $region61
  $region60: #{nu_model_forward.5} parent=0 // pred_region
    _
  $region61: #{nu_model_forward.5} parent=0 // pred_fallthru
    _
  // Predicated region
  $region62: #{nu_model_forward.5} parent=0 // pred_check
    _
  $region63: #{nu_model_forward.5} parent=0 // pred_check_branch
    %53 = sbr.rel (0) target = $region65
  $region64: #{nu_model_forward.5} parent=0 // pred_region
    _
  $region65: #{nu_model_forward.5} parent=0 // pred_fallthru
    _
  // Predicated region
  $region66: #{nu_model_forward.5} parent=0 // pred_check
    _
  $region67: #{nu_model_forward.5} parent=0 // pred_check_branch
    %55 = sbr.rel (0) target = $region69
  $region68: #{nu_model_forward.5} parent=0 // pred_region
    _
  $region69: #{nu_model_forward.5} parent=0 // pred_fallthru
    _
  %v57 = vld [vmem:[%s0] sm:$0xff]
  %v58 = vld [vmem:[%s0 + $0x8] sm:$0xff]
  %v59 = vld [vmem:[%s0 + $0x10] sm:$0xff]
  %v60 = vld [vmem:[%s0 + $0x18] sm:$0xff]
  %v61 = vld [vmem:[%s0 + $0x20] sm:$0xff]
  %v62 = vld [vmem:[%s0 + $0x28] sm:$0xff]
  %v63 = vld [vmem:[%s0 + $0x30] sm:$0xff]
  %v64 = vld [vmem:[%s0 + $0x38] sm:$0xff]
  %v65 = vld [vmem:[%s2] sm:$0x1]
  %v66 = vld [vmem:[%s4] sm:$0x1]
  %vm67 = vcmask 72704
  %v68 = vsel %vm67, %v57, 0.0
  %v69 = vsel %vm67, %v58, 0.0
  %v70 = vadd.f32 %v68, %v69
  %v71 = vsel %vm67, %v59, 0.0
  %v72 = vadd.f32 %v70, %v71
  %v73 = vsel %vm67, %v60, 0.0
  %v74 = vadd.f32 %v72, %v73
  %v75 = vsel %vm67, %v61, 0.0
  %v76 = vadd.f32 %v74, %v75
  %v77 = vsel %vm67, %v62, 0.0
  %v78 = vadd.f32 %v76, %v77
  %v79 = vsel %vm67, %v63, 0.0
  %v80 = vadd.f32 %v78, %v79
  %v81 = vsel %vm67, %v64, 0.0
  %v82 = vadd.f32 %v80, %v81
  %v83 = vrot.slane %v82, 4
  %v84 = vadd.f32 %v82, %v83
  %v85 = vrot.slane %v84, 2
  %v86 = vadd.f32 %v84, %v85
  %v87 = vrot.slane %v86, 1
  %v88 = vadd.f32 %v86, %v87
  %v89 = vrcp.pop 64.0
  %v90 = vmul.f32 %v88, %v89
  %v91 = vmul.f32 %v57, %v57
  %v92 = vmul.f32 %v58, %v58
  %v93 = vmul.f32 %v59, %v59
  %v94 = vmul.f32 %v60, %v60
  %v95 = vmul.f32 %v61, %v61
  %v96 = vmul.f32 %v62, %v62
  %v97 = vmul.f32 %v63, %v63
  %v98 = vmul.f32 %v64, %v64
  %v99 = vsel %vm67, %v91, 0.0
  %v100 = vsel %vm67, %v92, 0.0
  %v101 = vadd.f32 %v99, %v100
  %v102 = vsel %vm67, %v93, 0.0
  %v103 = vadd.f32 %v101, %v102
  %v104 = vsel %vm67, %v94, 0.0
  %v105 = vadd.f32 %v103, %v104
  %v106 = vsel %vm67, %v95, 0.0
  %v107 = vadd.f32 %v105, %v106
  %v108 = vsel %vm67, %v96, 0.0
  %v109 = vadd.f32 %v107, %v108
  %v110 = vsel %vm67, %v97, 0.0
  %v111 = vadd.f32 %v109, %v110
  %v112 = vsel %vm67, %v98, 0.0
  %v113 = vadd.f32 %v111, %v112
  %v114 = vrot.slane %v113, 4
  %v115 = vadd.f32 %v113, %v114
  %v116 = vrot.slane %v115, 2
  %v117 = vadd.f32 %v115, %v116
  %v118 = vrot.slane %v117, 1
  %v119 = vadd.f32 %v117, %v118
  %v120 = vmul.f32 %v119, %v89
  %v121 = vmul.f32 %v90, %v90
  %v122 = vsub.f32 %v120, %v121
  %v123 = vmax.f32 %v122, 0.0
  %v124 = vadd.f32 %v123, 1e-05
  %v125 = vrsqrt.pop %v124
  %v126 = vmul.f32 %v65, %v125
  %v128 = vlaneseq
  %v129 = vshrl.u32 %v128, 7
  %v130 = vsub.s32 0, %v129
  %v131 = vrot.slane %v126, %v130
  %v133 = vmul.f32 %v57, %v131
  %v134 = vmul.f32 %v58, %v131
  %v135 = vmul.f32 %v59, %v131
  %v136 = vmul.f32 %v60, %v131
  %v137 = vmul.f32 %v61, %v131
  %v138 = vmul.f32 %v62, %v131
  %v139 = vmul.f32 %v63, %v131
  %v140 = vmul.f32 %v64, %v131
  %v141 = vmul.f32 %v90, %v126
  %v142 = vsub.f32 %v66, %v141
  %v144 = vlaneseq
  %v145 = vshrl.u32 %v144, 7
  %v146 = vsub.s32 0, %v145
  %v147 = vrot.slane %v142, %v146
  %v149 = vadd.f32 %v133, %v147
  %v150 = vadd.f32 %v134, %v147
  %v151 = vadd.f32 %v135, %v147
  %v152 = vadd.f32 %v136, %v147
  %v153 = vadd.f32 %v137, %v147
  %v154 = vadd.f32 %v138, %v147
  %v155 = vadd.f32 %v139, %v147
  %v156 = vadd.f32 %v140, %v147
  %v157 = vpack.c.bf16 %v150, %v149
  %v158 = vpack.c.bf16 %v152, %v151
  %v159 = vpack.c.bf16 %v154, %v153
  %v160 = vpack.c.bf16 %v156, %v155
  %v161 = vld [vmem:[%s6] sm:$0xff]
  %v162 = vld [vmem:[%s6 + $0x8] sm:$0x1]
  %v163 = vpack.c.bf16 %v162, %v161
  %v164 = vld [vmem:[%s1] sm:$0xff]
  %v165 = vld [vmem:[%s1 + $0x8] sm:$0xff]
  %v166 = vld [vmem:[%s1 + $0x10] sm:$0xff]
  %v167 = vld [vmem:[%s1 + $0x18] sm:$0xff]
  %v168 = vld [vmem:[%s1 + $0x20] sm:$0xff]
  %v169 = vld [vmem:[%s1 + $0x28] sm:$0xff]
  %v170 = vld [vmem:[%s1 + $0x30] sm:$0xff]
  %v171 = vld [vmem:[%s1 + $0x38] sm:$0xff]
  %v172 = vld [vmem:[%s3] sm:$0x1]
  %v173 = vld [vmem:[%s5] sm:$0x1]
  %v174 = vadd.f32 %v164, %v165
  %v175 = vadd.f32 %v174, %v166
  %v176 = vadd.f32 %v175, %v167
  %v177 = vadd.f32 %v176, %v168
  %v178 = vadd.f32 %v177, %v169
  %v179 = vadd.f32 %v178, %v170
  %v180 = vadd.f32 %v179, %v171
  %v181 = vrot.slane %v180, 4
  %v182 = vadd.f32 %v180, %v181
  %v183 = vrot.slane %v182, 2
  %v184 = vadd.f32 %v182, %v183
  %v185 = vrot.slane %v184, 1
  %v186 = vadd.f32 %v184, %v185
  %v187 = vmul.f32 %v186, %v89
  %v188 = vmul.f32 %v164, %v164
  %v189 = vmul.f32 %v165, %v165
  %v190 = vmul.f32 %v166, %v166
  %v191 = vmul.f32 %v167, %v167
  %v192 = vmul.f32 %v168, %v168
  %v193 = vmul.f32 %v169, %v169
  %v194 = vmul.f32 %v170, %v170
  %v195 = vmul.f32 %v171, %v171
  %v196 = vadd.f32 %v188, %v189
  %v197 = vadd.f32 %v196, %v190
  %v198 = vadd.f32 %v197, %v191
  %v199 = vadd.f32 %v198, %v192
  %v200 = vadd.f32 %v199, %v193
  %v201 = vadd.f32 %v200, %v194
  %v202 = vadd.f32 %v201, %v195
  %v203 = vrot.slane %v202, 4
  %v204 = vadd.f32 %v202, %v203
  %v205 = vrot.slane %v204, 2
  %v206 = vadd.f32 %v204, %v205
  %v207 = vrot.slane %v206, 1
  %v208 = vadd.f32 %v206, %v207
  %v209 = vmul.f32 %v208, %v89
  %v210 = vmul.f32 %v187, %v187
  %v211 = vsub.f32 %v209, %v210
  %v212 = vmax.f32 %v211, 0.0
  %v213 = vadd.f32 %v212, 1e-05
  %v214 = vrsqrt.pop %v213
  %v215 = vmul.f32 %v172, %v214
  %v217 = vlaneseq
  %v218 = vshrl.u32 %v217, 7
  %v219 = vsub.s32 0, %v218
  %v220 = vrot.slane %v215, %v219
  %v222 = vmul.f32 %v164, %v220
  %v223 = vmul.f32 %v165, %v220
  %v224 = vmul.f32 %v166, %v220
  %v225 = vmul.f32 %v167, %v220
  %v226 = vmul.f32 %v168, %v220
  %v227 = vmul.f32 %v169, %v220
  %v228 = vmul.f32 %v170, %v220
  %v229 = vmul.f32 %v171, %v220
  %v230 = vmul.f32 %v187, %v215
  %v231 = vsub.f32 %v173, %v230
  %v233 = vlaneseq
  %v234 = vshrl.u32 %v233, 7
  %v235 = vsub.s32 0, %v234
  %v236 = vrot.slane %v231, %v235
  %v238 = vadd.f32 %v222, %v236
  %v239 = vadd.f32 %v223, %v236
  %v240 = vadd.f32 %v224, %v236
  %v241 = vadd.f32 %v225, %v236
  %v242 = vadd.f32 %v226, %v236
  %v243 = vadd.f32 %v227, %v236
  %v244 = vadd.f32 %v228, %v236
  %v245 = vadd.f32 %v229, %v236
  %v246 = vpack.c.bf16 %v239, %v238
  %v247 = vpack.c.bf16 %v241, %v240
  %v248 = vpack.c.bf16 %v243, %v242
  %v249 = vpack.c.bf16 %v245, %v244
  %v250 = vld [vmem:[%s7] sm:$0xff]
  %v251 = vld [vmem:[%s7 + $0x8] sm:$0xff]
  %v252 = vld [vmem:[%s7 + $0x10] sm:$0xff]
  %v253 = vld [vmem:[%s7 + $0x18] sm:$0xff]
  %v254 = vld [vmem:[%s7 + $0x20] sm:$0xff]
  %v255 = vld [vmem:[%s7 + $0x28] sm:$0xff]
  %v256 = vld [vmem:[%s7 + $0x30] sm:$0xff]
  %v257 = vld [vmem:[%s7 + $0x38] sm:$0xff]
  %v258 = vld [vmem:[%s7 + $0x40] sm:$0xff]
  %v259 = vld [vmem:[%s7 + $0x48] sm:$0xff]
  %v260 = vld [vmem:[%s7 + $0x50] sm:$0xff]
  %v261 = vld [vmem:[%s7 + $0x58] sm:$0xff]
  %v262 = vld [vmem:[%s7 + $0x60] sm:$0xff]
  %v263 = vld [vmem:[%s7 + $0x68] sm:$0xff]
  %v264 = vld [vmem:[%s7 + $0x70] sm:$0xff]
  %v265 = vld [vmem:[%s7 + $0x78] sm:$0xff]
  %v266 = vpack.c.bf16 %v251, %v250
  %v267 = vpack.c.bf16 %v253, %v252
  %v268 = vpack.c.bf16 %v255, %v254
  %v269 = vpack.c.bf16 %v257, %v256
  %v270 = vpack.c.bf16 %v259, %v258
  %v271 = vpack.c.bf16 %v261, %v260
  %v272 = vpack.c.bf16 %v263, %v262
  %v273 = vpack.c.bf16 %v265, %v264
  %274 = vmatprep.subr.bf16.mxu0 0
  %275 = vmatpush1.bf16.msra.mxu0 %v273
  %276 = vmatprep.subr.bf16.mxu0 0
  %277 = vmatpush1.bf16.msra.mxu0 %v272
  %278 = vmatprep.subr.bf16.mxu0 0
  %279 = vmatpush1.bf16.msra.mxu0 %v271
  %280 = vmatprep.subr.bf16.mxu0 0
  %281 = vmatpush1.bf16.msra.mxu0 %v270
  %282 = vmatprep.subr.bf16.mxu0 0
  %283 = vmatpush1.bf16.msra.mxu0 %v269
  %284 = vmatprep.subr.bf16.mxu0 0
  %285 = vmatpush1.bf16.msra.mxu0 %v268
  %286 = vmatprep.subr.bf16.mxu0 0
  %287 = vmatpush1.bf16.msra.mxu0 %v267
  %288 = vmatprep.subr.bf16.mxu0 0
  %289 = vmatpush1.bf16.msra.mxu0 %v266
  %290 = vmatprep.subr.bf16.mxu0 0
  %291 = vmatpush2.bf16.msra.mxu0 0
  %292 = vmatprep.subr.bf16.mxu0 0
  %293 = vmatpush2.bf16.msra.mxu0 0
  %294 = vmatprep.subr.bf16.mxu0 0
  %295 = vmatpush2.bf16.msra.mxu0 0
  %296 = vmatprep.subr.bf16.mxu0 0
  %297 = vmatpush2.bf16.msra.mxu0 0
  %298 = vmatprep.subr.bf16.mxu0 0
  %299 = vmatpush2.bf16.msra.mxu0 0
  %300 = vmatprep.subr.bf16.mxu0 0
  %301 = vmatpush2.bf16.msra.mxu0 0
  %302 = vmatprep.subr.bf16.mxu0 0
  %303 = vmatpush2.bf16.msra.mxu0 0
  %304 = vmatprep.subr.bf16.mxu0 0
  %305 = vmatpush2.bf16.msra.mxu0 0
  %306 = vmatprep.mubr.bf16.mxu0 0
  %307 = vmatmul.mubr.bf16.gmra.mxu0 %v246
  %v308 = vpop.f32.mrf.mxu0
  %v309 = vadd.f32 0.0, %v308
  %v310 = vpop.f32.mrf.mxu0
  %v311 = vpop.f32.mrf.mxu0
  %v312 = vadd.f32 0.0, %v311
  %v313 = vpop.f32.mrf.mxu0
  %314 = vmatprep.mubr.bf16.mxu0 0
  %315 = vmatmul.mubr.bf16.gmra.mxu0 %v247
  %v316 = vpop.f32.mrf.mxu0
  %v317 = vadd.f32 0.0, %v316
  %v318 = vpop.f32.mrf.mxu0
  %v319 = vpop.f32.mrf.mxu0
  %v320 = vadd.f32 0.0, %v319
  %v321 = vpop.f32.mrf.mxu0
  %322 = vmatprep.mubr.bf16.mxu0 0
  %323 = vmatmul.mubr.bf16.gmra.mxu0 %v248
  %v324 = vpop.f32.mrf.mxu0
  %v325 = vadd.f32 0.0, %v324
  %v326 = vpop.f32.mrf.mxu0
  %v327 = vpop.f32.mrf.mxu0
  %v328 = vadd.f32 0.0, %v327
  %v329 = vpop.f32.mrf.mxu0
  %330 = vmatprep.mubr.bf16.mxu0 0
  %331 = vmatmul.mubr.bf16.gmra.mxu0 %v249
  %v332 = vpop.f32.mrf.mxu0
  %v333 = vadd.f32 0.0, %v332
  %v334 = vpop.f32.mrf.mxu0
  %v335 = vpop.f32.mrf.mxu0
  %v336 = vadd.f32 0.0, %v335
  %v337 = vpop.f32.mrf.mxu0
  %338 = vdwg.mxu0
  %v340 = vsel %vm67, %v157, 0
  %v343 = vsel %vm67, %v158, 0
  %v346 = vsel %vm67, %v159, 0
  %v349 = vsel %vm67, %v160, 0
  %vm351 = vcmask 1043456
  %vm352 = vcmask 1044480
  %v353 = vsel %vm351, 4294967295, 65535
  %v354 = vsel %vm352, %v353, 0
  %v356 = vand.u32 %v163, %v354
  %358 = vmatprep.subr.bf16.mxu0 0
  %359 = vmatpush1.bf16.msra.mxu0 0
  %360 = vmatprep.subr.bf16.mxu0 0
  %361 = vmatpush1.bf16.msra.mxu0 0
  %362 = vmatprep.subr.bf16.mxu0 0
  %363 = vmatpush1.bf16.msra.mxu0 0
  %364 = vmatprep.subr.bf16.mxu0 0
  %365 = vmatpush1.bf16.msra.mxu0 0
  %366 = vmatprep.subr.bf16.mxu0 0
  %367 = vmatpush1.bf16.msra.mxu0 0
  %368 = vmatprep.subr.bf16.mxu0 0
  %369 = vmatpush1.bf16.msra.mxu0 0
  %370 = vmatprep.subr.bf16.mxu0 0
  %371 = vmatpush1.bf16.msra.mxu0 0
  %372 = vmatprep.subr.bf16.mxu0 0
  %373 = vmatpush1.bf16.msra.mxu0 %v356
  %374 = vmatprep.subr.bf16.mxu0 0
  %375 = vmatpush2.bf16.msra.mxu0 0
  %376 = vmatprep.subr.bf16.mxu0 0
  %377 = vmatpush2.bf16.msra.mxu0 0
  %378 = vmatprep.subr.bf16.mxu0 0
  %379 = vmatpush2.bf16.msra.mxu0 0
  %380 = vmatprep.subr.bf16.mxu0 0
  %381 = vmatpush2.bf16.msra.mxu0 0
  %382 = vmatprep.subr.bf16.mxu0 0
  %383 = vmatpush2.bf16.msra.mxu0 0
  %384 = vmatprep.subr.bf16.mxu0 0
  %385 = vmatpush2.bf16.msra.mxu0 0
  %386 = vmatprep.subr.bf16.mxu0 0
  %387 = vmatpush2.bf16.msra.mxu0 0
  %388 = vmatprep.subr.bf16.mxu0 0
  %389 = vmatpush2.bf16.msra.mxu0 0
  %390 = vmatprep.mubr.bf16.mxu0 0
  %391 = vmatmul.mubr.bf16.gmra.mxu0 %v340
  %v392 = vpop.f32.mrf.mxu0
  %v393 = vadd.f32 %v309, %v392
  %v394 = vpop.f32.mrf.mxu0
  %v395 = vpop.f32.mrf.mxu0
  %v396 = vadd.f32 %v312, %v395
  %v397 = vpop.f32.mrf.mxu0
  %398 = vmatprep.mubr.bf16.mxu0 0
  %399 = vmatmul.mubr.bf16.gmra.mxu0 %v343
  %v400 = vpop.f32.mrf.mxu0
  %v401 = vadd.f32 %v317, %v400
  %v402 = vpop.f32.mrf.mxu0
  %v403 = vpop.f32.mrf.mxu0
  %v404 = vadd.f32 %v320, %v403
  %v405 = vpop.f32.mrf.mxu0
  %406 = vmatprep.mubr.bf16.mxu0 0
  %407 = vmatmul.mubr.bf16.gmra.mxu0 %v346
  %v408 = vpop.f32.mrf.mxu0
  %v409 = vadd.f32 %v325, %v408
  %v410 = vpop.f32.mrf.mxu0
  %v411 = vpop.f32.mrf.mxu0
  %v412 = vadd.f32 %v328, %v411
  %v413 = vpop.f32.mrf.mxu0
  %414 = vmatprep.mubr.bf16.mxu0 0
  %415 = vmatmul.mubr.bf16.gmra.mxu0 %v349
  %v416 = vpop.f32.mrf.mxu0
  %v417 = vadd.f32 %v333, %v416
  %v418 = vpop.f32.mrf.mxu0
  %v419 = vpop.f32.mrf.mxu0
  %v420 = vadd.f32 %v336, %v419
  %v421 = vpop.f32.mrf.mxu0
  %422 = vdwg.mxu0
  %v423 = vld [vmem:[%s8] sm:$0x1]
  %v425 = vlaneseq
  %v426 = vshrl.u32 %v425, 7
  %v427 = vsub.s32 0, %v426
  %v428 = vrot.slane %v423, %v427
  %v430 = vadd.f32 %v393, %v428
  %v431 = vadd.f32 %v396, %v428
  %v432 = vadd.f32 %v401, %v428
  %v433 = vadd.f32 %v404, %v428
  %v434 = vadd.f32 %v409, %v428
  %v435 = vadd.f32 %v412, %v428
  %v436 = vadd.f32 %v417, %v428
  %v437 = vadd.f32 %v420, %v428
  %vm438 = vcmp.ge.f32.partialorder %v430, 0.0
  %vm439 = vcmp.ge.f32.partialorder %v431, 0.0
  %vm440 = vcmp.ge.f32.partialorder %v432, 0.0
  %vm441 = vcmp.ge.f32.partialorder %v433, 0.0
  %vm442 = vcmp.ge.f32.partialorder %v434, 0.0
  %vm443 = vcmp.ge.f32.partialorder %v435, 0.0
  %vm444 = vcmp.ge.f32.partialorder %v436, 0.0
  %vm445 = vcmp.ge.f32.partialorder %v437, 0.0
  %v446 = vmul.f32 %v430, 0.0
  %v447 = vmul.f32 %v431, 0.0
  %v448 = vmul.f32 %v432, 0.0
  %v449 = vmul.f32 %v433, 0.0
  %v450 = vmul.f32 %v434, 0.0
  %v451 = vmul.f32 %v435, 0.0
  %v452 = vmul.f32 %v436, 0.0
  %v453 = vmul.f32 %v437, 0.0
  %v454 = vsel %vm438, %v430, %v446
  %v455 = vsel %vm439, %v431, %v447
  %v456 = vsel %vm440, %v432, %v448
  %v457 = vsel %vm441, %v433, %v449
  %v458 = vsel %vm442, %v434, %v450
  %v459 = vsel %vm443, %v435, %v451
  %v460 = vsel %vm444, %v436, %v452
  %v461 = vsel %vm445, %v437, %v453
  %v462 = vld [vmem:[%s9] sm:$0x1]
  %v463 = vld [vmem:[%s10] sm:$0x1]
  %v464 = vadd.f32 %v454, %v455
  %v465 = vadd.f32 %v464, %v456
  %v466 = vadd.f32 %v465, %v457
  %v467 = vadd.f32 %v466, %v458
  %v468 = vadd.f32 %v467, %v459
  %v469 = vadd.f32 %v468, %v460
  %v470 = vadd.f32 %v469, %v461
  %v471 = vrot.slane %v470, 4
  %v472 = vadd.f32 %v470, %v471
  %v473 = vrot.slane %v472, 2
  %v474 = vadd.f32 %v472, %v473
  %v475 = vrot.slane %v474, 1
  %v476 = vadd.f32 %v474, %v475
  %v477 = vmul.f32 %v476, %v89
  %v478 = vmul.f32 %v454, %v454
  %v479 = vmul.f32 %v455, %v455
  %v480 = vmul.f32 %v456, %v456
  %v481 = vmul.f32 %v457, %v457
  %v482 = vmul.f32 %v458, %v458
  %v483 = vmul.f32 %v459, %v459
  %v484 = vmul.f32 %v460, %v460
  %v485 = vmul.f32 %v461, %v461
  %v486 = vadd.f32 %v478, %v479
  %v487 = vadd.f32 %v486, %v480
  %v488 = vadd.f32 %v487, %v481
  %v489 = vadd.f32 %v488, %v482
  %v490 = vadd.f32 %v489, %v483
  %v491 = vadd.f32 %v490, %v484
  %v492 = vadd.f32 %v491, %v485
  %v493 = vrot.slane %v492, 4
  %v494 = vadd.f32 %v492, %v493
  %v495 = vrot.slane %v494, 2
  %v496 = vadd.f32 %v494, %v495
  %v497 = vrot.slane %v496, 1
  %v498 = vadd.f32 %v496, %v497
  %v499 = vmul.f32 %v498, %v89
  %v500 = vmul.f32 %v477, %v477
  %v501 = vsub.f32 %v499, %v500
  %v502 = vmax.f32 %v501, 0.0
  %v503 = vadd.f32 %v502, 1e-05
  %v504 = vrsqrt.pop %v503
  %v505 = vmul.f32 %v462, %v504
  %v507 = vlaneseq
  %v508 = vshrl.u32 %v507, 7
  %v509 = vsub.s32 0, %v508
  %v510 = vrot.slane %v505, %v509
  %v512 = vmul.f32 %v454, %v510
  %v513 = vmul.f32 %v455, %v510
  %v514 = vmul.f32 %v456, %v510
  %v515 = vmul.f32 %v457, %v510
  %v516 = vmul.f32 %v458, %v510
  %v517 = vmul.f32 %v459, %v510
  %v518 = vmul.f32 %v460, %v510
  %v519 = vmul.f32 %v461, %v510
  %v520 = vmul.f32 %v477, %v505
  %v521 = vsub.f32 %v463, %v520
  %v523 = vlaneseq
  %v524 = vshrl.u32 %v523, 7
  %v525 = vsub.s32 0, %v524
  %v526 = vrot.slane %v521, %v525
  %v528 = vadd.f32 %v512, %v526
  %v529 = vadd.f32 %v513, %v526
  %v530 = vadd.f32 %v514, %v526
  %v531 = vadd.f32 %v515, %v526
  %v532 = vadd.f32 %v516, %v526
  %v533 = vadd.f32 %v517, %v526
  %v534 = vadd.f32 %v518, %v526
  %v535 = vadd.f32 %v519, %v526
  %v536 = vld [vmem:[%s11] sm:$0xff]
  %v537 = vld [vmem:[%s11 + $0x8] sm:$0xff]
  %v538 = vld [vmem:[%s11 + $0x10] sm:$0xff]
  %v539 = vld [vmem:[%s11 + $0x18] sm:$0xff]
  %v540 = vld [vmem:[%s11 + $0x20] sm:$0xff]
  %v541 = vld [vmem:[%s11 + $0x28] sm:$0xff]
  %v542 = vld [vmem:[%s11 + $0x30] sm:$0xff]
  %v543 = vld [vmem:[%s11 + $0x38] sm:$0xff]
  %v544 = vld [vmem:[%s11 + $0x40] sm:$0xff]
  %v545 = vld [vmem:[%s11 + $0x48] sm:$0xff]
  %v546 = vld [vmem:[%s11 + $0x50] sm:$0xff]
  %v547 = vld [vmem:[%s11 + $0x58] sm:$0xff]
  %v548 = vld [vmem:[%s11 + $0x60] sm:$0xff]
  %v549 = vld [vmem:[%s11 + $0x68] sm:$0xff]
  %v550 = vld [vmem:[%s11 + $0x70] sm:$0xff]
  %v551 = vld [vmem:[%s11 + $0x78] sm:$0xff]
  %v552 = vld [vmem:[%s12] sm:$0x1]
  %v553 = vpack.c.bf16 %v529, %v528
  %v554 = vpack.c.bf16 %v531, %v530
  %v555 = vpack.c.bf16 %v533, %v532
  %v556 = vpack.c.bf16 %v535, %v534
  %v557 = vpack.c.bf16 %v537, %v536
  %v558 = vpack.c.bf16 %v539, %v538
  %v559 = vpack.c.bf16 %v541, %v540
  %v560 = vpack.c.bf16 %v543, %v542
  %v561 = vpack.c.bf16 %v545, %v544
  %v562 = vpack.c.bf16 %v547, %v546
  %v563 = vpack.c.bf16 %v549, %v548
  %v564 = vpack.c.bf16 %v551, %v550
  %v566 = vlaneseq
  %v567 = vshrl.u32 %v566, 7
  %v568 = vsub.s32 0, %v567
  %v569 = vrot.slane %v552, %v568
  %571 = vmatprep.subr.bf16.mxu0 0
  %572 = vmatpush1.bf16.msra.mxu0 %v564
  %573 = vmatprep.subr.bf16.mxu0 0
  %574 = vmatpush1.bf16.msra.mxu0 %v563
  %575 = vmatprep.subr.bf16.mxu0 0
  %576 = vmatpush1.bf16.msra.mxu0 %v562
  %577 = vmatprep.subr.bf16.mxu0 0
  %578 = vmatpush1.bf16.msra.mxu0 %v561
  %579 = vmatprep.subr.bf16.mxu0 0
  %580 = vmatpush1.bf16.msra.mxu0 %v560
  %581 = vmatprep.subr.bf16.mxu0 0
  %582 = vmatpush1.bf16.msra.mxu0 %v559
  %583 = vmatprep.subr.bf16.mxu0 0
  %584 = vmatpush1.bf16.msra.mxu0 %v558
  %585 = vmatprep.subr.bf16.mxu0 0
  %586 = vmatpush1.bf16.msra.mxu0 %v557
  %587 = vmatprep.subr.bf16.mxu0 0
  %588 = vmatpush2.bf16.msra.mxu0 0
  %589 = vmatprep.subr.bf16.mxu0 0
  %590 = vmatpush2.bf16.msra.mxu0 0
  %591 = vmatprep.subr.bf16.mxu0 0
  %592 = vmatpush2.bf16.msra.mxu0 0
  %593 = vmatprep.subr.bf16.mxu0 0
  %594 = vmatpush2.bf16.msra.mxu0 0
  %595 = vmatprep.subr.bf16.mxu0 0
  %596 = vmatpush2.bf16.msra.mxu0 0
  %597 = vmatprep.subr.bf16.mxu0 0
  %598 = vmatpush2.bf16.msra.mxu0 0
  %599 = vmatprep.subr.bf16.mxu0 0
  %600 = vmatpush2.bf16.msra.mxu0 0
  %601 = vmatprep.subr.bf16.mxu0 0
  %602 = vmatpush2.bf16.msra.mxu0 0
  %603 = vmatprep.mubr.bf16.mxu0 0
  %604 = vmatmul.mubr.bf16.gmra.mxu0 %v553
  %v605 = vpop.f32.mrf.mxu0
  %v606 = vadd.f32 %v569, %v605
  %v607 = vpop.f32.mrf.mxu0
  %v608 = vpop.f32.mrf.mxu0
  %v609 = vadd.f32 %v569, %v608
  %v610 = vpop.f32.mrf.mxu0
  %611 = vmatprep.mubr.bf16.mxu0 0
  %612 = vmatmul.mubr.bf16.gmra.mxu0 %v554
  %v613 = vpop.f32.mrf.mxu0
  %v614 = vadd.f32 %v569, %v613
  %v615 = vpop.f32.mrf.mxu0
  %v616 = vpop.f32.mrf.mxu0
  %v617 = vadd.f32 %v569, %v616
  %v618 = vpop.f32.mrf.mxu0
  %619 = vmatprep.mubr.bf16.mxu0 0
  %620 = vmatmul.mubr.bf16.gmra.mxu0 %v555
  %v621 = vpop.f32.mrf.mxu0
  %v622 = vadd.f32 %v569, %v621
  %v623 = vpop.f32.mrf.mxu0
  %v624 = vpop.f32.mrf.mxu0
  %v625 = vadd.f32 %v569, %v624
  %v626 = vpop.f32.mrf.mxu0
  %627 = vmatprep.mubr.bf16.mxu0 0
  %628 = vmatmul.mubr.bf16.gmra.mxu0 %v556
  %v629 = vpop.f32.mrf.mxu0
  %v630 = vadd.f32 %v569, %v629
  %v631 = vpop.f32.mrf.mxu0
  %v632 = vpop.f32.mrf.mxu0
  %v633 = vadd.f32 %v569, %v632
  %v634 = vpop.f32.mrf.mxu0
  %635 = vdwg.mxu0
  %vm636 = vcmp.ge.f32.partialorder %v606, 0.0
  %vm637 = vcmp.ge.f32.partialorder %v609, 0.0
  %vm638 = vcmp.ge.f32.partialorder %v614, 0.0
  %vm639 = vcmp.ge.f32.partialorder %v617, 0.0
  %vm640 = vcmp.ge.f32.partialorder %v622, 0.0
  %vm641 = vcmp.ge.f32.partialorder %v625, 0.0
  %vm642 = vcmp.ge.f32.partialorder %v630, 0.0
  %vm643 = vcmp.ge.f32.partialorder %v633, 0.0
  %v644 = vmul.f32 %v606, 0.0
  %v645 = vmul.f32 %v609, 0.0
  %v646 = vmul.f32 %v614, 0.0
  %v647 = vmul.f32 %v617, 0.0
  %v648 = vmul.f32 %v622, 0.0
  %v649 = vmul.f32 %v625, 0.0
  %v650 = vmul.f32 %v630, 0.0
  %v651 = vmul.f32 %v633, 0.0
  %v652 = vsel %vm636, %v606, %v644
  %v653 = vsel %vm637, %v609, %v645
  %v654 = vsel %vm638, %v614, %v646
  %v655 = vsel %vm639, %v617, %v647
  %v656 = vsel %vm640, %v622, %v648
  %v657 = vsel %vm641, %v625, %v649
  %v658 = vsel %vm642, %v630, %v650
  %v659 = vsel %vm643, %v633, %v651
  %v660 = vld [vmem:[%s13] sm:$0x1]
  %v661 = vld [vmem:[%s14] sm:$0x1]
  %v662 = vadd.f32 %v652, %v653
  %v663 = vadd.f32 %v662, %v654
  %v664 = vadd.f32 %v663, %v655
  %v665 = vadd.f32 %v664, %v656
  %v666 = vadd.f32 %v665, %v657
  %v667 = vadd.f32 %v666, %v658
  %v668 = vadd.f32 %v667, %v659
  %v669 = vrot.slane %v668, 4
  %v670 = vadd.f32 %v668, %v669
  %v671 = vrot.slane %v670, 2
  %v672 = vadd.f32 %v670, %v671
  %v673 = vrot.slane %v672, 1
  %v674 = vadd.f32 %v672, %v673
  %v675 = vmul.f32 %v674, %v89
  %v676 = vmul.f32 %v652, %v652
  %v677 = vmul.f32 %v653, %v653
  %v678 = vmul.f32 %v654, %v654
  %v679 = vmul.f32 %v655, %v655
  %v680 = vmul.f32 %v656, %v656
  %v681 = vmul.f32 %v657, %v657
  %v682 = vmul.f32 %v658, %v658
  %v683 = vmul.f32 %v659, %v659
  %v684 = vadd.f32 %v676, %v677
  %v685 = vadd.f32 %v684, %v678
  %v686 = vadd.f32 %v685, %v679
  %v687 = vadd.f32 %v686, %v680
  %v688 = vadd.f32 %v687, %v681
  %v689 = vadd.f32 %v688, %v682
  %v690 = vadd.f32 %v689, %v683
  %v691 = vrot.slane %v690, 4
  %v692 = vadd.f32 %v690, %v691
  %v693 = vrot.slane %v692, 2
  %v694 = vadd.f32 %v692, %v693
  %v695 = vrot.slane %v694, 1
  %v696 = vadd.f32 %v694, %v695
  %v697 = vmul.f32 %v696, %v89
  %v698 = vmul.f32 %v675, %v675
  %v699 = vsub.f32 %v697, %v698
  %v700 = vmax.f32 %v699, 0.0
  %v701 = vadd.f32 %v700, 1e-05
  %v702 = vrsqrt.pop %v701
  %v703 = vmul.f32 %v660, %v702
  %v705 = vlaneseq
  %v706 = vshrl.u32 %v705, 7
  %v707 = vsub.s32 0, %v706
  %v708 = vrot.slane %v703, %v707
  %v710 = vmul.f32 %v652, %v708
  %v711 = vmul.f32 %v653, %v708
  %v712 = vmul.f32 %v654, %v708
  %v713 = vmul.f32 %v655, %v708
  %v714 = vmul.f32 %v656, %v708
  %v715 = vmul.f32 %v657, %v708
  %v716 = vmul.f32 %v658, %v708
  %v717 = vmul.f32 %v659, %v708
  %v718 = vmul.f32 %v675, %v703
  %v719 = vsub.f32 %v661, %v718
  %v721 = vlaneseq
  %v722 = vshrl.u32 %v721, 7
  %v723 = vsub.s32 0, %v722
  %v724 = vrot.slane %v719, %v723
  %v726 = vadd.f32 %v710, %v724
  %v727 = vadd.f32 %v711, %v724
  %v728 = vadd.f32 %v712, %v724
  %v729 = vadd.f32 %v713, %v724
  %v730 = vadd.f32 %v714, %v724
  %v731 = vadd.f32 %v715, %v724
  %v732 = vadd.f32 %v716, %v724
  %v733 = vadd.f32 %v717, %v724
  %v734 = vld [vmem:[%s15] sm:$0xff]
  %v735 = vld [vmem:[%s15 + $0x8] sm:$0xff]
  %v736 = vld [vmem:[%s15 + $0x10] sm:$0xff]
  %v737 = vld [vmem:[%s15 + $0x18] sm:$0xff]
  %v738 = vld [vmem:[%s15 + $0x20] sm:$0xff]
  %v739 = vld [vmem:[%s15 + $0x28] sm:$0xff]
  %v740 = vld [vmem:[%s15 + $0x30] sm:$0xff]
  %v741 = vld [vmem:[%s15 + $0x38] sm:$0xff]
  %v742 = vld [vmem:[%s15 + $0x40] sm:$0xff]
  %v743 = vld [vmem:[%s15 + $0x48] sm:$0xff]
  %v744 = vld [vmem:[%s15 + $0x50] sm:$0xff]
  %v745 = vld [vmem:[%s15 + $0x58] sm:$0xff]
  %v746 = vld [vmem:[%s15 + $0x60] sm:$0xff]
  %v747 = vld [vmem:[%s15 + $0x68] sm:$0xff]
  %v748 = vld [vmem:[%s15 + $0x70] sm:$0xff]
  %v749 = vld [vmem:[%s15 + $0x78] sm:$0xff]
  %v750 = vld [vmem:[%s16] sm:$0x1]
  %v751 = vpack.c.bf16 %v727, %v726
  %v752 = vpack.c.bf16 %v729, %v728
  %v753 = vpack.c.bf16 %v731, %v730
  %v754 = vpack.c.bf16 %v733, %v732
  %v755 = vpack.c.bf16 %v735, %v734
  %v756 = vpack.c.bf16 %v737, %v736
  %v757 = vpack.c.bf16 %v739, %v738
  %v758 = vpack.c.bf16 %v741, %v740
  %v759 = vpack.c.bf16 %v743, %v742
  %v760 = vpack.c.bf16 %v745, %v744
  %v761 = vpack.c.bf16 %v747, %v746
  %v762 = vpack.c.bf16 %v749, %v748
  %v764 = vlaneseq
  %v765 = vshrl.u32 %v764, 7
  %v766 = vsub.s32 0, %v765
  %v767 = vrot.slane %v750, %v766
  %769 = vmatprep.subr.bf16.mxu0 0
  %770 = vmatpush1.bf16.msra.mxu0 %v762
  %771 = vmatprep.subr.bf16.mxu0 0
  %772 = vmatpush1.bf16.msra.mxu0 %v761
  %773 = vmatprep.subr.bf16.mxu0 0
  %774 = vmatpush1.bf16.msra.mxu0 %v760
  %775 = vmatprep.subr.bf16.mxu0 0
  %776 = vmatpush1.bf16.msra.mxu0 %v759
  %777 = vmatprep.subr.bf16.mxu0 0
  %778 = vmatpush1.bf16.msra.mxu0 %v758
  %779 = vmatprep.subr.bf16.mxu0 0
  %780 = vmatpush1.bf16.msra.mxu0 %v757
  %781 = vmatprep.subr.bf16.mxu0 0
  %782 = vmatpush1.bf16.msra.mxu0 %v756
  %783 = vmatprep.subr.bf16.mxu0 0
  %784 = vmatpush1.bf16.msra.mxu0 %v755
  %785 = vmatprep.subr.bf16.mxu0 0
  %786 = vmatpush2.bf16.msra.mxu0 0
  %787 = vmatprep.subr.bf16.mxu0 0
  %788 = vmatpush2.bf16.msra.mxu0 0
  %789 = vmatprep.subr.bf16.mxu0 0
  %790 = vmatpush2.bf16.msra.mxu0 0
  %791 = vmatprep.subr.bf16.mxu0 0
  %792 = vmatpush2.bf16.msra.mxu0 0
  %793 = vmatprep.subr.bf16.mxu0 0
  %794 = vmatpush2.bf16.msra.mxu0 0
  %795 = vmatprep.subr.bf16.mxu0 0
  %796 = vmatpush2.bf16.msra.mxu0 0
  %797 = vmatprep.subr.bf16.mxu0 0
  %798 = vmatpush2.bf16.msra.mxu0 0
  %799 = vmatprep.subr.bf16.mxu0 0
  %800 = vmatpush2.bf16.msra.mxu0 0
  %801 = vmatprep.mubr.bf16.mxu0 0
  %802 = vmatmul.mubr.bf16.gmra.mxu0 %v751
  %v803 = vpop.f32.mrf.mxu0
  %v804 = vadd.f32 %v767, %v803
  %v805 = vpop.f32.mrf.mxu0
  %v806 = vpop.f32.mrf.mxu0
  %v807 = vadd.f32 %v767, %v806
  %v808 = vpop.f32.mrf.mxu0
  %809 = vmatprep.mubr.bf16.mxu0 0
  %810 = vmatmul.mubr.bf16.gmra.mxu0 %v752
  %v811 = vpop.f32.mrf.mxu0
  %v812 = vadd.f32 %v767, %v811
  %v813 = vpop.f32.mrf.mxu0
  %v814 = vpop.f32.mrf.mxu0
  %v815 = vadd.f32 %v767, %v814
  %v816 = vpop.f32.mrf.mxu0
  %817 = vmatprep.mubr.bf16.mxu0 0
  %818 = vmatmul.mubr.bf16.gmra.mxu0 %v753
  %v819 = vpop.f32.mrf.mxu0
  %v820 = vadd.f32 %v767, %v819
  %v821 = vpop.f32.mrf.mxu0
  %v822 = vpop.f32.mrf.mxu0
  %v823 = vadd.f32 %v767, %v822
  %v824 = vpop.f32.mrf.mxu0
  %825 = vmatprep.mubr.bf16.mxu0 0
  %826 = vmatmul.mubr.bf16.gmra.mxu0 %v754
  %v827 = vpop.f32.mrf.mxu0
  %v828 = vadd.f32 %v767, %v827
  %v829 = vpop.f32.mrf.mxu0
  %v830 = vpop.f32.mrf.mxu0
  %v831 = vadd.f32 %v767, %v830
  %v832 = vpop.f32.mrf.mxu0
  %833 = vdwg.mxu0
  %834 = vst [vmem:[%s17] sm:$0xff] %v804
  %835 = vst [vmem:[%s17 + $0x8] sm:$0xff] %v807
  %836 = vst [vmem:[%s17 + $0x10] sm:$0xff] %v812
  %837 = vst [vmem:[%s17 + $0x18] sm:$0xff] %v815
  %838 = vst [vmem:[%s17 + $0x20] sm:$0xff] %v820
  %839 = vst [vmem:[%s17 + $0x28] sm:$0xff] %v823
  %840 = vst [vmem:[%s17 + $0x30] sm:$0xff] %v828
  %841 = vst [vmem:[%s17 + $0x38] sm:$0xff] %v831
  // Predicated region
  $region70: #{nu_model_forward.5} parent=0 // pred_check
    _
  $region71: #{nu_model_forward.5} parent=0 // pred_check_branch
    %843 = sbr.rel (0) target = $region73
  $region72: #{nu_model_forward.5} parent=0 // pred_region
    _
  $region73: #{nu_model_forward.5} parent=0 // pred_fallthru
    _
  // Predicated region
  $region74: #{nu_model_forward.5} parent=0 // pred_check
    _
  $region75: #{nu_model_forward.5} parent=0 // pred_check_branch
    %845 = sbr.rel (0) target = $region77
  $region76: #{nu_model_forward.5} parent=0 // pred_region
    _
  $region77: #{nu_model_forward.5} parent=0 // pred_fallthru
    _

// kernel: nu_model_forward.4
$region0: #{nu_model_forward.4}
  #allocation0 [shape = 'u32[]', space=smem, size = 0x4, offset = 0x4, fixed_abs, tag = 'smem constant byte address 0x4 - core index']
  #allocation1 [shape = 'u32[144,128]{1,0:T(1,128)}', space=vmem, size = 0x12000, scoped, tag = 'internal scratch']
  %s0 = inlined_call_operand.vmem [shape: f32[64,9], index: 0, kind: input, shape index: {}]
  %s1 = inlined_call_operand.vmem [shape: f32[64,9], index: 1, kind: input, shape index: {}]
  %s2 = inlined_call_operand.vmem [shape: f32[64,12], index: 2, kind: input, shape index: {}]
  %s3 = inlined_call_operand.vmem [shape: f32[1,9], index: 3, kind: input, shape index: {}]
  %s4 = inlined_call_operand.vmem [shape: f32[1,9], index: 4, kind: input, shape index: {}]
  %s5 = inlined_call_operand.vmem [shape: f32[1,12], index: 5, kind: input, shape index: {}]
  %s6 = inlined_call_operand.vmem [shape: f32[1,9], index: 6, kind: input, shape index: {}]
  %s7 = inlined_call_operand.vmem [shape: f32[1,9], index: 7, kind: input, shape index: {}]
  %s8 = inlined_call_operand.vmem [shape: f32[1,12], index: 8, kind: input, shape index: {}]
  %s9 = inlined_call_operand.vmem [shape: f32[9,128], index: 9, kind: input, shape index: {}]
  %s10 = inlined_call_operand.vmem [shape: f32[9,128], index: 10, kind: input, shape index: {}]
  %s11 = inlined_call_operand.vmem [shape: f32[12,128], index: 11, kind: input, shape index: {}]
  %s12 = inlined_call_operand.vmem [shape: f32[1,128], index: 12, kind: input, shape index: {}]
  %s13 = inlined_call_operand.vmem [shape: f32[1,128], index: 13, kind: input, shape index: {}]
  %s14 = inlined_call_operand.vmem [shape: f32[1,128], index: 14, kind: input, shape index: {}]
  %s15 = inlined_call_operand.vmem [shape: f32[128,128], index: 15, kind: input, shape index: {}]
  %s16 = inlined_call_operand.vmem [shape: f32[1,128], index: 16, kind: input, shape index: {}]
  %s17 = inlined_call_operand.vmem [shape: f32[1,128], index: 17, kind: input, shape index: {}]
  %s18 = inlined_call_operand.vmem [shape: f32[1,128], index: 18, kind: input, shape index: {}]
  %s19 = inlined_call_operand.vmem [shape: f32[128,128], index: 19, kind: input, shape index: {}]
  %s20 = inlined_call_operand.vmem [shape: f32[1,128], index: 20, kind: input, shape index: {}]
  %s21 = inlined_call_operand.vmem [shape: f32[64,128], index: 21, kind: output, shape index: {}]
  %s22 = sld [smem:[#allocation0]]
  $region94: #{nu_model_forward.4} parent=0
    _
  %s24 = ssub.s32 1, %s22
  %s25 = scalar_select 0, %s24, %s22
  // Predicated region
  $region2: #{nu_model_forward.4} parent=0 // pred_check
    _
  $region3: #{nu_model_forward.4} parent=0 // pred_check_branch
    %27 = sbr.rel (0) target = $region5
  $region4: #{nu_model_forward.4} parent=0 // pred_region
    _
  $region5: #{nu_model_forward.4} parent=0 // pred_fallthru
    _
  // Predicated region
  $region6: #{nu_model_forward.4} parent=0 // pred_check
    _
  $region7: #{nu_model_forward.4} parent=0 // pred_check_branch
    %29 = sbr.rel (0) target = $region9
  $region8: #{nu_model_forward.4} parent=0 // pred_region
    _
  $region9: #{nu_model_forward.4} parent=0 // pred_fallthru
    _
  // Predicated region
  $region10: #{nu_model_forward.4} parent=0 // pred_check
    _
  $region11: #{nu_model_forward.4} parent=0 // pred_check_branch
    %31 = sbr.rel (0) target = $region13
  $region12: #{nu_model_forward.4} parent=0 // pred_region
    _
  $region13: #{nu_model_forward.4} parent=0 // pred_fallthru
    _
  // Predicated region
  $region14: #{nu_model_forward.4} parent=0 // pred_check
    _
  $region15: #{nu_model_forward.4} parent=0 // pred_check_branch
    %33 = sbr.rel (0) target = $region17
  $region16: #{nu_model_forward.4} parent=0 // pred_region
    _
  $region17: #{nu_model_forward.4} parent=0 // pred_fallthru
    _
  // Predicated region
  $region18: #{nu_model_forward.4} parent=0 // pred_check
    _
  $region19: #{nu_model_forward.4} parent=0 // pred_check_branch
    %35 = sbr.rel (0) target = $region21
  $region20: #{nu_model_forward.4} parent=0 // pred_region
    _
  $region21: #{nu_model_forward.4} parent=0 // pred_fallthru
    _
  // Predicated region
  $region22: #{nu_model_forward.4} parent=0 // pred_check
    _
  $region23: #{nu_model_forward.4} parent=0 // pred_check_branch
    %37 = sbr.rel (0) target = $region25
  $region24: #{nu_model_forward.4} parent=0 // pred_region
    _
  $region25: #{nu_model_forward.4} parent=0 // pred_fallthru
    _
  // Predicated region
  $region26: #{nu_model_forward.4} parent=0 // pred_check
    _
  $region27: #{nu_model_forward.4} parent=0 // pred_check_branch
    %39 = sbr.rel (0) target = $region29
  $region28: #{nu_model_forward.4} parent=0 // pred_region
    _
  $region29: #{nu_model_forward.4} parent=0 // pred_fallthru
    _
  // Predicated region
  $region30: #{nu_model_forward.4} parent=0 // pred_check
    _
  $region31: #{nu_model_forward.4} parent=0 // pred_check_branch
    %41 = sbr.rel (0) target = $region33
  $region32: #{nu_model_forward.4} parent=0 // pred_region
    _
  $region33: #{nu_model_forward.4} parent=0 // pred_fallthru
    _
  // Predicated region
  $region34: #{nu_model_forward.4} parent=0 // pred_check
    _
  $region35: #{nu_model_forward.4} parent=0 // pred_check_branch
    %43 = sbr.rel (0) target = $region37
  $region36: #{nu_model_forward.4} parent=0 // pred_region
    _
  $region37: #{nu_model_forward.4} parent=0 // pred_fallthru
    _
  // Predicated region
  $region38: #{nu_model_forward.4} parent=0 // pred_check
    _
  $region39: #{nu_model_forward.4} parent=0 // pred_check_branch
    %45 = sbr.rel (0) target = $region41
  $region40: #{nu_model_forward.4} parent=0 // pred_region
    _
  $region41: #{nu_model_forward.4} parent=0 // pred_fallthru
    _
  // Predicated region
  $region42: #{nu_model_forward.4} parent=0 // pred_check
    _
  $region43: #{nu_model_forward.4} parent=0 // pred_check_branch
    %47 = sbr.rel (0) target = $region45
  $region44: #{nu_model_forward.4} parent=0 // pred_region
    _
  $region45: #{nu_model_forward.4} parent=0 // pred_fallthru
    _
  // Predicated region
  $region46: #{nu_model_forward.4} parent=0 // pred_check
    _
  $region47: #{nu_model_forward.4} parent=0 // pred_check_branch
    %49 = sbr.rel (0) target = $region49
  $region48: #{nu_model_forward.4} parent=0 // pred_region
    _
  $region49: #{nu_model_forward.4} parent=0 // pred_fallthru
    _
  // Predicated region
  $region50: #{nu_model_forward.4} parent=0 // pred_check
    _
  $region51: #{nu_model_forward.4} parent=0 // pred_check_branch
    %51 = sbr.rel (0) target = $region53
  $region52: #{nu_model_forward.4} parent=0 // pred_region
    _
  $region53: #{nu_model_forward.4} parent=0 // pred_fallthru
    _
  // Predicated region
  $region54: #{nu_model_forward.4} parent=0 // pred_check
    _
  $region55: #{nu_model_forward.4} parent=0 // pred_check_branch
    %53 = sbr.rel (0) target = $region57
  $region56: #{nu_model_forward.4} parent=0 // pred_region
    _
  $region57: #{nu_model_forward.4} parent=0 // pred_fallthru
    _
  // Predicated region
  $region58: #{nu_model_forward.4} parent=0 // pred_check
    _
  $region59: #{nu_model_forward.4} parent=0 // pred_check_branch
    %55 = sbr.rel (0) target = $region61
  $region60: #{nu_model_forward.4} parent=0 // pred_region
    _
  $region61: #{nu_model_forward.4} parent=0 // pred_fallthru
    _
  // Predicated region
  $region62: #{nu_model_forward.4} parent=0 // pred_check
    _
  $region63: #{nu_model_forward.4} parent=0 // pred_check_branch
    %57 = sbr.rel (0) target = $region65
  $region64: #{nu_model_forward.4} parent=0 // pred_region
    _
  $region65: #{nu_model_forward.4} parent=0 // pred_fallthru
    _
  // Predicated region
  $region66: #{nu_model_forward.4} parent=0 // pred_check
    _
  $region67: #{nu_model_forward.4} parent=0 // pred_check_branch
    %59 = sbr.rel (0) target = $region69
  $region68: #{nu_model_forward.4} parent=0 // pred_region
    _
  $region69: #{nu_model_forward.4} parent=0 // pred_fallthru
    _
  // Predicated region
  $region70: #{nu_model_forward.4} parent=0 // pred_check
    _
  $region71: #{nu_model_forward.4} parent=0 // pred_check_branch
    %61 = sbr.rel (0) target = $region73
  $region72: #{nu_model_forward.4} parent=0 // pred_region
    _
  $region73: #{nu_model_forward.4} parent=0 // pred_fallthru
    _
  // Predicated region
  $region74: #{nu_model_forward.4} parent=0 // pred_check
    _
  $region75: #{nu_model_forward.4} parent=0 // pred_check_branch
    %63 = sbr.rel (0) target = $region77
  $region76: #{nu_model_forward.4} parent=0 // pred_region
    _
  $region77: #{nu_model_forward.4} parent=0 // pred_fallthru
    _
  // Predicated region
  $region78: #{nu_model_forward.4} parent=0 // pred_check
    _
  $region79: #{nu_model_forward.4} parent=0 // pred_check_branch
    %65 = sbr.rel (0) target = $region81
  $region80: #{nu_model_forward.4} parent=0 // pred_region
    _
  $region81: #{nu_model_forward.4} parent=0 // pred_fallthru
    _
  // Predicated region
  $region82: #{nu_model_forward.4} parent=0 // pred_check
    _
  $region83: #{nu_model_forward.4} parent=0 // pred_check_branch
    %67 = sbr.rel (0) target = $region85
  $region84: #{nu_model_forward.4} parent=0 // pred_region
    _
  $region85: #{nu_model_forward.4} parent=0 // pred_fallthru
    _
  %v69 = vld [vmem:[%s0] sm:$0xff]
  %v70 = vld [vmem:[%s0 + $0x8] sm:$0xff]
  %v71 = vld [vmem:[%s0 + $0x10] sm:$0xff]
  %v72 = vld [vmem:[%s0 + $0x18] sm:$0xff]
  %v73 = vld [vmem:[%s0 + $0x20] sm:$0xff]
  %v74 = vld [vmem:[%s0 + $0x28] sm:$0xff]
  %v75 = vld [vmem:[%s0 + $0x30] sm:$0xff]
  %v76 = vld [vmem:[%s0 + $0x38] sm:$0xff]
  %v77 = vld [vmem:[%s3] sm:$0x1]
  %v78 = vld [vmem:[%s6] sm:$0x1]
  %vm79 = vcmask 72704
  %v80 = vsel %vm79, %v69, 0.0
  %v81 = vsel %vm79, %v70, 0.0
  %v82 = vadd.f32 %v80, %v81
  %v83 = vsel %vm79, %v71, 0.0
  %v84 = vadd.f32 %v82, %v83
  %v85 = vsel %vm79, %v72, 0.0
  %v86 = vadd.f32 %v84, %v85
  %v87 = vsel %vm79, %v73, 0.0
  %v88 = vadd.f32 %v86, %v87
  %v89 = vsel %vm79, %v74, 0.0
  %v90 = vadd.f32 %v88, %v89
  %v91 = vsel %vm79, %v75, 0.0
  %v92 = vadd.f32 %v90, %v91
  %v93 = vsel %vm79, %v76, 0.0
  %v94 = vadd.f32 %v92, %v93
  %v95 = vrot.slane %v94, 4
  %v96 = vadd.f32 %v94, %v95
  %v97 = vrot.slane %v96, 2
  %v98 = vadd.f32 %v96, %v97
  %v99 = vrot.slane %v98, 1
  %v100 = vadd.f32 %v98, %v99
  %v101 = vrcp.pop 64.0
  %v102 = vmul.f32 %v100, %v101
  %v103 = vmul.f32 %v69, %v69
  %v104 = vmul.f32 %v70, %v70
  %v105 = vmul.f32 %v71, %v71
  %v106 = vmul.f32 %v72, %v72
  %v107 = vmul.f32 %v73, %v73
  %v108 = vmul.f32 %v74, %v74
  %v109 = vmul.f32 %v75, %v75
  %v110 = vmul.f32 %v76, %v76
  %v111 = vsel %vm79, %v103, 0.0
  %v112 = vsel %vm79, %v104, 0.0
  %v113 = vadd.f32 %v111, %v112
  %v114 = vsel %vm79, %v105, 0.0
  %v115 = vadd.f32 %v113, %v114
  %v116 = vsel %vm79, %v106, 0.0
  %v117 = vadd.f32 %v115, %v116
  %v118 = vsel %vm79, %v107, 0.0
  %v119 = vadd.f32 %v117, %v118
  %v120 = vsel %vm79, %v108, 0.0
  %v121 = vadd.f32 %v119, %v120
  %v122 = vsel %vm79, %v109, 0.0
  %v123 = vadd.f32 %v121, %v122
  %v124 = vsel %vm79, %v110, 0.0
  %v125 = vadd.f32 %v123, %v124
  %v126 = vrot.slane %v125, 4
  %v127 = vadd.f32 %v125, %v126
  %v128 = vrot.slane %v127, 2
  %v129 = vadd.f32 %v127, %v128
  %v130 = vrot.slane %v129, 1
  %v131 = vadd.f32 %v129, %v130
  %v132 = vmul.f32 %v131, %v101
  %v133 = vmul.f32 %v102, %v102
  %v134 = vsub.f32 %v132, %v133
  %v135 = vmax.f32 %v134, 0.0
  %v136 = vadd.f32 %v135, 1e-05
  %v137 = vrsqrt.pop %v136
  %v138 = vmul.f32 %v77, %v137
  %v140 = vlaneseq
  %v141 = vshrl.u32 %v140, 7
  %v142 = vsub.s32 0, %v141
  %v143 = vrot.slane %v138, %v142
  %v145 = vmul.f32 %v69, %v143
  %v146 = vmul.f32 %v70, %v143
  %v147 = vmul.f32 %v71, %v143
  %v148 = vmul.f32 %v72, %v143
  %v149 = vmul.f32 %v73, %v143
  %v150 = vmul.f32 %v74, %v143
  %v151 = vmul.f32 %v75, %v143
  %v152 = vmul.f32 %v76, %v143
  %v153 = vmul.f32 %v102, %v138
  %v154 = vsub.f32 %v78, %v153
  %v156 = vlaneseq
  %v157 = vshrl.u32 %v156, 7
  %v158 = vsub.s32 0, %v157
  %v159 = vrot.slane %v154, %v158
  %v161 = vadd.f32 %v145, %v159
  %v162 = vadd.f32 %v146, %v159
  %v163 = vadd.f32 %v147, %v159
  %v164 = vadd.f32 %v148, %v159
  %v165 = vadd.f32 %v149, %v159
  %v166 = vadd.f32 %v150, %v159
  %v167 = vadd.f32 %v151, %v159
  %v168 = vadd.f32 %v152, %v159
  %v169 = vpack.c.bf16 %v162, %v161
  %v170 = vpack.c.bf16 %v164, %v163
  %v171 = vpack.c.bf16 %v166, %v165
  %v172 = vpack.c.bf16 %v168, %v167
  %v173 = vld [vmem:[%s9] sm:$0xff]
  %v174 = vld [vmem:[%s9 + $0x8] sm:$0x1]
  %v175 = vpack.c.bf16 %v174, %v173
  %v176 = vld [vmem:[%s1] sm:$0xff]
  %v177 = vld [vmem:[%s1 + $0x8] sm:$0xff]
  %v178 = vld [vmem:[%s1 + $0x10] sm:$0xff]
  %v179 = vld [vmem:[%s1 + $0x18] sm:$0xff]
  %v180 = vld [vmem:[%s1 + $0x20] sm:$0xff]
  %v181 = vld [vmem:[%s1 + $0x28] sm:$0xff]
  %v182 = vld [vmem:[%s1 + $0x30] sm:$0xff]
  %v183 = vld [vmem:[%s1 + $0x38] sm:$0xff]
  %v184 = vld [vmem:[%s4] sm:$0x1]
  %v185 = vld [vmem:[%s7] sm:$0x1]
  %v186 = vsel %vm79, %v176, 0.0
  %v187 = vsel %vm79, %v177, 0.0
  %v188 = vadd.f32 %v186, %v187
  %v189 = vsel %vm79, %v178, 0.0
  %v190 = vadd.f32 %v188, %v189
  %v191 = vsel %vm79, %v179, 0.0
  %v192 = vadd.f32 %v190, %v191
  %v193 = vsel %vm79, %v180, 0.0
  %v194 = vadd.f32 %v192, %v193
  %v195 = vsel %vm79, %v181, 0.0
  %v196 = vadd.f32 %v194, %v195
  %v197 = vsel %vm79, %v182, 0.0
  %v198 = vadd.f32 %v196, %v197
  %v199 = vsel %vm79, %v183, 0.0
  %v200 = vadd.f32 %v198, %v199
  %v201 = vrot.slane %v200, 4
  %v202 = vadd.f32 %v200, %v201
  %v203 = vrot.slane %v202, 2
  %v204 = vadd.f32 %v202, %v203
  %v205 = vrot.slane %v204, 1
  %v206 = vadd.f32 %v204, %v205
  %v207 = vmul.f32 %v206, %v101
  %v208 = vmul.f32 %v176, %v176
  %v209 = vmul.f32 %v177, %v177
  %v210 = vmul.f32 %v178, %v178
  %v211 = vmul.f32 %v179, %v179
  %v212 = vmul.f32 %v180, %v180
  %v213 = vmul.f32 %v181, %v181
  %v214 = vmul.f32 %v182, %v182
  %v215 = vmul.f32 %v183, %v183
  %v216 = vsel %vm79, %v208, 0.0
  %v217 = vsel %vm79, %v209, 0.0
  %v218 = vadd.f32 %v216, %v217
  %v219 = vsel %vm79, %v210, 0.0
  %v220 = vadd.f32 %v218, %v219
  %v221 = vsel %vm79, %v211, 0.0
  %v222 = vadd.f32 %v220, %v221
  %v223 = vsel %vm79, %v212, 0.0
  %v224 = vadd.f32 %v222, %v223
  %v225 = vsel %vm79, %v213, 0.0
  %v226 = vadd.f32 %v224, %v225
  %v227 = vsel %vm79, %v214, 0.0
  %v228 = vadd.f32 %v226, %v227
  %v229 = vsel %vm79, %v215, 0.0
  %v230 = vadd.f32 %v228, %v229
  %v231 = vrot.slane %v230, 4
  %v232 = vadd.f32 %v230, %v231
  %v233 = vrot.slane %v232, 2
  %v234 = vadd.f32 %v232, %v233
  %v235 = vrot.slane %v234, 1
  %v236 = vadd.f32 %v234, %v235
  %v237 = vmul.f32 %v236, %v101
  %v238 = vmul.f32 %v207, %v207
  %v239 = vsub.f32 %v237, %v238
  %v240 = vmax.f32 %v239, 0.0
  %v241 = vadd.f32 %v240, 1e-05
  %v242 = vrsqrt.pop %v241
  %v243 = vmul.f32 %v184, %v242
  %v245 = vlaneseq
  %v246 = vshrl.u32 %v245, 7
  %v247 = vsub.s32 0, %v246
  %v248 = vrot.slane %v243, %v247
  %v250 = vmul.f32 %v176, %v248
  %v251 = vmul.f32 %v177, %v248
  %v252 = vmul.f32 %v178, %v248
  %v253 = vmul.f32 %v179, %v248
  %v254 = vmul.f32 %v180, %v248
  %v255 = vmul.f32 %v181, %v248
  %v256 = vmul.f32 %v182, %v248
  %v257 = vmul.f32 %v183, %v248
  %v258 = vmul.f32 %v207, %v243
  %v259 = vsub.f32 %v185, %v258
  %v261 = vlaneseq
  %v262 = vshrl.u32 %v261, 7
  %v263 = vsub.s32 0, %v262
  %v264 = vrot.slane %v259, %v263
  %v266 = vadd.f32 %v250, %v264
  %v267 = vadd.f32 %v251, %v264
  %v268 = vadd.f32 %v252, %v264
  %v269 = vadd.f32 %v253, %v264
  %v270 = vadd.f32 %v254, %v264
  %v271 = vadd.f32 %v255, %v264
  %v272 = vadd.f32 %v256, %v264
  %v273 = vadd.f32 %v257, %v264
  %v274 = vpack.c.bf16 %v267, %v266
  %v275 = vpack.c.bf16 %v269, %v268
  %v276 = vpack.c.bf16 %v271, %v270
  %v277 = vpack.c.bf16 %v273, %v272
  %v278 = vld [vmem:[%s10] sm:$0xff]
  %v279 = vld [vmem:[%s10 + $0x8] sm:$0x1]
  %v280 = vpack.c.bf16 %v279, %v278
  %v282 = vsel %vm79, %v274, 0
  %v285 = vsel %vm79, %v275, 0
  %v288 = vsel %vm79, %v276, 0
  %v291 = vsel %vm79, %v277, 0
  %vm293 = vcmask 1043456
  %vm294 = vcmask 1044480
  %v295 = vsel %vm293, 4294967295, 65535
  %v296 = vsel %vm294, %v295, 0
  %v298 = vand.u32 %v280, %v296
  %300 = vmatprep.subr.bf16.mxu0 0
  %301 = vmatpush1.bf16.msra.mxu0 0
  %302 = vmatprep.subr.bf16.mxu0 0
  %303 = vmatpush1.bf16.msra.mxu0 0
  %304 = vmatprep.subr.bf16.mxu0 0
  %305 = vmatpush1.bf16.msra.mxu0 0
  %306 = vmatprep.subr.bf16.mxu0 0
  %307 = vmatpush1.bf16.msra.mxu0 0
  %308 = vmatprep.subr.bf16.mxu0 0
  %309 = vmatpush1.bf16.msra.mxu0 0
  %310 = vmatprep.subr.bf16.mxu0 0
  %311 = vmatpush1.bf16.msra.mxu0 0
  %312 = vmatprep.subr.bf16.mxu0 0
  %313 = vmatpush1.bf16.msra.mxu0 0
  %314 = vmatprep.subr.bf16.mxu0 0
  %315 = vmatpush1.bf16.msra.mxu0 %v298
  %316 = vmatprep.subr.bf16.mxu0 0
  %317 = vmatpush2.bf16.msra.mxu0 0
  %318 = vmatprep.subr.bf16.mxu0 0
  %319 = vmatpush2.bf16.msra.mxu0 0
  %320 = vmatprep.subr.bf16.mxu0 0
  %321 = vmatpush2.bf16.msra.mxu0 0
  %322 = vmatprep.subr.bf16.mxu0 0
  %323 = vmatpush2.bf16.msra.mxu0 0
  %324 = vmatprep.subr.bf16.mxu0 0
  %325 = vmatpush2.bf16.msra.mxu0 0
  %326 = vmatprep.subr.bf16.mxu0 0
  %327 = vmatpush2.bf16.msra.mxu0 0
  %328 = vmatprep.subr.bf16.mxu0 0
  %329 = vmatpush2.bf16.msra.mxu0 0
  %330 = vmatprep.subr.bf16.mxu0 0
  %331 = vmatpush2.bf16.msra.mxu0 0
  %332 = vmatprep.mubr.bf16.mxu0 0
  %333 = vmatmul.mubr.bf16.gmra.mxu0 %v282
  %v334 = vpop.f32.mrf.mxu0
  %v335 = vadd.f32 0.0, %v334
  %v336 = vpop.f32.mrf.mxu0
  %v337 = vpop.f32.mrf.mxu0
  %v338 = vadd.f32 0.0, %v337
  %v339 = vpop.f32.mrf.mxu0
  %340 = vmatprep.mubr.bf16.mxu0 0
  %341 = vmatmul.mubr.bf16.gmra.mxu0 %v285
  %v342 = vpop.f32.mrf.mxu0
  %v343 = vadd.f32 0.0, %v342
  %v344 = vpop.f32.mrf.mxu0
  %v345 = vpop.f32.mrf.mxu0
  %v346 = vadd.f32 0.0, %v345
  %v347 = vpop.f32.mrf.mxu0
  %348 = vmatprep.mubr.bf16.mxu0 0
  %349 = vmatmul.mubr.bf16.gmra.mxu0 %v288
  %v350 = vpop.f32.mrf.mxu0
  %v351 = vadd.f32 0.0, %v350
  %v352 = vpop.f32.mrf.mxu0
  %v353 = vpop.f32.mrf.mxu0
  %v354 = vadd.f32 0.0, %v353
  %v355 = vpop.f32.mrf.mxu0
  %356 = vmatprep.mubr.bf16.mxu0 0
  %357 = vmatmul.mubr.bf16.gmra.mxu0 %v291
  %v358 = vpop.f32.mrf.mxu0
  %v359 = vadd.f32 0.0, %v358
  %v360 = vpop.f32.mrf.mxu0
  %v361 = vpop.f32.mrf.mxu0
  %v362 = vadd.f32 0.0, %v361
  %v363 = vpop.f32.mrf.mxu0
  %364 = vdwg.mxu0
  %v366 = vsel %vm79, %v169, 0
  %v369 = vsel %vm79, %v170, 0
  %v372 = vsel %vm79, %v171, 0
  %v375 = vsel %vm79, %v172, 0
  %v378 = vand.u32 %v175, %v296
  %380 = vmatprep.subr.bf16.mxu0 0
  %381 = vmatpush1.bf16.msra.mxu0 0
  %382 = vmatprep.subr.bf16.mxu0 0
  %383 = vmatpush1.bf16.msra.mxu0 0
  %384 = vmatprep.subr.bf16.mxu0 0
  %385 = vmatpush1.bf16.msra.mxu0 0
  %386 = vmatprep.subr.bf16.mxu0 0
  %387 = vmatpush1.bf16.msra.mxu0 0
  %388 = vmatprep.subr.bf16.mxu0 0
  %389 = vmatpush1.bf16.msra.mxu0 0
  %390 = vmatprep.subr.bf16.mxu0 0
  %391 = vmatpush1.bf16.msra.mxu0 0
  %392 = vmatprep.subr.bf16.mxu0 0
  %393 = vmatpush1.bf16.msra.mxu0 0
  %394 = vmatprep.subr.bf16.mxu0 0
  %395 = vmatpush1.bf16.msra.mxu0 %v378
  %396 = vmatprep.subr.bf16.mxu0 0
  %397 = vmatpush2.bf16.msra.mxu0 0
  %398 = vmatprep.subr.bf16.mxu0 0
  %399 = vmatpush2.bf16.msra.mxu0 0
  %400 = vmatprep.subr.bf16.mxu0 0
  %401 = vmatpush2.bf16.msra.mxu0 0
  %402 = vmatprep.subr.bf16.mxu0 0
  %403 = vmatpush2.bf16.msra.mxu0 0
  %404 = vmatprep.subr.bf16.mxu0 0
  %405 = vmatpush2.bf16.msra.mxu0 0
  %406 = vmatprep.subr.bf16.mxu0 0
  %407 = vmatpush2.bf16.msra.mxu0 0
  %408 = vmatprep.subr.bf16.mxu0 0
  %409 = vmatpush2.bf16.msra.mxu0 0
  %410 = vmatprep.subr.bf16.mxu0 0
  %411 = vmatpush2.bf16.msra.mxu0 0
  %412 = vmatprep.mubr.bf16.mxu0 0
  %413 = vmatmul.mubr.bf16.gmra.mxu0 %v366
  %v414 = vpop.f32.mrf.mxu0
  %v415 = vadd.f32 %v335, %v414
  %v416 = vpop.f32.mrf.mxu0
  %v417 = vpop.f32.mrf.mxu0
  %v418 = vadd.f32 %v338, %v417
  %v419 = vpop.f32.mrf.mxu0
  %420 = vmatprep.mubr.bf16.mxu0 0
  %421 = vmatmul.mubr.bf16.gmra.mxu0 %v369
  %v422 = vpop.f32.mrf.mxu0
  %v423 = vadd.f32 %v343, %v422
  %v424 = vpop.f32.mrf.mxu0
  %v425 = vpop.f32.mrf.mxu0
  %v426 = vadd.f32 %v346, %v425
  %v427 = vpop.f32.mrf.mxu0
  %428 = vmatprep.mubr.bf16.mxu0 0
  %429 = vmatmul.mubr.bf16.gmra.mxu0 %v372
  %v430 = vpop.f32.mrf.mxu0
  %v431 = vadd.f32 %v351, %v430
  %v432 = vpop.f32.mrf.mxu0
  %v433 = vpop.f32.mrf.mxu0
  %v434 = vadd.f32 %v354, %v433
  %v435 = vpop.f32.mrf.mxu0
  %436 = vmatprep.mubr.bf16.mxu0 0
  %437 = vmatmul.mubr.bf16.gmra.mxu0 %v375
  %v438 = vpop.f32.mrf.mxu0
  %v439 = vadd.f32 %v359, %v438
  %v440 = vpop.f32.mrf.mxu0
  %v441 = vpop.f32.mrf.mxu0
  %v442 = vadd.f32 %v362, %v441
  %v443 = vpop.f32.mrf.mxu0
  %444 = vdwg.mxu0
  %v445 = vld [vmem:[%s2] sm:$0xff]
  %v446 = vld [vmem:[%s2 + $0x8] sm:$0xff]
  %v447 = vld [vmem:[%s2 + $0x10] sm:$0xff]
  %v448 = vld [vmem:[%s2 + $0x18] sm:$0xff]
  %v449 = vld [vmem:[%s2 + $0x20] sm:$0xff]
  %v450 = vld [vmem:[%s2 + $0x28] sm:$0xff]
  %v451 = vld [vmem:[%s2 + $0x30] sm:$0xff]
  %v452 = vld [vmem:[%s2 + $0x38] sm:$0xff]
  %v453 = vld [vmem:[%s5] sm:$0x1]
  %v454 = vld [vmem:[%s8] sm:$0x1]
  %vm455 = vcmask 97280
  %v456 = vsel %vm455, %v445, 0.0
  %v457 = vsel %vm455, %v446, 0.0
  %v458 = vadd.f32 %v456, %v457
  %v459 = vsel %vm455, %v447, 0.0
  %v460 = vadd.f32 %v458, %v459
  %v461 = vsel %vm455, %v448, 0.0
  %v462 = vadd.f32 %v460, %v461
  %v463 = vsel %vm455, %v449, 0.0
  %v464 = vadd.f32 %v462, %v463
  %v465 = vsel %vm455, %v450, 0.0
  %v466 = vadd.f32 %v464, %v465
  %v467 = vsel %vm455, %v451, 0.0
  %v468 = vadd.f32 %v466, %v467
  %v469 = vsel %vm455, %v452, 0.0
  %v470 = vadd.f32 %v468, %v469
  %v471 = vrot.slane %v470, 4
  %v472 = vadd.f32 %v470, %v471
  %v473 = vrot.slane %v472, 2
  %v474 = vadd.f32 %v472, %v473
  %v475 = vrot.slane %v474, 1
  %v476 = vadd.f32 %v474, %v475
  %v477 = vmul.f32 %v476, %v101
  %v478 = vmul.f32 %v445, %v445
  %v479 = vmul.f32 %v446, %v446
  %v480 = vmul.f32 %v447, %v447
  %v481 = vmul.f32 %v448, %v448
  %v482 = vmul.f32 %v449, %v449
  %v483 = vmul.f32 %v450, %v450
  %v484 = vmul.f32 %v451, %v451
  %v485 = vmul.f32 %v452, %v452
  %v486 = vsel %vm455, %v478, 0.0
  %v487 = vsel %vm455, %v479, 0.0
  %v488 = vadd.f32 %v486, %v487
  %v489 = vsel %vm455, %v480, 0.0
  %v490 = vadd.f32 %v488, %v489
  %v491 = vsel %vm455, %v481, 0.0
  %v492 = vadd.f32 %v490, %v491
  %v493 = vsel %vm455, %v482, 0.0
  %v494 = vadd.f32 %v492, %v493
  %v495 = vsel %vm455, %v483, 0.0
  %v496 = vadd.f32 %v494, %v495
  %v497 = vsel %vm455, %v484, 0.0
  %v498 = vadd.f32 %v496, %v497
  %v499 = vsel %vm455, %v485, 0.0
  %v500 = vadd.f32 %v498, %v499
  %v501 = vrot.slane %v500, 4
  %v502 = vadd.f32 %v500, %v501
  %v503 = vrot.slane %v502, 2
  %v504 = vadd.f32 %v502, %v503
  %v505 = vrot.slane %v504, 1
  %v506 = vadd.f32 %v504, %v505
  %v507 = vmul.f32 %v506, %v101
  %v508 = vmul.f32 %v477, %v477
  %v509 = vsub.f32 %v507, %v508
  %v510 = vmax.f32 %v509, 0.0
  %v511 = vadd.f32 %v510, 1e-05
  %v512 = vrsqrt.pop %v511
  %v513 = vmul.f32 %v453, %v512
  %v515 = vlaneseq
  %v516 = vshrl.u32 %v515, 7
  %v517 = vsub.s32 0, %v516
  %v518 = vrot.slane %v513, %v517
  %v520 = vmul.f32 %v445, %v518
  %v521 = vmul.f32 %v446, %v518
  %v522 = vmul.f32 %v447, %v518
  %v523 = vmul.f32 %v448, %v518
  %v524 = vmul.f32 %v449, %v518
  %v525 = vmul.f32 %v450, %v518
  %v526 = vmul.f32 %v451, %v518
  %v527 = vmul.f32 %v452, %v518
  %v528 = vmul.f32 %v477, %v513
  %v529 = vsub.f32 %v454, %v528
  %v531 = vlaneseq
  %v532 = vshrl.u32 %v531, 7
  %v533 = vsub.s32 0, %v532
  %v534 = vrot.slane %v529, %v533
  %v536 = vadd.f32 %v520, %v534
  %v537 = vadd.f32 %v521, %v534
  %v538 = vadd.f32 %v522, %v534
  %v539 = vadd.f32 %v523, %v534
  %v540 = vadd.f32 %v524, %v534
  %v541 = vadd.f32 %v525, %v534
  %v542 = vadd.f32 %v526, %v534
  %v543 = vadd.f32 %v527, %v534
  %v544 = vpack.c.bf16 %v537, %v536
  %v545 = vpack.c.bf16 %v539, %v538
  %v546 = vpack.c.bf16 %v541, %v540
  %v547 = vpack.c.bf16 %v543, %v542
  %v548 = vld [vmem:[%s11] sm:$0xff]
  %v549 = vld [vmem:[%s11 + $0x8] sm:$0xf]
  %v550 = vpack.c.bf16 %v549, %v548
  %v552 = vsel %vm455, %v544, 0
  %v555 = vsel %vm455, %v545, 0
  %v558 = vsel %vm455, %v546, 0
  %v561 = vsel %vm455, %v547, 0
  %vm563 = vcmask 1045504
  %v565 = vsel %vm563, %v550, 0
  %567 = vmatprep.subr.bf16.mxu0 0
  %568 = vmatpush1.bf16.msra.mxu0 0
  %569 = vmatprep.subr.bf16.mxu0 0
  %570 = vmatpush1.bf16.msra.mxu0 0
  %571 = vmatprep.subr.bf16.mxu0 0
  %572 = vmatpush1.bf16.msra.mxu0 0
  %573 = vmatprep.subr.bf16.mxu0 0
  %574 = vmatpush1.bf16.msra.mxu0 0
  %575 = vmatprep.subr.bf16.mxu0 0
  %576 = vmatpush1.bf16.msra.mxu0 0
  %577 = vmatprep.subr.bf16.mxu0 0
  %578 = vmatpush1.bf16.msra.mxu0 0
  %579 = vmatprep.subr.bf16.mxu0 0
  %580 = vmatpush1.bf16.msra.mxu0 0
  %581 = vmatprep.subr.bf16.mxu0 0
  %582 = vmatpush1.bf16.msra.mxu0 %v565
  %583 = vmatprep.subr.bf16.mxu0 0
  %584 = vmatpush2.bf16.msra.mxu0 0
  %585 = vmatprep.subr.bf16.mxu0 0
  %586 = vmatpush2.bf16.msra.mxu0 0
  %587 = vmatprep.subr.bf16.mxu0 0
  %588 = vmatpush2.bf16.msra.mxu0 0
  %589 = vmatprep.subr.bf16.mxu0 0
  %590 = vmatpush2.bf16.msra.mxu0 0
  %591 = vmatprep.subr.bf16.mxu0 0
  %592 = vmatpush2.bf16.msra.mxu0 0
  %593 = vmatprep.subr.bf16.mxu0 0
  %594 = vmatpush2.bf16.msra.mxu0 0
  %595 = vmatprep.subr.bf16.mxu0 0
  %596 = vmatpush2.bf16.msra.mxu0 0
  %597 = vmatprep.subr.bf16.mxu0 0
  %598 = vmatpush2.bf16.msra.mxu0 0
  %599 = vmatprep.mubr.bf16.mxu0 0
  %600 = vmatmul.mubr.bf16.gmra.mxu0 %v552
  %v601 = vpop.f32.mrf.mxu0
  %v602 = vadd.f32 0.0, %v601
  %v603 = vpop.f32.mrf.mxu0
  %v604 = vpop.f32.mrf.mxu0
  %v605 = vadd.f32 0.0, %v604
  %v606 = vpop.f32.mrf.mxu0
  %607 = vmatprep.mubr.bf16.mxu0 0
  %608 = vmatmul.mubr.bf16.gmra.mxu0 %v555
  %v609 = vpop.f32.mrf.mxu0
  %v610 = vadd.f32 0.0, %v609
  %v611 = vpop.f32.mrf.mxu0
  %v612 = vpop.f32.mrf.mxu0
  %v613 = vadd.f32 0.0, %v612
  %v614 = vpop.f32.mrf.mxu0
  %615 = vmatprep.mubr.bf16.mxu0 0
  %616 = vmatmul.mubr.bf16.gmra.mxu0 %v558
  %v617 = vpop.f32.mrf.mxu0
  %v618 = vadd.f32 0.0, %v617
  %v619 = vpop.f32.mrf.mxu0
  %v620 = vpop.f32.mrf.mxu0
  %v621 = vadd.f32 0.0, %v620
  %v622 = vpop.f32.mrf.mxu0
  %623 = vmatprep.mubr.bf16.mxu0 0
  %624 = vmatmul.mubr.bf16.gmra.mxu0 %v561
  %v625 = vpop.f32.mrf.mxu0
  %v626 = vadd.f32 0.0, %v625
  %v627 = vpop.f32.mrf.mxu0
  %v628 = vpop.f32.mrf.mxu0
  %v629 = vadd.f32 0.0, %v628
  %v630 = vpop.f32.mrf.mxu0
  %631 = vdwg.mxu0
  %v632 = vadd.f32 %v415, %v602
  %v633 = vadd.f32 %v418, %v605
  %v634 = vadd.f32 %v423, %v610
  %v635 = vadd.f32 %v426, %v613
  %v636 = vadd.f32 %v431, %v618
  %v637 = vadd.f32 %v434, %v621
  %v638 = vadd.f32 %v439, %v626
  %v639 = vadd.f32 %v442, %v629
  %v640 = vld [vmem:[%s12] sm:$0x1]
  %v642 = vlaneseq
  %v643 = vshrl.u32 %v642, 7
  %v644 = vsub.s32 0, %v643
  %v645 = vrot.slane %v640, %v644
  %v647 = vadd.f32 %v632, %v645
  %v648 = vadd.f32 %v633, %v645
  %v649 = vadd.f32 %v634, %v645
  %v650 = vadd.f32 %v635, %v645
  %v651 = vadd.f32 %v636, %v645
  %v652 = vadd.f32 %v637, %v645
  %v653 = vadd.f32 %v638, %v645
  %v654 = vadd.f32 %v639, %v645
  %vm655 = vcmp.ge.f32.partialorder %v647, 0.0
  %vm656 = vcmp.ge.f32.partialorder %v648, 0.0
  %vm657 = vcmp.ge.f32.partialorder %v649, 0.0
  %vm658 = vcmp.ge.f32.partialorder %v650, 0.0
  %vm659 = vcmp.ge.f32.partialorder %v651, 0.0
  %vm660 = vcmp.ge.f32.partialorder %v652, 0.0
  %vm661 = vcmp.ge.f32.partialorder %v653, 0.0
  %vm662 = vcmp.ge.f32.partialorder %v654, 0.0
  %v663 = vmul.f32 %v647, 0.0
  %v664 = vmul.f32 %v648, 0.0
  %v665 = vmul.f32 %v649, 0.0
  %v666 = vmul.f32 %v650, 0.0
  %v667 = vmul.f32 %v651, 0.0
  %v668 = vmul.f32 %v652, 0.0
  %v669 = vmul.f32 %v653, 0.0
  %v670 = vmul.f32 %v654, 0.0
  %v671 = vsel %vm655, %v647, %v663
  %v672 = vsel %vm656, %v648, %v664
  %v673 = vsel %vm657, %v649, %v665
  %v674 = vsel %vm658, %v650, %v666
  %v675 = vsel %vm659, %v651, %v667
  %v676 = vsel %vm660, %v652, %v668
  %v677 = vsel %vm661, %v653, %v669
  %v678 = vsel %vm662, %v654, %v670
  %v679 = vld [vmem:[%s13] sm:$0x1]
  %v680 = vld [vmem:[%s14] sm:$0x1]
  %v681 = vadd.f32 %v671, %v672
  %v682 = vadd.f32 %v681, %v673
  %v683 = vadd.f32 %v682, %v674
  %v684 = vadd.f32 %v683, %v675
  %v685 = vadd.f32 %v684, %v676
  %v686 = vadd.f32 %v685, %v677
  %v687 = vadd.f32 %v686, %v678
  %v688 = vrot.slane %v687, 4
  %v689 = vadd.f32 %v687, %v688
  %v690 = vrot.slane %v689, 2
  %v691 = vadd.f32 %v689, %v690
  %v692 = vrot.slane %v691, 1
  %v693 = vadd.f32 %v691, %v692
  %v694 = vmul.f32 %v693, %v101
  %v695 = vmul.f32 %v671, %v671
  %v696 = vmul.f32 %v672, %v672
  %v697 = vmul.f32 %v673, %v673
  %v698 = vmul.f32 %v674, %v674
  %v699 = vmul.f32 %v675, %v675
  %v700 = vmul.f32 %v676, %v676
  %v701 = vmul.f32 %v677, %v677
  %v702 = vmul.f32 %v678, %v678
  %v703 = vadd.f32 %v695, %v696
  %v704 = vadd.f32 %v703, %v697
  %v705 = vadd.f32 %v704, %v698
  %v706 = vadd.f32 %v705, %v699
  %v707 = vadd.f32 %v706, %v700
  %v708 = vadd.f32 %v707, %v701
  %v709 = vadd.f32 %v708, %v702
  %v710 = vrot.slane %v709, 4
  %v711 = vadd.f32 %v709, %v710
  %v712 = vrot.slane %v711, 2
  %v713 = vadd.f32 %v711, %v712
  %v714 = vrot.slane %v713, 1
  %v715 = vadd.f32 %v713, %v714
  %v716 = vmul.f32 %v715, %v101
  %v717 = vmul.f32 %v694, %v694
  %v718 = vsub.f32 %v716, %v717
  %v719 = vmax.f32 %v718, 0.0
  %v720 = vadd.f32 %v719, 1e-05
  %v721 = vrsqrt.pop %v720
  %v722 = vmul.f32 %v679, %v721
  %v724 = vlaneseq
  %v725 = vshrl.u32 %v724, 7
  %v726 = vsub.s32 0, %v725
  %v727 = vrot.slane %v722, %v726
  %v729 = vmul.f32 %v671, %v727
  %v730 = vmul.f32 %v672, %v727
  %v731 = vmul.f32 %v673, %v727
  %v732 = vmul.f32 %v674, %v727
  %v733 = vmul.f32 %v675, %v727
  %v734 = vmul.f32 %v676, %v727
  %v735 = vmul.f32 %v677, %v727
  %v736 = vmul.f32 %v678, %v727
  %v737 = vmul.f32 %v694, %v722
  %v738 = vsub.f32 %v680, %v737
  %v740 = vlaneseq
  %v741 = vshrl.u32 %v740, 7
  %v742 = vsub.s32 0, %v741
  %v743 = vrot.slane %v738, %v742
  %v745 = vadd.f32 %v729, %v743
  %v746 = vadd.f32 %v730, %v743
  %v747 = vadd.f32 %v731, %v743
  %v748 = vadd.f32 %v732, %v743
  %v749 = vadd.f32 %v733, %v743
  %v750 = vadd.f32 %v734, %v743
  %v751 = vadd.f32 %v735, %v743
  %v752 = vadd.f32 %v736, %v743
  %v753 = vld [vmem:[%s15] sm:$0xff]
  %v754 = vld [vmem:[%s15 + $0x8] sm:$0xff]
  %v755 = vld [vmem:[%s15 + $0x10] sm:$0xff]
  %v756 = vld [vmem:[%s15 + $0x18] sm:$0xff]
  %v757 = vld [vmem:[%s15 + $0x20] sm:$0xff]
  %v758 = vld [vmem:[%s15 + $0x28] sm:$0xff]
  %v759 = vld [vmem:[%s15 + $0x30] sm:$0xff]
  %v760 = vld [vmem:[%s15 + $0x38] sm:$0xff]
  %v761 = vld [vmem:[%s15 + $0x40] sm:$0xff]
  %v762 = vld [vmem:[%s15 + $0x48] sm:$0xff]
  %v763 = vld [vmem:[%s15 + $0x50] sm:$0xff]
  %v764 = vld [vmem:[%s15 + $0x58] sm:$0xff]
  %v765 = vld [vmem:[%s15 + $0x60] sm:$0xff]
  %v766 = vld [vmem:[%s15 + $0x68] sm:$0xff]
  %v767 = vld [vmem:[%s15 + $0x70] sm:$0xff]
  %v768 = vld [vmem:[%s15 + $0x78] sm:$0xff]
  %v769 = vld [vmem:[%s16] sm:$0x1]
  %v770 = vpack.c.bf16 %v746, %v745
  %v771 = vpack.c.bf16 %v748, %v747
  %v772 = vpack.c.bf16 %v750, %v749
  %v773 = vpack.c.bf16 %v752, %v751
  %v774 = vpack.c.bf16 %v754, %v753
  %v775 = vpack.c.bf16 %v756, %v755
  %v776 = vpack.c.bf16 %v758, %v757
  %v777 = vpack.c.bf16 %v760, %v759
  %v778 = vpack.c.bf16 %v762, %v761
  %v779 = vpack.c.bf16 %v764, %v763
  %v780 = vpack.c.bf16 %v766, %v765
  %v781 = vpack.c.bf16 %v768, %v767
  %v783 = vlaneseq
  %v784 = vshrl.u32 %v783, 7
  %v785 = vsub.s32 0, %v784
  %v786 = vrot.slane %v769, %v785
  %788 = vmatprep.subr.bf16.mxu0 0
  %789 = vmatpush1.bf16.msra.mxu0 %v781
  %790 = vmatprep.subr.bf16.mxu0 0
  %791 = vmatpush1.bf16.msra.mxu0 %v780
  %792 = vmatprep.subr.bf16.mxu0 0
  %793 = vmatpush1.bf16.msra.mxu0 %v779
  %794 = vmatprep.subr.bf16.mxu0 0
  %795 = vmatpush1.bf16.msra.mxu0 %v778
  %796 = vmatprep.subr.bf16.mxu0 0
  %797 = vmatpush1.bf16.msra.mxu0 %v777
  %798 = vmatprep.subr.bf16.mxu0 0
  %799 = vmatpush1.bf16.msra.mxu0 %v776
  %800 = vmatprep.subr.bf16.mxu0 0
  %801 = vmatpush1.bf16.msra.mxu0 %v775
  %802 = vmatprep.subr.bf16.mxu0 0
  %803 = vmatpush1.bf16.msra.mxu0 %v774
  %804 = vmatprep.subr.bf16.mxu0 0
  %805 = vmatpush2.bf16.msra.mxu0 0
  %806 = vmatprep.subr.bf16.mxu0 0
  %807 = vmatpush2.bf16.msra.mxu0 0
  %808 = vmatprep.subr.bf16.mxu0 0
  %809 = vmatpush2.bf16.msra.mxu0 0
  %810 = vmatprep.subr.bf16.mxu0 0
  %811 = vmatpush2.bf16.msra.mxu0 0
  %812 = vmatprep.subr.bf16.mxu0 0
  %813 = vmatpush2.bf16.msra.mxu0 0
  %814 = vmatprep.subr.bf16.mxu0 0
  %815 = vmatpush2.bf16.msra.mxu0 0
  %816 = vmatprep.subr.bf16.mxu0 0
  %817 = vmatpush2.bf16.msra.mxu0 0
  %818 = vmatprep.subr.bf16.mxu0 0
  %819 = vmatpush2.bf16.msra.mxu0 0
  %820 = vmatprep.mubr.bf16.mxu0 0
  %821 = vmatmul.mubr.bf16.gmra.mxu0 %v770
  %v822 = vpop.f32.mrf.mxu0
  %v823 = vadd.f32 %v786, %v822
  %v824 = vpop.f32.mrf.mxu0
  %v825 = vpop.f32.mrf.mxu0
  %v826 = vadd.f32 %v786, %v825
  %v827 = vpop.f32.mrf.mxu0
  %828 = vmatprep.mubr.bf16.mxu0 0
  %829 = vmatmul.mubr.bf16.gmra.mxu0 %v771
  %v830 = vpop.f32.mrf.mxu0
  %v831 = vadd.f32 %v786, %v830
  %v832 = vpop.f32.mrf.mxu0
  %v833 = vpop.f32.mrf.mxu0
  %v834 = vadd.f32 %v786, %v833
  %v835 = vpop.f32.mrf.mxu0
  %836 = vmatprep.mubr.bf16.mxu0 0
  %837 = vmatmul.mubr.bf16.gmra.mxu0 %v772
  %v838 = vpop.f32.mrf.mxu0
  %v839 = vadd.f32 %v786, %v838
  %v840 = vpop.f32.mrf.mxu0
  %v841 = vpop.f32.mrf.mxu0
  %v842 = vadd.f32 %v786, %v841
  %v843 = vpop.f32.mrf.mxu0
  %844 = vmatprep.mubr.bf16.mxu0 0
  %845 = vmatmul.mubr.bf16.gmra.mxu0 %v773
  %v846 = vpop.f32.mrf.mxu0
  %v847 = vadd.f32 %v786, %v846
  %v848 = vpop.f32.mrf.mxu0
  %v849 = vpop.f32.mrf.mxu0
  %v850 = vadd.f32 %v786, %v849
  %v851 = vpop.f32.mrf.mxu0
  %852 = vdwg.mxu0
  %vm853 = vcmp.ge.f32.partialorder %v823, 0.0
  %vm854 = vcmp.ge.f32.partialorder %v826, 0.0
  %vm855 = vcmp.ge.f32.partialorder %v831, 0.0
  %vm856 = vcmp.ge.f32.partialorder %v834, 0.0
  %vm857 = vcmp.ge.f32.partialorder %v839, 0.0
  %vm858 = vcmp.ge.f32.partialorder %v842, 0.0
  %vm859 = vcmp.ge.f32.partialorder %v847, 0.0
  %vm860 = vcmp.ge.f32.partialorder %v850, 0.0
  %v861 = vmul.f32 %v823, 0.0
  %v862 = vmul.f32 %v826, 0.0
  %v863 = vmul.f32 %v831, 0.0
  %v864 = vmul.f32 %v834, 0.0
  %v865 = vmul.f32 %v839, 0.0
  %v866 = vmul.f32 %v842, 0.0
  %v867 = vmul.f32 %v847, 0.0
  %v868 = vmul.f32 %v850, 0.0
  %v869 = vsel %vm853, %v823, %v861
  %v870 = vsel %vm854, %v826, %v862
  %v871 = vsel %vm855, %v831, %v863
  %v872 = vsel %vm856, %v834, %v864
  %v873 = vsel %vm857, %v839, %v865
  %v874 = vsel %vm858, %v842, %v866
  %v875 = vsel %vm859, %v847, %v867
  %v876 = vsel %vm860, %v850, %v868
  %v877 = vld [vmem:[%s17] sm:$0x1]
  %v878 = vld [vmem:[%s18] sm:$0x1]
  %v879 = vadd.f32 %v869, %v870
  %v880 = vadd.f32 %v879, %v871
  %v881 = vadd.f32 %v880, %v872
  %v882 = vadd.f32 %v881, %v873
  %v883 = vadd.f32 %v882, %v874
  %v884 = vadd.f32 %v883, %v875
  %v885 = vadd.f32 %v884, %v876
  %v886 = vrot.slane %v885, 4
  %v887 = vadd.f32 %v885, %v886
  %v888 = vrot.slane %v887, 2
  %v889 = vadd.f32 %v887, %v888
  %v890 = vrot.slane %v889, 1
  %v891 = vadd.f32 %v889, %v890
  %v892 = vmul.f32 %v891, %v101
  %v893 = vmul.f32 %v869, %v869
  %v894 = vmul.f32 %v870, %v870
  %v895 = vmul.f32 %v871, %v871
  %v896 = vmul.f32 %v872, %v872
  %v897 = vmul.f32 %v873, %v873
  %v898 = vmul.f32 %v874, %v874
  %v899 = vmul.f32 %v875, %v875
  %v900 = vmul.f32 %v876, %v876
  %v901 = vadd.f32 %v893, %v894
  %v902 = vadd.f32 %v901, %v895
  %v903 = vadd.f32 %v902, %v896
  %v904 = vadd.f32 %v903, %v897
  %v905 = vadd.f32 %v904, %v898
  %v906 = vadd.f32 %v905, %v899
  %v907 = vadd.f32 %v906, %v900
  %v908 = vrot.slane %v907, 4
  %v909 = vadd.f32 %v907, %v908
  %v910 = vrot.slane %v909, 2
  %v911 = vadd.f32 %v909, %v910
  %v912 = vrot.slane %v911, 1
  %v913 = vadd.f32 %v911, %v912
  %v914 = vmul.f32 %v913, %v101
  %v915 = vmul.f32 %v892, %v892
  %v916 = vsub.f32 %v914, %v915
  %v917 = vmax.f32 %v916, 0.0
  %v918 = vadd.f32 %v917, 1e-05
  %v919 = vrsqrt.pop %v918
  %v920 = vmul.f32 %v877, %v919
  %v922 = vlaneseq
  %v923 = vshrl.u32 %v922, 7
  %v924 = vsub.s32 0, %v923
  %v925 = vrot.slane %v920, %v924
  %v927 = vmul.f32 %v869, %v925
  %v928 = vmul.f32 %v870, %v925
  %v929 = vmul.f32 %v871, %v925
  %v930 = vmul.f32 %v872, %v925
  %v931 = vmul.f32 %v873, %v925
  %v932 = vmul.f32 %v874, %v925
  %v933 = vmul.f32 %v875, %v925
  %v934 = vmul.f32 %v876, %v925
  %v935 = vmul.f32 %v892, %v920
  %v936 = vsub.f32 %v878, %v935
  %v938 = vlaneseq
  %v939 = vshrl.u32 %v938, 7
  %v940 = vsub.s32 0, %v939
  %v941 = vrot.slane %v936, %v940
  %v943 = vadd.f32 %v927, %v941
  %v944 = vadd.f32 %v928, %v941
  %v945 = vadd.f32 %v929, %v941
  %v946 = vadd.f32 %v930, %v941
  %v947 = vadd.f32 %v931, %v941
  %v948 = vadd.f32 %v932, %v941
  %v949 = vadd.f32 %v933, %v941
  %v950 = vadd.f32 %v934, %v941
  %v951 = vld [vmem:[%s19] sm:$0xff]
  %v952 = vld [vmem:[%s19 + $0x8] sm:$0xff]
  %v953 = vld [vmem:[%s19 + $0x10] sm:$0xff]
  %v954 = vld [vmem:[%s19 + $0x18] sm:$0xff]
  %v955 = vld [vmem:[%s19 + $0x20] sm:$0xff]
  %v956 = vld [vmem:[%s19 + $0x28] sm:$0xff]
  %v957 = vld [vmem:[%s19 + $0x30] sm:$0xff]
  %v958 = vld [vmem:[%s19 + $0x38] sm:$0xff]
  %v959 = vld [vmem:[%s19 + $0x40] sm:$0xff]
  %v960 = vld [vmem:[%s19 + $0x48] sm:$0xff]
  %v961 = vld [vmem:[%s19 + $0x50] sm:$0xff]
  %v962 = vld [vmem:[%s19 + $0x58] sm:$0xff]
  %v963 = vld [vmem:[%s19 + $0x60] sm:$0xff]
  %v964 = vld [vmem:[%s19 + $0x68] sm:$0xff]
  %v965 = vld [vmem:[%s19 + $0x70] sm:$0xff]
  %v966 = vld [vmem:[%s19 + $0x78] sm:$0xff]
  %v967 = vld [vmem:[%s20] sm:$0x1]
  %v968 = vpack.c.bf16 %v944, %v943
  %v969 = vpack.c.bf16 %v946, %v945
  %v970 = vpack.c.bf16 %v948, %v947
  %v971 = vpack.c.bf16 %v950, %v949
  %v972 = vpack.c.bf16 %v952, %v951
  %v973 = vpack.c.bf16 %v954, %v953
  %v974 = vpack.c.bf16 %v956, %v955
  %v975 = vpack.c.bf16 %v958, %v957
  %v976 = vpack.c.bf16 %v960, %v959
  %v977 = vpack.c.bf16 %v962, %v961
  %v978 = vpack.c.bf16 %v964, %v963
  %v979 = vpack.c.bf16 %v966, %v965
  %v981 = vlaneseq
  %v982 = vshrl.u32 %v981, 7
  %v983 = vsub.s32 0, %v982
  %v984 = vrot.slane %v967, %v983
  %986 = vmatprep.subr.bf16.mxu0 0
  %987 = vmatpush1.bf16.msra.mxu0 %v979
  %988 = vmatprep.subr.bf16.mxu0 0
  %989 = vmatpush1.bf16.msra.mxu0 %v978
  %990 = vmatprep.subr.bf16.mxu0 0
  %991 = vmatpush1.bf16.msra.mxu0 %v977
  %992 = vmatprep.subr.bf16.mxu0 0
  %993 = vmatpush1.bf16.msra.mxu0 %v976
  %994 = vmatprep.subr.bf16.mxu0 0
  %995 = vmatpush1.bf16.msra.mxu0 %v975
  %996 = vmatprep.subr.bf16.mxu0 0
  %997 = vmatpush1.bf16.msra.mxu0 %v974
  %998 = vmatprep.subr.bf16.mxu0 0
  %999 = vmatpush1.bf16.msra.mxu0 %v973
  %1000 = vmatprep.subr.bf16.mxu0 0
  %1001 = vmatpush1.bf16.msra.mxu0 %v972
  %1002 = vmatprep.subr.bf16.mxu0 0
  %1003 = vmatpush2.bf16.msra.mxu0 0
  %1004 = vmatprep.subr.bf16.mxu0 0
  %1005 = vmatpush2.bf16.msra.mxu0 0
  %1006 = vmatprep.subr.bf16.mxu0 0
  %1007 = vmatpush2.bf16.msra.mxu0 0
  %1008 = vmatprep.subr.bf16.mxu0 0
  %1009 = vmatpush2.bf16.msra.mxu0 0
  %1010 = vmatprep.subr.bf16.mxu0 0
  %1011 = vmatpush2.bf16.msra.mxu0 0
  %1012 = vmatprep.subr.bf16.mxu0 0
  %1013 = vmatpush2.bf16.msra.mxu0 0
  %1014 = vmatprep.subr.bf16.mxu0 0
  %1015 = vmatpush2.bf16.msra.mxu0 0
  %1016 = vmatprep.subr.bf16.mxu0 0
  %1017 = vmatpush2.bf16.msra.mxu0 0
  %1018 = vmatprep.mubr.bf16.mxu0 0
  %1019 = vmatmul.mubr.bf16.gmra.mxu0 %v968
  %v1020 = vpop.f32.mrf.mxu0
  %v1021 = vadd.f32 %v984, %v1020
  %v1022 = vpop.f32.mrf.mxu0
  %v1023 = vpop.f32.mrf.mxu0
  %v1024 = vadd.f32 %v984, %v1023
  %v1025 = vpop.f32.mrf.mxu0
  %1026 = vmatprep.mubr.bf16.mxu0 0
  %1027 = vmatmul.mubr.bf16.gmra.mxu0 %v969
  %v1028 = vpop.f32.mrf.mxu0
  %v1029 = vadd.f32 %v984, %v1028
  %v1030 = vpop.f32.mrf.mxu0
  %v1031 = vpop.f32.mrf.mxu0
  %v1032 = vadd.f32 %v984, %v1031
  %v1033 = vpop.f32.mrf.mxu0
  %1034 = vmatprep.mubr.bf16.mxu0 0
  %1035 = vmatmul.mubr.bf16.gmra.mxu0 %v970
  %v1036 = vpop.f32.mrf.mxu0
  %v1037 = vadd.f32 %v984, %v1036
  %v1038 = vpop.f32.mrf.mxu0
  %v1039 = vpop.f32.mrf.mxu0
  %v1040 = vadd.f32 %v984, %v1039
  %v1041 = vpop.f32.mrf.mxu0
  %1042 = vmatprep.mubr.bf16.mxu0 0
  %1043 = vmatmul.mubr.bf16.gmra.mxu0 %v971
  %v1044 = vpop.f32.mrf.mxu0
  %v1045 = vadd.f32 %v984, %v1044
  %v1046 = vpop.f32.mrf.mxu0
  %v1047 = vpop.f32.mrf.mxu0
  %v1048 = vadd.f32 %v984, %v1047
  %v1049 = vpop.f32.mrf.mxu0
  %1050 = vdwg.mxu0
  %1051 = vst [vmem:[%s21] sm:$0xff] %v1021
  %1052 = vst [vmem:[%s21 + $0x8] sm:$0xff] %v1024
  %1053 = vst [vmem:[%s21 + $0x10] sm:$0xff] %v1029
  %1054 = vst [vmem:[%s21 + $0x18] sm:$0xff] %v1032
  %1055 = vst [vmem:[%s21 + $0x20] sm:$0xff] %v1037
  %1056 = vst [vmem:[%s21 + $0x28] sm:$0xff] %v1040
  %1057 = vst [vmem:[%s21 + $0x30] sm:$0xff] %v1045
  %1058 = vst [vmem:[%s21 + $0x38] sm:$0xff] %v1048
  // Predicated region
  $region86: #{nu_model_forward.4} parent=0 // pred_check
    _
  $region87: #{nu_model_forward.4} parent=0 // pred_check_branch
    %1060 = sbr.rel (0) target = $region89
  $region88: #{nu_model_forward.4} parent=0 // pred_region
    _
  $region89: #{nu_model_forward.4} parent=0 // pred_fallthru
    _
  // Predicated region
  $region90: #{nu_model_forward.4} parent=0 // pred_check
    _
  $region91: #{nu_model_forward.4} parent=0 // pred_check_branch
    %1062 = sbr.rel (0) target = $region93
  $region92: #{nu_model_forward.4} parent=0 // pred_region
    _
  $region93: #{nu_model_forward.4} parent=0 // pred_fallthru
    _

// kernel: nu_model_forward.6
$region0: #{nu_model_forward.6}
  #allocation0 [shape = 'u32[]', space=smem, size = 0x4, offset = 0x4, fixed_abs, tag = 'smem constant byte address 0x4 - core index']
  #allocation1 [shape = 'u32[144,128]{1,0:T(1,128)}', space=vmem, size = 0x12000, scoped, tag = 'internal scratch']
  %s0 = inlined_call_operand.vmem [shape: f32[32,9], index: 0, kind: input, shape index: {}]
  %s1 = inlined_call_operand.vmem [shape: f32[32,128], index: 1, kind: input, shape index: {}]
  %s2 = inlined_call_operand.vmem [shape: f32[1,9], index: 2, kind: input, shape index: {}]
  %s3 = inlined_call_operand.vmem [shape: f32[1,128], index: 3, kind: input, shape index: {}]
  %s4 = inlined_call_operand.vmem [shape: f32[1,9], index: 4, kind: input, shape index: {}]
  %s5 = inlined_call_operand.vmem [shape: f32[1,128], index: 5, kind: input, shape index: {}]
  %s6 = inlined_call_operand.vmem [shape: f32[9,128], index: 6, kind: input, shape index: {}]
  %s7 = inlined_call_operand.vmem [shape: f32[128,128], index: 7, kind: input, shape index: {}]
  %s8 = inlined_call_operand.vmem [shape: f32[1,128], index: 8, kind: input, shape index: {}]
  %s9 = inlined_call_operand.vmem [shape: f32[1,128], index: 9, kind: input, shape index: {}]
  %s10 = inlined_call_operand.vmem [shape: f32[1,128], index: 10, kind: input, shape index: {}]
  %s11 = inlined_call_operand.vmem [shape: f32[128,128], index: 11, kind: input, shape index: {}]
  %s12 = inlined_call_operand.vmem [shape: f32[1,128], index: 12, kind: input, shape index: {}]
  %s13 = inlined_call_operand.vmem [shape: f32[1,128], index: 13, kind: input, shape index: {}]
  %s14 = inlined_call_operand.vmem [shape: f32[1,128], index: 14, kind: input, shape index: {}]
  %s15 = inlined_call_operand.vmem [shape: f32[128,128], index: 15, kind: input, shape index: {}]
  %s16 = inlined_call_operand.vmem [shape: f32[1,128], index: 16, kind: input, shape index: {}]
  %s17 = inlined_call_operand.vmem [shape: f32[32,128], index: 17, kind: output, shape index: {}]
  %s18 = sld [smem:[#allocation0]]
  $region78: #{nu_model_forward.6} parent=0
    _
  %s20 = ssub.s32 1, %s18
  %s21 = scalar_select 0, %s20, %s18
  // Predicated region
  $region2: #{nu_model_forward.6} parent=0 // pred_check
    _
  $region3: #{nu_model_forward.6} parent=0 // pred_check_branch
    %23 = sbr.rel (0) target = $region5
  $region4: #{nu_model_forward.6} parent=0 // pred_region
    _
  $region5: #{nu_model_forward.6} parent=0 // pred_fallthru
    _
  // Predicated region
  $region6: #{nu_model_forward.6} parent=0 // pred_check
    _
  $region7: #{nu_model_forward.6} parent=0 // pred_check_branch
    %25 = sbr.rel (0) target = $region9
  $region8: #{nu_model_forward.6} parent=0 // pred_region
    _
  $region9: #{nu_model_forward.6} parent=0 // pred_fallthru
    _
  // Predicated region
  $region10: #{nu_model_forward.6} parent=0 // pred_check
    _
  $region11: #{nu_model_forward.6} parent=0 // pred_check_branch
    %27 = sbr.rel (0) target = $region13
  $region12: #{nu_model_forward.6} parent=0 // pred_region
    _
  $region13: #{nu_model_forward.6} parent=0 // pred_fallthru
    _
  // Predicated region
  $region14: #{nu_model_forward.6} parent=0 // pred_check
    _
  $region15: #{nu_model_forward.6} parent=0 // pred_check_branch
    %29 = sbr.rel (0) target = $region17
  $region16: #{nu_model_forward.6} parent=0 // pred_region
    _
  $region17: #{nu_model_forward.6} parent=0 // pred_fallthru
    _
  // Predicated region
  $region18: #{nu_model_forward.6} parent=0 // pred_check
    _
  $region19: #{nu_model_forward.6} parent=0 // pred_check_branch
    %31 = sbr.rel (0) target = $region21
  $region20: #{nu_model_forward.6} parent=0 // pred_region
    _
  $region21: #{nu_model_forward.6} parent=0 // pred_fallthru
    _
  // Predicated region
  $region22: #{nu_model_forward.6} parent=0 // pred_check
    _
  $region23: #{nu_model_forward.6} parent=0 // pred_check_branch
    %33 = sbr.rel (0) target = $region25
  $region24: #{nu_model_forward.6} parent=0 // pred_region
    _
  $region25: #{nu_model_forward.6} parent=0 // pred_fallthru
    _
  // Predicated region
  $region26: #{nu_model_forward.6} parent=0 // pred_check
    _
  $region27: #{nu_model_forward.6} parent=0 // pred_check_branch
    %35 = sbr.rel (0) target = $region29
  $region28: #{nu_model_forward.6} parent=0 // pred_region
    _
  $region29: #{nu_model_forward.6} parent=0 // pred_fallthru
    _
  // Predicated region
  $region30: #{nu_model_forward.6} parent=0 // pred_check
    _
  $region31: #{nu_model_forward.6} parent=0 // pred_check_branch
    %37 = sbr.rel (0) target = $region33
  $region32: #{nu_model_forward.6} parent=0 // pred_region
    _
  $region33: #{nu_model_forward.6} parent=0 // pred_fallthru
    _
  // Predicated region
  $region34: #{nu_model_forward.6} parent=0 // pred_check
    _
  $region35: #{nu_model_forward.6} parent=0 // pred_check_branch
    %39 = sbr.rel (0) target = $region37
  $region36: #{nu_model_forward.6} parent=0 // pred_region
    _
  $region37: #{nu_model_forward.6} parent=0 // pred_fallthru
    _
  // Predicated region
  $region38: #{nu_model_forward.6} parent=0 // pred_check
    _
  $region39: #{nu_model_forward.6} parent=0 // pred_check_branch
    %41 = sbr.rel (0) target = $region41
  $region40: #{nu_model_forward.6} parent=0 // pred_region
    _
  $region41: #{nu_model_forward.6} parent=0 // pred_fallthru
    _
  // Predicated region
  $region42: #{nu_model_forward.6} parent=0 // pred_check
    _
  $region43: #{nu_model_forward.6} parent=0 // pred_check_branch
    %43 = sbr.rel (0) target = $region45
  $region44: #{nu_model_forward.6} parent=0 // pred_region
    _
  $region45: #{nu_model_forward.6} parent=0 // pred_fallthru
    _
  // Predicated region
  $region46: #{nu_model_forward.6} parent=0 // pred_check
    _
  $region47: #{nu_model_forward.6} parent=0 // pred_check_branch
    %45 = sbr.rel (0) target = $region49
  $region48: #{nu_model_forward.6} parent=0 // pred_region
    _
  $region49: #{nu_model_forward.6} parent=0 // pred_fallthru
    _
  // Predicated region
  $region50: #{nu_model_forward.6} parent=0 // pred_check
    _
  $region51: #{nu_model_forward.6} parent=0 // pred_check_branch
    %47 = sbr.rel (0) target = $region53
  $region52: #{nu_model_forward.6} parent=0 // pred_region
    _
  $region53: #{nu_model_forward.6} parent=0 // pred_fallthru
    _
  // Predicated region
  $region54: #{nu_model_forward.6} parent=0 // pred_check
    _
  $region55: #{nu_model_forward.6} parent=0 // pred_check_branch
    %49 = sbr.rel (0) target = $region57
  $region56: #{nu_model_forward.6} parent=0 // pred_region
    _
  $region57: #{nu_model_forward.6} parent=0 // pred_fallthru
    _
  // Predicated region
  $region58: #{nu_model_forward.6} parent=0 // pred_check
    _
  $region59: #{nu_model_forward.6} parent=0 // pred_check_branch
    %51 = sbr.rel (0) target = $region61
  $region60: #{nu_model_forward.6} parent=0 // pred_region
    _
  $region61: #{nu_model_forward.6} parent=0 // pred_fallthru
    _
  // Predicated region
  $region62: #{nu_model_forward.6} parent=0 // pred_check
    _
  $region63: #{nu_model_forward.6} parent=0 // pred_check_branch
    %53 = sbr.rel (0) target = $region65
  $region64: #{nu_model_forward.6} parent=0 // pred_region
    _
  $region65: #{nu_model_forward.6} parent=0 // pred_fallthru
    _
  // Predicated region
  $region66: #{nu_model_forward.6} parent=0 // pred_check
    _
  $region67: #{nu_model_forward.6} parent=0 // pred_check_branch
    %55 = sbr.rel (0) target = $region69
  $region68: #{nu_model_forward.6} parent=0 // pred_region
    _
  $region69: #{nu_model_forward.6} parent=0 // pred_fallthru
    _
  %v57 = vld [vmem:[%s0] sm:$0xff]
  %v58 = vld [vmem:[%s0 + $0x8] sm:$0xff]
  %v59 = vld [vmem:[%s0 + $0x10] sm:$0xff]
  %v60 = vld [vmem:[%s0 + $0x18] sm:$0xff]
  %v61 = vld [vmem:[%s2] sm:$0x1]
  %v62 = vld [vmem:[%s4] sm:$0x1]
  %vm63 = vcmask 72704
  %v64 = vsel %vm63, %v57, 0.0
  %v65 = vsel %vm63, %v58, 0.0
  %v66 = vadd.f32 %v64, %v65
  %v67 = vsel %vm63, %v59, 0.0
  %v68 = vadd.f32 %v66, %v67
  %v69 = vsel %vm63, %v60, 0.0
  %v70 = vadd.f32 %v68, %v69
  %v71 = vrot.slane %v70, 4
  %v72 = vadd.f32 %v70, %v71
  %v73 = vrot.slane %v72, 2
  %v74 = vadd.f32 %v72, %v73
  %v75 = vrot.slane %v74, 1
  %v76 = vadd.f32 %v74, %v75
  %v77 = vrcp.pop 32.0
  %v78 = vmul.f32 %v76, %v77
  %v79 = vmul.f32 %v57, %v57
  %v80 = vmul.f32 %v58, %v58
  %v81 = vmul.f32 %v59, %v59
  %v82 = vmul.f32 %v60, %v60
  %v83 = vsel %vm63, %v79, 0.0
  %v84 = vsel %vm63, %v80, 0.0
  %v85 = vadd.f32 %v83, %v84
  %v86 = vsel %vm63, %v81, 0.0
  %v87 = vadd.f32 %v85, %v86
  %v88 = vsel %vm63, %v82, 0.0
  %v89 = vadd.f32 %v87, %v88
  %v90 = vrot.slane %v89, 4
  %v91 = vadd.f32 %v89, %v90
  %v92 = vrot.slane %v91, 2
  %v93 = vadd.f32 %v91, %v92
  %v94 = vrot.slane %v93, 1
  %v95 = vadd.f32 %v93, %v94
  %v96 = vmul.f32 %v95, %v77
  %v97 = vmul.f32 %v78, %v78
  %v98 = vsub.f32 %v96, %v97
  %v99 = vmax.f32 %v98, 0.0
  %v100 = vadd.f32 %v99, 1e-05
  %v101 = vrsqrt.pop %v100
  %v102 = vmul.f32 %v61, %v101
  %v104 = vlaneseq
  %v105 = vshrl.u32 %v104, 7
  %v106 = vsub.s32 0, %v105
  %v107 = vrot.slane %v102, %v106
  %v109 = vmul.f32 %v57, %v107
  %v110 = vmul.f32 %v58, %v107
  %v111 = vmul.f32 %v59, %v107
  %v112 = vmul.f32 %v60, %v107
  %v113 = vmul.f32 %v78, %v102
  %v114 = vsub.f32 %v62, %v113
  %v116 = vlaneseq
  %v117 = vshrl.u32 %v116, 7
  %v118 = vsub.s32 0, %v117
  %v119 = vrot.slane %v114, %v118
  %v121 = vadd.f32 %v109, %v119
  %v122 = vadd.f32 %v110, %v119
  %v123 = vadd.f32 %v111, %v119
  %v124 = vadd.f32 %v112, %v119
  %v125 = vpack.c.bf16 %v122, %v121
  %v126 = vpack.c.bf16 %v124, %v123
  %v127 = vld [vmem:[%s6] sm:$0xff]
  %v128 = vld [vmem:[%s6 + $0x8] sm:$0x1]
  %v129 = vpack.c.bf16 %v128, %v127
  %v130 = vld [vmem:[%s1] sm:$0xff]
  %v131 = vld [vmem:[%s1 + $0x8] sm:$0xff]
  %v132 = vld [vmem:[%s1 + $0x10] sm:$0xff]
  %v133 = vld [vmem:[%s1 + $0x18] sm:$0xff]
  %v134 = vld [vmem:[%s3] sm:$0x1]
  %v135 = vld [vmem:[%s5] sm:$0x1]
  %v136 = vadd.f32 %v130, %v131
  %v137 = vadd.f32 %v136, %v132
  %v138 = vadd.f32 %v137, %v133
  %v139 = vrot.slane %v138, 4
  %v140 = vadd.f32 %v138, %v139
  %v141 = vrot.slane %v140, 2
  %v142 = vadd.f32 %v140, %v141
  %v143 = vrot.slane %v142, 1
  %v144 = vadd.f32 %v142, %v143
  %v145 = vmul.f32 %v144, %v77
  %v146 = vmul.f32 %v130, %v130
  %v147 = vmul.f32 %v131, %v131
  %v148 = vmul.f32 %v132, %v132
  %v149 = vmul.f32 %v133, %v133
  %v150 = vadd.f32 %v146, %v147
  %v151 = vadd.f32 %v150, %v148
  %v152 = vadd.f32 %v151, %v149
  %v153 = vrot.slane %v152, 4
  %v154 = vadd.f32 %v152, %v153
  %v155 = vrot.slane %v154, 2
  %v156 = vadd.f32 %v154, %v155
  %v157 = vrot.slane %v156, 1
  %v158 = vadd.f32 %v156, %v157
  %v159 = vmul.f32 %v158, %v77
  %v160 = vmul.f32 %v145, %v145
  %v161 = vsub.f32 %v159, %v160
  %v162 = vmax.f32 %v161, 0.0
  %v163 = vadd.f32 %v162, 1e-05
  %v164 = vrsqrt.pop %v163
  %v165 = vmul.f32 %v134, %v164
  %v167 = vlaneseq
  %v168 = vshrl.u32 %v167, 7
  %v169 = vsub.s32 0, %v168
  %v170 = vrot.slane %v165, %v169
  %v172 = vmul.f32 %v130, %v170
  %v173 = vmul.f32 %v131, %v170
  %v174 = vmul.f32 %v132, %v170
  %v175 = vmul.f32 %v133, %v170
  %v176 = vmul.f32 %v145, %v165
  %v177 = vsub.f32 %v135, %v176
  %v179 = vlaneseq
  %v180 = vshrl.u32 %v179, 7
  %v181 = vsub.s32 0, %v180
  %v182 = vrot.slane %v177, %v181
  %v184 = vadd.f32 %v172, %v182
  %v185 = vadd.f32 %v173, %v182
  %v186 = vadd.f32 %v174, %v182
  %v187 = vadd.f32 %v175, %v182
  %v188 = vpack.c.bf16 %v185, %v184
  %v189 = vpack.c.bf16 %v187, %v186
  %v190 = vld [vmem:[%s7] sm:$0xff]
  %v191 = vld [vmem:[%s7 + $0x8] sm:$0xff]
  %v192 = vld [vmem:[%s7 + $0x10] sm:$0xff]
  %v193 = vld [vmem:[%s7 + $0x18] sm:$0xff]
  %v194 = vld [vmem:[%s7 + $0x20] sm:$0xff]
  %v195 = vld [vmem:[%s7 + $0x28] sm:$0xff]
  %v196 = vld [vmem:[%s7 + $0x30] sm:$0xff]
  %v197 = vld [vmem:[%s7 + $0x38] sm:$0xff]
  %v198 = vld [vmem:[%s7 + $0x40] sm:$0xff]
  %v199 = vld [vmem:[%s7 + $0x48] sm:$0xff]
  %v200 = vld [vmem:[%s7 + $0x50] sm:$0xff]
  %v201 = vld [vmem:[%s7 + $0x58] sm:$0xff]
  %v202 = vld [vmem:[%s7 + $0x60] sm:$0xff]
  %v203 = vld [vmem:[%s7 + $0x68] sm:$0xff]
  %v204 = vld [vmem:[%s7 + $0x70] sm:$0xff]
  %v205 = vld [vmem:[%s7 + $0x78] sm:$0xff]
  %v206 = vpack.c.bf16 %v191, %v190
  %v207 = vpack.c.bf16 %v193, %v192
  %v208 = vpack.c.bf16 %v195, %v194
  %v209 = vpack.c.bf16 %v197, %v196
  %v210 = vpack.c.bf16 %v199, %v198
  %v211 = vpack.c.bf16 %v201, %v200
  %v212 = vpack.c.bf16 %v203, %v202
  %v213 = vpack.c.bf16 %v205, %v204
  %214 = vmatprep.subr.bf16.mxu0 0
  %215 = vmatpush1.bf16.msra.mxu0 %v213
  %216 = vmatprep.subr.bf16.mxu0 0
  %217 = vmatpush1.bf16.msra.mxu0 %v212
  %218 = vmatprep.subr.bf16.mxu0 0
  %219 = vmatpush1.bf16.msra.mxu0 %v211
  %220 = vmatprep.subr.bf16.mxu0 0
  %221 = vmatpush1.bf16.msra.mxu0 %v210
  %222 = vmatprep.subr.bf16.mxu0 0
  %223 = vmatpush1.bf16.msra.mxu0 %v209
  %224 = vmatprep.subr.bf16.mxu0 0
  %225 = vmatpush1.bf16.msra.mxu0 %v208
  %226 = vmatprep.subr.bf16.mxu0 0
  %227 = vmatpush1.bf16.msra.mxu0 %v207
  %228 = vmatprep.subr.bf16.mxu0 0
  %229 = vmatpush1.bf16.msra.mxu0 %v206
  %230 = vmatprep.subr.bf16.mxu0 0
  %231 = vmatpush2.bf16.msra.mxu0 0
  %232 = vmatprep.subr.bf16.mxu0 0
  %233 = vmatpush2.bf16.msra.mxu0 0
  %234 = vmatprep.subr.bf16.mxu0 0
  %235 = vmatpush2.bf16.msra.mxu0 0
  %236 = vmatprep.subr.bf16.mxu0 0
  %237 = vmatpush2.bf16.msra.mxu0 0
  %238 = vmatprep.subr.bf16.mxu0 0
  %239 = vmatpush2.bf16.msra.mxu0 0
  %240 = vmatprep.subr.bf16.mxu0 0
  %241 = vmatpush2.bf16.msra.mxu0 0
  %242 = vmatprep.subr.bf16.mxu0 0
  %243 = vmatpush2.bf16.msra.mxu0 0
  %244 = vmatprep.subr.bf16.mxu0 0
  %245 = vmatpush2.bf16.msra.mxu0 0
  %246 = vmatprep.mubr.bf16.mxu0 0
  %247 = vmatmul.mubr.bf16.gmra.mxu0 %v188
  %v248 = vpop.f32.mrf.mxu0
  %v249 = vadd.f32 0.0, %v248
  %v250 = vpop.f32.mrf.mxu0
  %v251 = vpop.f32.mrf.mxu0
  %v252 = vadd.f32 0.0, %v251
  %v253 = vpop.f32.mrf.mxu0
  %254 = vmatprep.mubr.bf16.mxu0 0
  %255 = vmatmul.mubr.bf16.gmra.mxu0 %v189
  %v256 = vpop.f32.mrf.mxu0
  %v257 = vadd.f32 0.0, %v256
  %v258 = vpop.f32.mrf.mxu0
  %v259 = vpop.f32.mrf.mxu0
  %v260 = vadd.f32 0.0, %v259
  %v261 = vpop.f32.mrf.mxu0
  %262 = vdwg.mxu0
  %v264 = vsel %vm63, %v125, 0
  %v267 = vsel %vm63, %v126, 0
  %vm269 = vcmask 1043456
  %vm270 = vcmask 1044480
  %v271 = vsel %vm269, 4294967295, 65535
  %v272 = vsel %vm270, %v271, 0
  %v274 = vand.u32 %v129, %v272
  %276 = vmatprep.subr.bf16.mxu0 0
  %277 = vmatpush1.bf16.msra.mxu0 0
  %278 = vmatprep.subr.bf16.mxu0 0
  %279 = vmatpush1.bf16.msra.mxu0 0
  %280 = vmatprep.subr.bf16.mxu0 0
  %281 = vmatpush1.bf16.msra.mxu0 0
  %282 = vmatprep.subr.bf16.mxu0 0
  %283 = vmatpush1.bf16.msra.mxu0 0
  %284 = vmatprep.subr.bf16.mxu0 0
  %285 = vmatpush1.bf16.msra.mxu0 0
  %286 = vmatprep.subr.bf16.mxu0 0
  %287 = vmatpush1.bf16.msra.mxu0 0
  %288 = vmatprep.subr.bf16.mxu0 0
  %289 = vmatpush1.bf16.msra.mxu0 0
  %290 = vmatprep.subr.bf16.mxu0 0
  %291 = vmatpush1.bf16.msra.mxu0 %v274
  %292 = vmatprep.subr.bf16.mxu0 0
  %293 = vmatpush2.bf16.msra.mxu0 0
  %294 = vmatprep.subr.bf16.mxu0 0
  %295 = vmatpush2.bf16.msra.mxu0 0
  %296 = vmatprep.subr.bf16.mxu0 0
  %297 = vmatpush2.bf16.msra.mxu0 0
  %298 = vmatprep.subr.bf16.mxu0 0
  %299 = vmatpush2.bf16.msra.mxu0 0
  %300 = vmatprep.subr.bf16.mxu0 0
  %301 = vmatpush2.bf16.msra.mxu0 0
  %302 = vmatprep.subr.bf16.mxu0 0
  %303 = vmatpush2.bf16.msra.mxu0 0
  %304 = vmatprep.subr.bf16.mxu0 0
  %305 = vmatpush2.bf16.msra.mxu0 0
  %306 = vmatprep.subr.bf16.mxu0 0
  %307 = vmatpush2.bf16.msra.mxu0 0
  %308 = vmatprep.mubr.bf16.mxu0 0
  %309 = vmatmul.mubr.bf16.gmra.mxu0 %v264
  %v310 = vpop.f32.mrf.mxu0
  %v311 = vadd.f32 %v249, %v310
  %v312 = vpop.f32.mrf.mxu0
  %v313 = vpop.f32.mrf.mxu0
  %v314 = vadd.f32 %v252, %v313
  %v315 = vpop.f32.mrf.mxu0
  %316 = vmatprep.mubr.bf16.mxu0 0
  %317 = vmatmul.mubr.bf16.gmra.mxu0 %v267
  %v318 = vpop.f32.mrf.mxu0
  %v319 = vadd.f32 %v257, %v318
  %v320 = vpop.f32.mrf.mxu0
  %v321 = vpop.f32.mrf.mxu0
  %v322 = vadd.f32 %v260, %v321
  %v323 = vpop.f32.mrf.mxu0
  %324 = vdwg.mxu0
  %v325 = vld [vmem:[%s8] sm:$0x1]
  %v327 = vlaneseq
  %v328 = vshrl.u32 %v327, 7
  %v329 = vsub.s32 0, %v328
  %v330 = vrot.slane %v325, %v329
  %v332 = vadd.f32 %v311, %v330
  %v333 = vadd.f32 %v314, %v330
  %v334 = vadd.f32 %v319, %v330
  %v335 = vadd.f32 %v322, %v330
  %vm336 = vcmp.ge.f32.partialorder %v332, 0.0
  %vm337 = vcmp.ge.f32.partialorder %v333, 0.0
  %vm338 = vcmp.ge.f32.partialorder %v334, 0.0
  %vm339 = vcmp.ge.f32.partialorder %v335, 0.0
  %v340 = vmul.f32 %v332, 0.0
  %v341 = vmul.f32 %v333, 0.0
  %v342 = vmul.f32 %v334, 0.0
  %v343 = vmul.f32 %v335, 0.0
  %v344 = vsel %vm336, %v332, %v340
  %v345 = vsel %vm337, %v333, %v341
  %v346 = vsel %vm338, %v334, %v342
  %v347 = vsel %vm339, %v335, %v343
  %v348 = vld [vmem:[%s9] sm:$0x1]
  %v349 = vld [vmem:[%s10] sm:$0x1]
  %v350 = vadd.f32 %v344, %v345
  %v351 = vadd.f32 %v350, %v346
  %v352 = vadd.f32 %v351, %v347
  %v353 = vrot.slane %v352, 4
  %v354 = vadd.f32 %v352, %v353
  %v355 = vrot.slane %v354, 2
  %v356 = vadd.f32 %v354, %v355
  %v357 = vrot.slane %v356, 1
  %v358 = vadd.f32 %v356, %v357
  %v359 = vmul.f32 %v358, %v77
  %v360 = vmul.f32 %v344, %v344
  %v361 = vmul.f32 %v345, %v345
  %v362 = vmul.f32 %v346, %v346
  %v363 = vmul.f32 %v347, %v347
  %v364 = vadd.f32 %v360, %v361
  %v365 = vadd.f32 %v364, %v362
  %v366 = vadd.f32 %v365, %v363
  %v367 = vrot.slane %v366, 4
  %v368 = vadd.f32 %v366, %v367
  %v369 = vrot.slane %v368, 2
  %v370 = vadd.f32 %v368, %v369
  %v371 = vrot.slane %v370, 1
  %v372 = vadd.f32 %v370, %v371
  %v373 = vmul.f32 %v372, %v77
  %v374 = vmul.f32 %v359, %v359
  %v375 = vsub.f32 %v373, %v374
  %v376 = vmax.f32 %v375, 0.0
  %v377 = vadd.f32 %v376, 1e-05
  %v378 = vrsqrt.pop %v377
  %v379 = vmul.f32 %v348, %v378
  %v381 = vlaneseq
  %v382 = vshrl.u32 %v381, 7
  %v383 = vsub.s32 0, %v382
  %v384 = vrot.slane %v379, %v383
  %v386 = vmul.f32 %v344, %v384
  %v387 = vmul.f32 %v345, %v384
  %v388 = vmul.f32 %v346, %v384
  %v389 = vmul.f32 %v347, %v384
  %v390 = vmul.f32 %v359, %v379
  %v391 = vsub.f32 %v349, %v390
  %v393 = vlaneseq
  %v394 = vshrl.u32 %v393, 7
  %v395 = vsub.s32 0, %v394
  %v396 = vrot.slane %v391, %v395
  %v398 = vadd.f32 %v386, %v396
  %v399 = vadd.f32 %v387, %v396
  %v400 = vadd.f32 %v388, %v396
  %v401 = vadd.f32 %v389, %v396
  %v402 = vld [vmem:[%s11] sm:$0xff]
  %v403 = vld [vmem:[%s11 + $0x8] sm:$0xff]
  %v404 = vld [vmem:[%s11 + $0x10] sm:$0xff]
  %v405 = vld [vmem:[%s11 + $0x18] sm:$0xff]
  %v406 = vld [vmem:[%s11 + $0x20] sm:$0xff]
  %v407 = vld [vmem:[%s11 + $0x28] sm:$0xff]
  %v408 = vld [vmem:[%s11 + $0x30] sm:$0xff]
  %v409 = vld [vmem:[%s11 + $0x38] sm:$0xff]
  %v410 = vld [vmem:[%s11 + $0x40] sm:$0xff]
  %v411 = vld [vmem:[%s11 + $0x48] sm:$0xff]
  %v412 = vld [vmem:[%s11 + $0x50] sm:$0xff]
  %v413 = vld [vmem:[%s11 + $0x58] sm:$0xff]
  %v414 = vld [vmem:[%s11 + $0x60] sm:$0xff]
  %v415 = vld [vmem:[%s11 + $0x68] sm:$0xff]
  %v416 = vld [vmem:[%s11 + $0x70] sm:$0xff]
  %v417 = vld [vmem:[%s11 + $0x78] sm:$0xff]
  %v418 = vld [vmem:[%s12] sm:$0x1]
  %v419 = vpack.c.bf16 %v399, %v398
  %v420 = vpack.c.bf16 %v401, %v400
  %v421 = vpack.c.bf16 %v403, %v402
  %v422 = vpack.c.bf16 %v405, %v404
  %v423 = vpack.c.bf16 %v407, %v406
  %v424 = vpack.c.bf16 %v409, %v408
  %v425 = vpack.c.bf16 %v411, %v410
  %v426 = vpack.c.bf16 %v413, %v412
  %v427 = vpack.c.bf16 %v415, %v414
  %v428 = vpack.c.bf16 %v417, %v416
  %v430 = vlaneseq
  %v431 = vshrl.u32 %v430, 7
  %v432 = vsub.s32 0, %v431
  %v433 = vrot.slane %v418, %v432
  %435 = vmatprep.subr.bf16.mxu0 0
  %436 = vmatpush1.bf16.msra.mxu0 %v428
  %437 = vmatprep.subr.bf16.mxu0 0
  %438 = vmatpush1.bf16.msra.mxu0 %v427
  %439 = vmatprep.subr.bf16.mxu0 0
  %440 = vmatpush1.bf16.msra.mxu0 %v426
  %441 = vmatprep.subr.bf16.mxu0 0
  %442 = vmatpush1.bf16.msra.mxu0 %v425
  %443 = vmatprep.subr.bf16.mxu0 0
  %444 = vmatpush1.bf16.msra.mxu0 %v424
  %445 = vmatprep.subr.bf16.mxu0 0
  %446 = vmatpush1.bf16.msra.mxu0 %v423
  %447 = vmatprep.subr.bf16.mxu0 0
  %448 = vmatpush1.bf16.msra.mxu0 %v422
  %449 = vmatprep.subr.bf16.mxu0 0
  %450 = vmatpush1.bf16.msra.mxu0 %v421
  %451 = vmatprep.subr.bf16.mxu0 0
  %452 = vmatpush2.bf16.msra.mxu0 0
  %453 = vmatprep.subr.bf16.mxu0 0
  %454 = vmatpush2.bf16.msra.mxu0 0
  %455 = vmatprep.subr.bf16.mxu0 0
  %456 = vmatpush2.bf16.msra.mxu0 0
  %457 = vmatprep.subr.bf16.mxu0 0
  %458 = vmatpush2.bf16.msra.mxu0 0
  %459 = vmatprep.subr.bf16.mxu0 0
  %460 = vmatpush2.bf16.msra.mxu0 0
  %461 = vmatprep.subr.bf16.mxu0 0
  %462 = vmatpush2.bf16.msra.mxu0 0
  %463 = vmatprep.subr.bf16.mxu0 0
  %464 = vmatpush2.bf16.msra.mxu0 0
  %465 = vmatprep.subr.bf16.mxu0 0
  %466 = vmatpush2.bf16.msra.mxu0 0
  %467 = vmatprep.mubr.bf16.mxu0 0
  %468 = vmatmul.mubr.bf16.gmra.mxu0 %v419
  %v469 = vpop.f32.mrf.mxu0
  %v470 = vadd.f32 %v433, %v469
  %v471 = vpop.f32.mrf.mxu0
  %v472 = vpop.f32.mrf.mxu0
  %v473 = vadd.f32 %v433, %v472
  %v474 = vpop.f32.mrf.mxu0
  %475 = vmatprep.mubr.bf16.mxu0 0
  %476 = vmatmul.mubr.bf16.gmra.mxu0 %v420
  %v477 = vpop.f32.mrf.mxu0
  %v478 = vadd.f32 %v433, %v477
  %v479 = vpop.f32.mrf.mxu0
  %v480 = vpop.f32.mrf.mxu0
  %v481 = vadd.f32 %v433, %v480
  %v482 = vpop.f32.mrf.mxu0
  %483 = vdwg.mxu0
  %vm484 = vcmp.ge.f32.partialorder %v470, 0.0
  %vm485 = vcmp.ge.f32.partialorder %v473, 0.0
  %vm486 = vcmp.ge.f32.partialorder %v478, 0.0
  %vm487 = vcmp.ge.f32.partialorder %v481, 0.0
  %v488 = vmul.f32 %v470, 0.0
  %v489 = vmul.f32 %v473, 0.0
  %v490 = vmul.f32 %v478, 0.0
  %v491 = vmul.f32 %v481, 0.0
  %v492 = vsel %vm484, %v470, %v488
  %v493 = vsel %vm485, %v473, %v489
  %v494 = vsel %vm486, %v478, %v490
  %v495 = vsel %vm487, %v481, %v491
  %v496 = vld [vmem:[%s13] sm:$0x1]
  %v497 = vld [vmem:[%s14] sm:$0x1]
  %v498 = vadd.f32 %v492, %v493
  %v499 = vadd.f32 %v498, %v494
  %v500 = vadd.f32 %v499, %v495
  %v501 = vrot.slane %v500, 4
  %v502 = vadd.f32 %v500, %v501
  %v503 = vrot.slane %v502, 2
  %v504 = vadd.f32 %v502, %v503
  %v505 = vrot.slane %v504, 1
  %v506 = vadd.f32 %v504, %v505
  %v507 = vmul.f32 %v506, %v77
  %v508 = vmul.f32 %v492, %v492
  %v509 = vmul.f32 %v493, %v493
  %v510 = vmul.f32 %v494, %v494
  %v511 = vmul.f32 %v495, %v495
  %v512 = vadd.f32 %v508, %v509
  %v513 = vadd.f32 %v512, %v510
  %v514 = vadd.f32 %v513, %v511
  %v515 = vrot.slane %v514, 4
  %v516 = vadd.f32 %v514, %v515
  %v517 = vrot.slane %v516, 2
  %v518 = vadd.f32 %v516, %v517
  %v519 = vrot.slane %v518, 1
  %v520 = vadd.f32 %v518, %v519
  %v521 = vmul.f32 %v520, %v77
  %v522 = vmul.f32 %v507, %v507
  %v523 = vsub.f32 %v521, %v522
  %v524 = vmax.f32 %v523, 0.0
  %v525 = vadd.f32 %v524, 1e-05
  %v526 = vrsqrt.pop %v525
  %v527 = vmul.f32 %v496, %v526
  %v529 = vlaneseq
  %v530 = vshrl.u32 %v529, 7
  %v531 = vsub.s32 0, %v530
  %v532 = vrot.slane %v527, %v531
  %v534 = vmul.f32 %v492, %v532
  %v535 = vmul.f32 %v493, %v532
  %v536 = vmul.f32 %v494, %v532
  %v537 = vmul.f32 %v495, %v532
  %v538 = vmul.f32 %v507, %v527
  %v539 = vsub.f32 %v497, %v538
  %v541 = vlaneseq
  %v542 = vshrl.u32 %v541, 7
  %v543 = vsub.s32 0, %v542
  %v544 = vrot.slane %v539, %v543
  %v546 = vadd.f32 %v534, %v544
  %v547 = vadd.f32 %v535, %v544
  %v548 = vadd.f32 %v536, %v544
  %v549 = vadd.f32 %v537, %v544
  %v550 = vld [vmem:[%s15] sm:$0xff]
  %v551 = vld [vmem:[%s15 + $0x8] sm:$0xff]
  %v552 = vld [vmem:[%s15 + $0x10] sm:$0xff]
  %v553 = vld [vmem:[%s15 + $0x18] sm:$0xff]
  %v554 = vld [vmem:[%s15 + $0x20] sm:$0xff]
  %v555 = vld [vmem:[%s15 + $0x28] sm:$0xff]
  %v556 = vld [vmem:[%s15 + $0x30] sm:$0xff]
  %v557 = vld [vmem:[%s15 + $0x38] sm:$0xff]
  %v558 = vld [vmem:[%s15 + $0x40] sm:$0xff]
  %v559 = vld [vmem:[%s15 + $0x48] sm:$0xff]
  %v560 = vld [vmem:[%s15 + $0x50] sm:$0xff]
  %v561 = vld [vmem:[%s15 + $0x58] sm:$0xff]
  %v562 = vld [vmem:[%s15 + $0x60] sm:$0xff]
  %v563 = vld [vmem:[%s15 + $0x68] sm:$0xff]
  %v564 = vld [vmem:[%s15 + $0x70] sm:$0xff]
  %v565 = vld [vmem:[%s15 + $0x78] sm:$0xff]
  %v566 = vld [vmem:[%s16] sm:$0x1]
  %v567 = vpack.c.bf16 %v547, %v546
  %v568 = vpack.c.bf16 %v549, %v548
  %v569 = vpack.c.bf16 %v551, %v550
  %v570 = vpack.c.bf16 %v553, %v552
  %v571 = vpack.c.bf16 %v555, %v554
  %v572 = vpack.c.bf16 %v557, %v556
  %v573 = vpack.c.bf16 %v559, %v558
  %v574 = vpack.c.bf16 %v561, %v560
  %v575 = vpack.c.bf16 %v563, %v562
  %v576 = vpack.c.bf16 %v565, %v564
  %v578 = vlaneseq
  %v579 = vshrl.u32 %v578, 7
  %v580 = vsub.s32 0, %v579
  %v581 = vrot.slane %v566, %v580
  %583 = vmatprep.subr.bf16.mxu0 0
  %584 = vmatpush1.bf16.msra.mxu0 %v576
  %585 = vmatprep.subr.bf16.mxu0 0
  %586 = vmatpush1.bf16.msra.mxu0 %v575
  %587 = vmatprep.subr.bf16.mxu0 0
  %588 = vmatpush1.bf16.msra.mxu0 %v574
  %589 = vmatprep.subr.bf16.mxu0 0
  %590 = vmatpush1.bf16.msra.mxu0 %v573
  %591 = vmatprep.subr.bf16.mxu0 0
  %592 = vmatpush1.bf16.msra.mxu0 %v572
  %593 = vmatprep.subr.bf16.mxu0 0
  %594 = vmatpush1.bf16.msra.mxu0 %v571
  %595 = vmatprep.subr.bf16.mxu0 0
  %596 = vmatpush1.bf16.msra.mxu0 %v570
  %597 = vmatprep.subr.bf16.mxu0 0
  %598 = vmatpush1.bf16.msra.mxu0 %v569
  %599 = vmatprep.subr.bf16.mxu0 0
  %600 = vmatpush2.bf16.msra.mxu0 0
  %601 = vmatprep.subr.bf16.mxu0 0
  %602 = vmatpush2.bf16.msra.mxu0 0
  %603 = vmatprep.subr.bf16.mxu0 0
  %604 = vmatpush2.bf16.msra.mxu0 0
  %605 = vmatprep.subr.bf16.mxu0 0
  %606 = vmatpush2.bf16.msra.mxu0 0
  %607 = vmatprep.subr.bf16.mxu0 0
  %608 = vmatpush2.bf16.msra.mxu0 0
  %609 = vmatprep.subr.bf16.mxu0 0
  %610 = vmatpush2.bf16.msra.mxu0 0
  %611 = vmatprep.subr.bf16.mxu0 0
  %612 = vmatpush2.bf16.msra.mxu0 0
  %613 = vmatprep.subr.bf16.mxu0 0
  %614 = vmatpush2.bf16.msra.mxu0 0
  %615 = vmatprep.mubr.bf16.mxu0 0
  %616 = vmatmul.mubr.bf16.gmra.mxu0 %v567
  %v617 = vpop.f32.mrf.mxu0
  %v618 = vadd.f32 %v581, %v617
  %v619 = vpop.f32.mrf.mxu0
  %v620 = vpop.f32.mrf.mxu0
  %v621 = vadd.f32 %v581, %v620
  %v622 = vpop.f32.mrf.mxu0
  %623 = vmatprep.mubr.bf16.mxu0 0
  %624 = vmatmul.mubr.bf16.gmra.mxu0 %v568
  %v625 = vpop.f32.mrf.mxu0
  %v626 = vadd.f32 %v581, %v625
  %v627 = vpop.f32.mrf.mxu0
  %v628 = vpop.f32.mrf.mxu0
  %v629 = vadd.f32 %v581, %v628
  %v630 = vpop.f32.mrf.mxu0
  %631 = vdwg.mxu0
  %632 = vst [vmem:[%s17] sm:$0xff] %v618
  %633 = vst [vmem:[%s17 + $0x8] sm:$0xff] %v621
  %634 = vst [vmem:[%s17 + $0x10] sm:$0xff] %v626
  %635 = vst [vmem:[%s17 + $0x18] sm:$0xff] %v629
  // Predicated region
  $region70: #{nu_model_forward.6} parent=0 // pred_check
    _
  $region71: #{nu_model_forward.6} parent=0 // pred_check_branch
    %637 = sbr.rel (0) target = $region73
  $region72: #{nu_model_forward.6} parent=0 // pred_region
    _
  $region73: #{nu_model_forward.6} parent=0 // pred_fallthru
    _
  // Predicated region
  $region74: #{nu_model_forward.6} parent=0 // pred_check
    _
  $region75: #{nu_model_forward.6} parent=0 // pred_check_branch
    %639 = sbr.rel (0) target = $region77
  $region76: #{nu_model_forward.6} parent=0 // pred_region
    _
  $region77: #{nu_model_forward.6} parent=0 // pred_fallthru
    _

// kernel: nu_model_forward.7
$region0: #{nu_model_forward.7}
  #allocation0 [shape = 'u32[]', space=smem, size = 0x4, offset = 0x4, fixed_abs, tag = 'smem constant byte address 0x4 - core index']
  #allocation1 [shape = 'u32[144,128]{1,0:T(1,128)}', space=vmem, size = 0x12000, scoped, tag = 'internal scratch']
  %s0 = inlined_call_operand.vmem [shape: f32[4,128], index: 0, kind: input, shape index: {}]
  %s1 = inlined_call_operand.vmem [shape: f32[1,128], index: 1, kind: input, shape index: {}]
  %s2 = inlined_call_operand.vmem [shape: f32[1,128], index: 2, kind: input, shape index: {}]
  %s3 = inlined_call_operand.vmem [shape: f32[128,128], index: 3, kind: input, shape index: {}]
  %s4 = inlined_call_operand.vmem [shape: f32[1,128], index: 4, kind: input, shape index: {}]
  %s5 = inlined_call_operand.vmem [shape: f32[1,128], index: 5, kind: input, shape index: {}]
  %s6 = inlined_call_operand.vmem [shape: f32[1,128], index: 6, kind: input, shape index: {}]
  %s7 = inlined_call_operand.vmem [shape: f32[128,128], index: 7, kind: input, shape index: {}]
  %s8 = inlined_call_operand.vmem [shape: f32[1,128], index: 8, kind: input, shape index: {}]
  %s9 = inlined_call_operand.vmem [shape: f32[1,128], index: 9, kind: input, shape index: {}]
  %s10 = inlined_call_operand.vmem [shape: f32[1,128], index: 10, kind: input, shape index: {}]
  %s11 = inlined_call_operand.vmem [shape: f32[128,128], index: 11, kind: input, shape index: {}]
  %s12 = inlined_call_operand.vmem [shape: f32[1,128], index: 12, kind: input, shape index: {}]
  %s13 = inlined_call_operand.vmem [shape: f32[128,128], index: 13, kind: input, shape index: {}]
  %s14 = inlined_call_operand.vmem [shape: f32[1,128], index: 14, kind: input, shape index: {}]
  %s15 = inlined_call_operand.vmem [shape: bf16[128,128], index: 15, kind: input, shape index: {}]
  %s16 = inlined_call_operand.vmem [shape: f32[1,128], index: 16, kind: input, shape index: {}]
  %s17 = inlined_call_operand.vmem [shape: f32[1,128], index: 17, kind: input, shape index: {}]
  %s18 = inlined_call_operand.vmem [shape: f32[4,128], index: 18, kind: output, shape index: {}]
  %s19 = sld [smem:[#allocation0]]
  $region82: #{nu_model_forward.7} parent=0
    _
  %s21 = ssub.s32 1, %s19
  %s22 = scalar_select 0, %s21, %s19
  // Predicated region
  $region2: #{nu_model_forward.7} parent=0 // pred_check
    _
  $region3: #{nu_model_forward.7} parent=0 // pred_check_branch
    %24 = sbr.rel (0) target = $region5
  $region4: #{nu_model_forward.7} parent=0 // pred_region
    _
  $region5: #{nu_model_forward.7} parent=0 // pred_fallthru
    _
  // Predicated region
  $region6: #{nu_model_forward.7} parent=0 // pred_check
    _
  $region7: #{nu_model_forward.7} parent=0 // pred_check_branch
    %26 = sbr.rel (0) target = $region9
  $region8: #{nu_model_forward.7} parent=0 // pred_region
    _
  $region9: #{nu_model_forward.7} parent=0 // pred_fallthru
    _
  // Predicated region
  $region10: #{nu_model_forward.7} parent=0 // pred_check
    _
  $region11: #{nu_model_forward.7} parent=0 // pred_check_branch
    %28 = sbr.rel (0) target = $region13
  $region12: #{nu_model_forward.7} parent=0 // pred_region
    _
  $region13: #{nu_model_forward.7} parent=0 // pred_fallthru
    _
  // Predicated region
  $region14: #{nu_model_forward.7} parent=0 // pred_check
    _
  $region15: #{nu_model_forward.7} parent=0 // pred_check_branch
    %30 = sbr.rel (0) target = $region17
  $region16: #{nu_model_forward.7} parent=0 // pred_region
    _
  $region17: #{nu_model_forward.7} parent=0 // pred_fallthru
    _
  // Predicated region
  $region18: #{nu_model_forward.7} parent=0 // pred_check
    _
  $region19: #{nu_model_forward.7} parent=0 // pred_check_branch
    %32 = sbr.rel (0) target = $region21
  $region20: #{nu_model_forward.7} parent=0 // pred_region
    _
  $region21: #{nu_model_forward.7} parent=0 // pred_fallthru
    _
  // Predicated region
  $region22: #{nu_model_forward.7} parent=0 // pred_check
    _
  $region23: #{nu_model_forward.7} parent=0 // pred_check_branch
    %34 = sbr.rel (0) target = $region25
  $region24: #{nu_model_forward.7} parent=0 // pred_region
    _
  $region25: #{nu_model_forward.7} parent=0 // pred_fallthru
    _
  // Predicated region
  $region26: #{nu_model_forward.7} parent=0 // pred_check
    _
  $region27: #{nu_model_forward.7} parent=0 // pred_check_branch
    %36 = sbr.rel (0) target = $region29
  $region28: #{nu_model_forward.7} parent=0 // pred_region
    _
  $region29: #{nu_model_forward.7} parent=0 // pred_fallthru
    _
  // Predicated region
  $region30: #{nu_model_forward.7} parent=0 // pred_check
    _
  $region31: #{nu_model_forward.7} parent=0 // pred_check_branch
    %38 = sbr.rel (0) target = $region33
  $region32: #{nu_model_forward.7} parent=0 // pred_region
    _
  $region33: #{nu_model_forward.7} parent=0 // pred_fallthru
    _
  // Predicated region
  $region34: #{nu_model_forward.7} parent=0 // pred_check
    _
  $region35: #{nu_model_forward.7} parent=0 // pred_check_branch
    %40 = sbr.rel (0) target = $region37
  $region36: #{nu_model_forward.7} parent=0 // pred_region
    _
  $region37: #{nu_model_forward.7} parent=0 // pred_fallthru
    _
  // Predicated region
  $region38: #{nu_model_forward.7} parent=0 // pred_check
    _
  $region39: #{nu_model_forward.7} parent=0 // pred_check_branch
    %42 = sbr.rel (0) target = $region41
  $region40: #{nu_model_forward.7} parent=0 // pred_region
    _
  $region41: #{nu_model_forward.7} parent=0 // pred_fallthru
    _
  // Predicated region
  $region42: #{nu_model_forward.7} parent=0 // pred_check
    _
  $region43: #{nu_model_forward.7} parent=0 // pred_check_branch
    %44 = sbr.rel (0) target = $region45
  $region44: #{nu_model_forward.7} parent=0 // pred_region
    _
  $region45: #{nu_model_forward.7} parent=0 // pred_fallthru
    _
  // Predicated region
  $region46: #{nu_model_forward.7} parent=0 // pred_check
    _
  $region47: #{nu_model_forward.7} parent=0 // pred_check_branch
    %46 = sbr.rel (0) target = $region49
  $region48: #{nu_model_forward.7} parent=0 // pred_region
    _
  $region49: #{nu_model_forward.7} parent=0 // pred_fallthru
    _
  // Predicated region
  $region50: #{nu_model_forward.7} parent=0 // pred_check
    _
  $region51: #{nu_model_forward.7} parent=0 // pred_check_branch
    %48 = sbr.rel (0) target = $region53
  $region52: #{nu_model_forward.7} parent=0 // pred_region
    _
  $region53: #{nu_model_forward.7} parent=0 // pred_fallthru
    _
  // Predicated region
  $region54: #{nu_model_forward.7} parent=0 // pred_check
    _
  $region55: #{nu_model_forward.7} parent=0 // pred_check_branch
    %50 = sbr.rel (0) target = $region57
  $region56: #{nu_model_forward.7} parent=0 // pred_region
    _
  $region57: #{nu_model_forward.7} parent=0 // pred_fallthru
    _
  // Predicated region
  $region58: #{nu_model_forward.7} parent=0 // pred_check
    _
  $region59: #{nu_model_forward.7} parent=0 // pred_check_branch
    %52 = sbr.rel (0) target = $region61
  $region60: #{nu_model_forward.7} parent=0 // pred_region
    _
  $region61: #{nu_model_forward.7} parent=0 // pred_fallthru
    _
  // Predicated region
  $region62: #{nu_model_forward.7} parent=0 // pred_check
    _
  $region63: #{nu_model_forward.7} parent=0 // pred_check_branch
    %54 = sbr.rel (0) target = $region65
  $region64: #{nu_model_forward.7} parent=0 // pred_region
    _
  $region65: #{nu_model_forward.7} parent=0 // pred_fallthru
    _
  // Predicated region
  $region66: #{nu_model_forward.7} parent=0 // pred_check
    _
  $region67: #{nu_model_forward.7} parent=0 // pred_check_branch
    %56 = sbr.rel (0) target = $region69
  $region68: #{nu_model_forward.7} parent=0 // pred_region
    _
  $region69: #{nu_model_forward.7} parent=0 // pred_fallthru
    _
  // Predicated region
  $region70: #{nu_model_forward.7} parent=0 // pred_check
    _
  $region71: #{nu_model_forward.7} parent=0 // pred_check_branch
    %58 = sbr.rel (0) target = $region73
  $region72: #{nu_model_forward.7} parent=0 // pred_region
    _
  $region73: #{nu_model_forward.7} parent=0 // pred_fallthru
    _
  %v60 = vld [vmem:[%s0] sm:$0xf]
  %v61 = vld [vmem:[%s1] sm:$0x1]
  %v62 = vld [vmem:[%s2] sm:$0x1]
  %vm63 = vcmask 1043456
  %v64 = vsel %vm63, %v60, 0.0
  %v65 = vrot.slane %v64, 4
  %v66 = vadd.f32 %v64, %v65
  %v67 = vrot.slane %v66, 2
  %v68 = vadd.f32 %v66, %v67
  %v69 = vrot.slane %v68, 1
  %v70 = vadd.f32 %v68, %v69
  %v71 = vrcp.pop 4.0
  %v72 = vmul.f32 %v70, %v71
  %v73 = vmul.f32 %v60, %v60
  %v74 = vsel %vm63, %v73, 0.0
  %v75 = vrot.slane %v74, 4
  %v76 = vadd.f32 %v74, %v75
  %v77 = vrot.slane %v76, 2
  %v78 = vadd.f32 %v76, %v77
  %v79 = vrot.slane %v78, 1
  %v80 = vadd.f32 %v78, %v79
  %v81 = vmul.f32 %v80, %v71
  %v82 = vmul.f32 %v72, %v72
  %v83 = vsub.f32 %v81, %v82
  %v84 = vmax.f32 %v83, 0.0
  %v85 = vadd.f32 %v84, 1e-05
  %v86 = vrsqrt.pop %v85
  %v87 = vmul.f32 %v61, %v86
  %v89 = vlaneseq
  %v90 = vshrl.u32 %v89, 7
  %v91 = vsub.s32 0, %v90
  %v92 = vrot.slane %v87, %v91
  %v94 = vmul.f32 %v60, %v92
  %v95 = vmul.f32 %v72, %v87
  %v96 = vsub.f32 %v62, %v95
  %v98 = vlaneseq
  %v99 = vshrl.u32 %v98, 7
  %v100 = vsub.s32 0, %v99
  %v101 = vrot.slane %v96, %v100
  %v103 = vadd.f32 %v94, %v101
  %v104 = vld [vmem:[%s3] sm:$0xff]
  %v105 = vld [vmem:[%s3 + $0x8] sm:$0xff]
  %v106 = vld [vmem:[%s3 + $0x10] sm:$0xff]
  %v107 = vld [vmem:[%s3 + $0x18] sm:$0xff]
  %v108 = vld [vmem:[%s3 + $0x20] sm:$0xff]
  %v109 = vld [vmem:[%s3 + $0x28] sm:$0xff]
  %v110 = vld [vmem:[%s3 + $0x30] sm:$0xff]
  %v111 = vld [vmem:[%s3 + $0x38] sm:$0xff]
  %v112 = vld [vmem:[%s3 + $0x40] sm:$0xff]
  %v113 = vld [vmem:[%s3 + $0x48] sm:$0xff]
  %v114 = vld [vmem:[%s3 + $0x50] sm:$0xff]
  %v115 = vld [vmem:[%s3 + $0x58] sm:$0xff]
  %v116 = vld [vmem:[%s3 + $0x60] sm:$0xff]
  %v117 = vld [vmem:[%s3 + $0x68] sm:$0xff]
  %v118 = vld [vmem:[%s3 + $0x70] sm:$0xff]
  %v119 = vld [vmem:[%s3 + $0x78] sm:$0xff]
  %v120 = vld [vmem:[%s4] sm:$0x1]
  %v121 = vpack.c.bf16 %v103, %v103
  %v122 = vpack.c.bf16 %v105, %v104
  %v123 = vpack.c.bf16 %v107, %v106
  %v124 = vpack.c.bf16 %v109, %v108
  %v125 = vpack.c.bf16 %v111, %v110
  %v126 = vpack.c.bf16 %v113, %v112
  %v127 = vpack.c.bf16 %v115, %v114
  %v128 = vpack.c.bf16 %v117, %v116
  %v129 = vpack.c.bf16 %v119, %v118
  %v131 = vlaneseq
  %v132 = vshrl.u32 %v131, 7
  %v133 = vsub.s32 0, %v132
  %v134 = vrot.slane %v120, %v133
  %136 = vmatprep.subr.bf16.mxu0 0
  %137 = vmatpush1.bf16.msra.mxu0 %v129
  %138 = vmatprep.subr.bf16.mxu0 0
  %139 = vmatpush1.bf16.msra.mxu0 %v128
  %140 = vmatprep.subr.bf16.mxu0 0
  %141 = vmatpush1.bf16.msra.mxu0 %v127
  %142 = vmatprep.subr.bf16.mxu0 0
  %143 = vmatpush1.bf16.msra.mxu0 %v126
  %144 = vmatprep.subr.bf16.mxu0 0
  %145 = vmatpush1.bf16.msra.mxu0 %v125
  %146 = vmatprep.subr.bf16.mxu0 0
  %147 = vmatpush1.bf16.msra.mxu0 %v124
  %148 = vmatprep.subr.bf16.mxu0 0
  %149 = vmatpush1.bf16.msra.mxu0 %v123
  %150 = vmatprep.subr.bf16.mxu0 0
  %151 = vmatpush1.bf16.msra.mxu0 %v122
  %152 = vmatprep.subr.bf16.mxu0 0
  %153 = vmatpush2.bf16.msra.mxu0 0
  %154 = vmatprep.subr.bf16.mxu0 0
  %155 = vmatpush2.bf16.msra.mxu0 0
  %156 = vmatprep.subr.bf16.mxu0 0
  %157 = vmatpush2.bf16.msra.mxu0 0
  %158 = vmatprep.subr.bf16.mxu0 0
  %159 = vmatpush2.bf16.msra.mxu0 0
  %160 = vmatprep.subr.bf16.mxu0 0
  %161 = vmatpush2.bf16.msra.mxu0 0
  %162 = vmatprep.subr.bf16.mxu0 0
  %163 = vmatpush2.bf16.msra.mxu0 0
  %164 = vmatprep.subr.bf16.mxu0 0
  %165 = vmatpush2.bf16.msra.mxu0 0
  %166 = vmatprep.subr.bf16.mxu0 0
  %167 = vmatpush2.bf16.msra.mxu0 0
  %168 = vmatprep.mubr.bf16.mxu0 0
  %169 = vmatmul.mubr.bf16.gmra.mxu0 %v121
  %v170 = vpop.f32.mrf.mxu0
  %v171 = vadd.f32 %v134, %v170
  %v172 = vpop.f32.mrf.mxu0
  %v173 = vpop.f32.mrf.mxu0
  %v174 = vpop.f32.mrf.mxu0
  %175 = vdwg.mxu0
  %vm176 = vcmp.ge.f32.partialorder %v171, 0.0
  %v177 = vmul.f32 %v171, 0.0
  %v178 = vsel %vm176, %v171, %v177
  %v179 = vld [vmem:[%s5] sm:$0x1]
  %v180 = vld [vmem:[%s6] sm:$0x1]
  %v181 = vsel %vm63, %v178, 0.0
  %v182 = vrot.slane %v181, 4
  %v183 = vadd.f32 %v181, %v182
  %v184 = vrot.slane %v183, 2
  %v185 = vadd.f32 %v183, %v184
  %v186 = vrot.slane %v185, 1
  %v187 = vadd.f32 %v185, %v186
  %v188 = vmul.f32 %v187, %v71
  %v189 = vmul.f32 %v178, %v178
  %v190 = vsel %vm63, %v189, 0.0
  %v191 = vrot.slane %v190, 4
  %v192 = vadd.f32 %v190, %v191
  %v193 = vrot.slane %v192, 2
  %v194 = vadd.f32 %v192, %v193
  %v195 = vrot.slane %v194, 1
  %v196 = vadd.f32 %v194, %v195
  %v197 = vmul.f32 %v196, %v71
  %v198 = vmul.f32 %v188, %v188
  %v199 = vsub.f32 %v197, %v198
  %v200 = vmax.f32 %v199, 0.0
  %v201 = vadd.f32 %v200, 1e-05
  %v202 = vrsqrt.pop %v201
  %v203 = vmul.f32 %v179, %v202
  %v205 = vlaneseq
  %v206 = vshrl.u32 %v205, 7
  %v207 = vsub.s32 0, %v206
  %v208 = vrot.slane %v203, %v207
  %v210 = vmul.f32 %v178, %v208
  %v211 = vmul.f32 %v188, %v203
  %v212 = vsub.f32 %v180, %v211
  %v214 = vlaneseq
  %v215 = vshrl.u32 %v214, 7
  %v216 = vsub.s32 0, %v215
  %v217 = vrot.slane %v212, %v216
  %v219 = vadd.f32 %v210, %v217
  %v220 = vld [vmem:[%s7] sm:$0xff]
  %v221 = vld [vmem:[%s7 + $0x8] sm:$0xff]
  %v222 = vld [vmem:[%s7 + $0x10] sm:$0xff]
  %v223 = vld [vmem:[%s7 + $0x18] sm:$0xff]
  %v224 = vld [vmem:[%s7 + $0x20] sm:$0xff]
  %v225 = vld [vmem:[%s7 + $0x28] sm:$0xff]
  %v226 = vld [vmem:[%s7 + $0x30] sm:$0xff]
  %v227 = vld [vmem:[%s7 + $0x38] sm:$0xff]
  %v228 = vld [vmem:[%s7 + $0x40] sm:$0xff]
  %v229 = vld [vmem:[%s7 + $0x48] sm:$0xff]
  %v230 = vld [vmem:[%s7 + $0x50] sm:$0xff]
  %v231 = vld [vmem:[%s7 + $0x58] sm:$0xff]
  %v232 = vld [vmem:[%s7 + $0x60] sm:$0xff]
  %v233 = vld [vmem:[%s7 + $0x68] sm:$0xff]
  %v234 = vld [vmem:[%s7 + $0x70] sm:$0xff]
  %v235 = vld [vmem:[%s7 + $0x78] sm:$0xff]
  %v236 = vld [vmem:[%s8] sm:$0x1]
  %v237 = vpack.c.bf16 %v219, %v219
  %v238 = vpack.c.bf16 %v221, %v220
  %v239 = vpack.c.bf16 %v223, %v222
  %v240 = vpack.c.bf16 %v225, %v224
  %v241 = vpack.c.bf16 %v227, %v226
  %v242 = vpack.c.bf16 %v229, %v228
  %v243 = vpack.c.bf16 %v231, %v230
  %v244 = vpack.c.bf16 %v233, %v232
  %v245 = vpack.c.bf16 %v235, %v234
  %v247 = vlaneseq
  %v248 = vshrl.u32 %v247, 7
  %v249 = vsub.s32 0, %v248
  %v250 = vrot.slane %v236, %v249
  %252 = vmatprep.subr.bf16.mxu0 0
  %253 = vmatpush1.bf16.msra.mxu0 %v245
  %254 = vmatprep.subr.bf16.mxu0 0
  %255 = vmatpush1.bf16.msra.mxu0 %v244
  %256 = vmatprep.subr.bf16.mxu0 0
  %257 = vmatpush1.bf16.msra.mxu0 %v243
  %258 = vmatprep.subr.bf16.mxu0 0
  %259 = vmatpush1.bf16.msra.mxu0 %v242
  %260 = vmatprep.subr.bf16.mxu0 0
  %261 = vmatpush1.bf16.msra.mxu0 %v241
  %262 = vmatprep.subr.bf16.mxu0 0
  %263 = vmatpush1.bf16.msra.mxu0 %v240
  %264 = vmatprep.subr.bf16.mxu0 0
  %265 = vmatpush1.bf16.msra.mxu0 %v239
  %266 = vmatprep.subr.bf16.mxu0 0
  %267 = vmatpush1.bf16.msra.mxu0 %v238
  %268 = vmatprep.subr.bf16.mxu0 0
  %269 = vmatpush2.bf16.msra.mxu0 0
  %270 = vmatprep.subr.bf16.mxu0 0
  %271 = vmatpush2.bf16.msra.mxu0 0
  %272 = vmatprep.subr.bf16.mxu0 0
  %273 = vmatpush2.bf16.msra.mxu0 0
  %274 = vmatprep.subr.bf16.mxu0 0
  %275 = vmatpush2.bf16.msra.mxu0 0
  %276 = vmatprep.subr.bf16.mxu0 0
  %277 = vmatpush2.bf16.msra.mxu0 0
  %278 = vmatprep.subr.bf16.mxu0 0
  %279 = vmatpush2.bf16.msra.mxu0 0
  %280 = vmatprep.subr.bf16.mxu0 0
  %281 = vmatpush2.bf16.msra.mxu0 0
  %282 = vmatprep.subr.bf16.mxu0 0
  %283 = vmatpush2.bf16.msra.mxu0 0
  %284 = vmatprep.mubr.bf16.mxu0 0
  %285 = vmatmul.mubr.bf16.gmra.mxu0 %v237
  %v286 = vpop.f32.mrf.mxu0
  %v287 = vadd.f32 %v250, %v286
  %v288 = vpop.f32.mrf.mxu0
  %v289 = vpop.f32.mrf.mxu0
  %v290 = vpop.f32.mrf.mxu0
  %291 = vdwg.mxu0
  %vm292 = vcmp.ge.f32.partialorder %v287, 0.0
  %v293 = vmul.f32 %v287, 0.0
  %v294 = vsel %vm292, %v287, %v293
  %v295 = vld [vmem:[%s9] sm:$0x1]
  %v296 = vld [vmem:[%s10] sm:$0x1]
  %v297 = vsel %vm63, %v294, 0.0
  %v298 = vrot.slane %v297, 4
  %v299 = vadd.f32 %v297, %v298
  %v300 = vrot.slane %v299, 2
  %v301 = vadd.f32 %v299, %v300
  %v302 = vrot.slane %v301, 1
  %v303 = vadd.f32 %v301, %v302
  %v304 = vmul.f32 %v303, %v71
  %v305 = vmul.f32 %v294, %v294
  %v306 = vsel %vm63, %v305, 0.0
  %v307 = vrot.slane %v306, 4
  %v308 = vadd.f32 %v306, %v307
  %v309 = vrot.slane %v308, 2
  %v310 = vadd.f32 %v308, %v309
  %v311 = vrot.slane %v310, 1
  %v312 = vadd.f32 %v310, %v311
  %v313 = vmul.f32 %v312, %v71
  %v314 = vmul.f32 %v304, %v304
  %v315 = vsub.f32 %v313, %v314
  %v316 = vmax.f32 %v315, 0.0
  %v317 = vadd.f32 %v316, 1e-05
  %v318 = vrsqrt.pop %v317
  %v319 = vmul.f32 %v295, %v318
  %v321 = vlaneseq
  %v322 = vshrl.u32 %v321, 7
  %v323 = vsub.s32 0, %v322
  %v324 = vrot.slane %v319, %v323
  %v326 = vmul.f32 %v294, %v324
  %v327 = vmul.f32 %v304, %v319
  %v328 = vsub.f32 %v296, %v327
  %v330 = vlaneseq
  %v331 = vshrl.u32 %v330, 7
  %v332 = vsub.s32 0, %v331
  %v333 = vrot.slane %v328, %v332
  %v335 = vadd.f32 %v326, %v333
  %v336 = vld [vmem:[%s11] sm:$0xff]
  %v337 = vld [vmem:[%s11 + $0x8] sm:$0xff]
  %v338 = vld [vmem:[%s11 + $0x10] sm:$0xff]
  %v339 = vld [vmem:[%s11 + $0x18] sm:$0xff]
  %v340 = vld [vmem:[%s11 + $0x20] sm:$0xff]
  %v341 = vld [vmem:[%s11 + $0x28] sm:$0xff]
  %v342 = vld [vmem:[%s11 + $0x30] sm:$0xff]
  %v343 = vld [vmem:[%s11 + $0x38] sm:$0xff]
  %v344 = vld [vmem:[%s11 + $0x40] sm:$0xff]
  %v345 = vld [vmem:[%s11 + $0x48] sm:$0xff]
  %v346 = vld [vmem:[%s11 + $0x50] sm:$0xff]
  %v347 = vld [vmem:[%s11 + $0x58] sm:$0xff]
  %v348 = vld [vmem:[%s11 + $0x60] sm:$0xff]
  %v349 = vld [vmem:[%s11 + $0x68] sm:$0xff]
  %v350 = vld [vmem:[%s11 + $0x70] sm:$0xff]
  %v351 = vld [vmem:[%s11 + $0x78] sm:$0xff]
  %v352 = vld [vmem:[%s12] sm:$0x1]
  %v353 = vpack.c.bf16 %v335, %v335
  %v354 = vpack.c.bf16 %v337, %v336
  %v355 = vpack.c.bf16 %v339, %v338
  %v356 = vpack.c.bf16 %v341, %v340
  %v357 = vpack.c.bf16 %v343, %v342
  %v358 = vpack.c.bf16 %v345, %v344
  %v359 = vpack.c.bf16 %v347, %v346
  %v360 = vpack.c.bf16 %v349, %v348
  %v361 = vpack.c.bf16 %v351, %v350
  %v363 = vlaneseq
  %v364 = vshrl.u32 %v363, 7
  %v365 = vsub.s32 0, %v364
  %v366 = vrot.slane %v352, %v365
  %368 = vmatprep.subr.bf16.mxu0 0
  %369 = vmatpush1.bf16.msra.mxu0 %v361
  %370 = vmatprep.subr.bf16.mxu0 0
  %371 = vmatpush1.bf16.msra.mxu0 %v360
  %372 = vmatprep.subr.bf16.mxu0 0
  %373 = vmatpush1.bf16.msra.mxu0 %v359
  %374 = vmatprep.subr.bf16.mxu0 0
  %375 = vmatpush1.bf16.msra.mxu0 %v358
  %376 = vmatprep.subr.bf16.mxu0 0
  %377 = vmatpush1.bf16.msra.mxu0 %v357
  %378 = vmatprep.subr.bf16.mxu0 0
  %379 = vmatpush1.bf16.msra.mxu0 %v356
  %380 = vmatprep.subr.bf16.mxu0 0
  %381 = vmatpush1.bf16.msra.mxu0 %v355
  %382 = vmatprep.subr.bf16.mxu0 0
  %383 = vmatpush1.bf16.msra.mxu0 %v354
  %384 = vmatprep.subr.bf16.mxu0 0
  %385 = vmatpush2.bf16.msra.mxu0 0
  %386 = vmatprep.subr.bf16.mxu0 0
  %387 = vmatpush2.bf16.msra.mxu0 0
  %388 = vmatprep.subr.bf16.mxu0 0
  %389 = vmatpush2.bf16.msra.mxu0 0
  %390 = vmatprep.subr.bf16.mxu0 0
  %391 = vmatpush2.bf16.msra.mxu0 0
  %392 = vmatprep.subr.bf16.mxu0 0
  %393 = vmatpush2.bf16.msra.mxu0 0
  %394 = vmatprep.subr.bf16.mxu0 0
  %395 = vmatpush2.bf16.msra.mxu0 0
  %396 = vmatprep.subr.bf16.mxu0 0
  %397 = vmatpush2.bf16.msra.mxu0 0
  %398 = vmatprep.subr.bf16.mxu0 0
  %399 = vmatpush2.bf16.msra.mxu0 0
  %400 = vmatprep.mubr.bf16.mxu0 0
  %401 = vmatmul.mubr.bf16.gmra.mxu0 %v353
  %v402 = vpop.f32.mrf.mxu0
  %v403 = vadd.f32 %v366, %v402
  %v404 = vpop.f32.mrf.mxu0
  %v405 = vpop.f32.mrf.mxu0
  %v406 = vpop.f32.mrf.mxu0
  %407 = vdwg.mxu0
  %v408 = vld [vmem:[%s13] sm:$0xff]
  %v409 = vld [vmem:[%s13 + $0x8] sm:$0xff]
  %v410 = vld [vmem:[%s13 + $0x10] sm:$0xff]
  %v411 = vld [vmem:[%s13 + $0x18] sm:$0xff]
  %v412 = vld [vmem:[%s13 + $0x20] sm:$0xff]
  %v413 = vld [vmem:[%s13 + $0x28] sm:$0xff]
  %v414 = vld [vmem:[%s13 + $0x30] sm:$0xff]
  %v415 = vld [vmem:[%s13 + $0x38] sm:$0xff]
  %v416 = vld [vmem:[%s13 + $0x40] sm:$0xff]
  %v417 = vld [vmem:[%s13 + $0x48] sm:$0xff]
  %v418 = vld [vmem:[%s13 + $0x50] sm:$0xff]
  %v419 = vld [vmem:[%s13 + $0x58] sm:$0xff]
  %v420 = vld [vmem:[%s13 + $0x60] sm:$0xff]
  %v421 = vld [vmem:[%s13 + $0x68] sm:$0xff]
  %v422 = vld [vmem:[%s13 + $0x70] sm:$0xff]
  %v423 = vld [vmem:[%s13 + $0x78] sm:$0xff]
  %v424 = vld [vmem:[%s14] sm:$0x1]
  %v425 = vpack.c.bf16 %v403, %v403
  %v426 = vpack.c.bf16 %v409, %v408
  %v427 = vpack.c.bf16 %v411, %v410
  %v428 = vpack.c.bf16 %v413, %v412
  %v429 = vpack.c.bf16 %v415, %v414
  %v430 = vpack.c.bf16 %v417, %v416
  %v431 = vpack.c.bf16 %v419, %v418
  %v432 = vpack.c.bf16 %v421, %v420
  %v433 = vpack.c.bf16 %v423, %v422
  %v435 = vlaneseq
  %v436 = vshrl.u32 %v435, 7
  %v437 = vsub.s32 0, %v436
  %v438 = vrot.slane %v424, %v437
  %440 = vmatprep.subr.bf16.mxu0 0
  %441 = vmatpush1.bf16.msra.mxu0 %v433
  %442 = vmatprep.subr.bf16.mxu0 0
  %443 = vmatpush1.bf16.msra.mxu0 %v432
  %444 = vmatprep.subr.bf16.mxu0 0
  %445 = vmatpush1.bf16.msra.mxu0 %v431
  %446 = vmatprep.subr.bf16.mxu0 0
  %447 = vmatpush1.bf16.msra.mxu0 %v430
  %448 = vmatprep.subr.bf16.mxu0 0
  %449 = vmatpush1.bf16.msra.mxu0 %v429
  %450 = vmatprep.subr.bf16.mxu0 0
  %451 = vmatpush1.bf16.msra.mxu0 %v428
  %452 = vmatprep.subr.bf16.mxu0 0
  %453 = vmatpush1.bf16.msra.mxu0 %v427
  %454 = vmatprep.subr.bf16.mxu0 0
  %455 = vmatpush1.bf16.msra.mxu0 %v426
  %456 = vmatprep.subr.bf16.mxu0 0
  %457 = vmatpush2.bf16.msra.mxu0 0
  %458 = vmatprep.subr.bf16.mxu0 0
  %459 = vmatpush2.bf16.msra.mxu0 0
  %460 = vmatprep.subr.bf16.mxu0 0
  %461 = vmatpush2.bf16.msra.mxu0 0
  %462 = vmatprep.subr.bf16.mxu0 0
  %463 = vmatpush2.bf16.msra.mxu0 0
  %464 = vmatprep.subr.bf16.mxu0 0
  %465 = vmatpush2.bf16.msra.mxu0 0
  %466 = vmatprep.subr.bf16.mxu0 0
  %467 = vmatpush2.bf16.msra.mxu0 0
  %468 = vmatprep.subr.bf16.mxu0 0
  %469 = vmatpush2.bf16.msra.mxu0 0
  %470 = vmatprep.subr.bf16.mxu0 0
  %471 = vmatpush2.bf16.msra.mxu0 0
  %472 = vmatprep.mubr.bf16.mxu0 0
  %473 = vmatmul.mubr.bf16.gmra.mxu0 %v425
  %v474 = vpop.f32.mrf.mxu0
  %v475 = vadd.f32 %v438, %v474
  %v476 = vpop.f32.mrf.mxu0
  %v477 = vpop.f32.mrf.mxu0
  %v478 = vpop.f32.mrf.mxu0
  %479 = vdwg.mxu0
  %v480 = vld [vmem:[%s16] sm:$0x1]
  %v481 = vld [vmem:[%s17] sm:$0x1]
  %v482 = vsel %vm63, %v475, -inf
  %483 = vmax.xlane.f32.xlu0 %v482
  %v484 = vpop.xlane.xlu0 %483
  %v485 = vsub.f32 %v475, %v484
  %v486 = vmul.f32 %v485, 1.442695
  %v487 = vpow.pop %v486
  %v488 = vpack.c.bf16 %v487, %v487
  %v489 = vld [vmem:[%s15] sm:$0xf]
  %v490 = vld [vmem:[%s15 + $0x4] sm:$0xf]
  %v491 = vld [vmem:[%s15 + $0x8] sm:$0xf]
  %v492 = vld [vmem:[%s15 + $0xc] sm:$0xf]
  %v493 = vld [vmem:[%s15 + $0x10] sm:$0xf]
  %v494 = vld [vmem:[%s15 + $0x14] sm:$0xf]
  %v495 = vld [vmem:[%s15 + $0x18] sm:$0xf]
  %v496 = vld [vmem:[%s15 + $0x1c] sm:$0xf]
  %v497 = vld [vmem:[%s15 + $0x20] sm:$0xf]
  %v498 = vld [vmem:[%s15 + $0x24] sm:$0xf]
  %v499 = vld [vmem:[%s15 + $0x28] sm:$0xf]
  %v500 = vld [vmem:[%s15 + $0x2c] sm:$0xf]
  %v501 = vld [vmem:[%s15 + $0x30] sm:$0xf]
  %v502 = vld [vmem:[%s15 + $0x34] sm:$0xf]
  %v503 = vld [vmem:[%s15 + $0x38] sm:$0xf]
  %v504 = vld [vmem:[%s15 + $0x3c] sm:$0xf]
  %v506 = vlaneseq
  %v507 = vshrl.u32 %v506, 7
  %v508 = vsub.s32 0, %v507
  %v509 = vrot.slane %v480, %v508
  %v527 = vunpack.c.l.b16 %v489
  %v528 = vunpack.c.l.b16 %v490
  %v529 = vunpack.c.l.b16 %v491
  %v530 = vunpack.c.l.b16 %v492
  %v531 = vunpack.c.l.b16 %v493
  %v532 = vunpack.c.l.b16 %v494
  %v533 = vunpack.c.l.b16 %v495
  %v534 = vunpack.c.l.b16 %v496
  %v535 = vunpack.c.l.b16 %v497
  %v536 = vunpack.c.l.b16 %v498
  %v537 = vunpack.c.l.b16 %v499
  %v538 = vunpack.c.l.b16 %v500
  %v539 = vunpack.c.l.b16 %v501
  %v540 = vunpack.c.l.b16 %v502
  %v541 = vunpack.c.l.b16 %v503
  %v542 = vunpack.c.l.b16 %v504
  %v543 = vpack.c.b16 %v528, %v527
  %v544 = vpack.c.b16 %v530, %v529
  %v545 = vpack.c.b16 %v532, %v531
  %v546 = vpack.c.b16 %v534, %v533
  %v547 = vpack.c.b16 %v536, %v535
  %v548 = vpack.c.b16 %v538, %v537
  %v549 = vpack.c.b16 %v540, %v539
  %v550 = vpack.c.b16 %v542, %v541
  %559 = vmatprep.subr.bf16.mxu0 0
  %560 = vmatpush1.bf16.msra.mxu0 %v550
  %561 = vmatprep.subr.bf16.mxu0 0
  %562 = vmatpush1.bf16.msra.mxu0 %v549
  %563 = vmatprep.subr.bf16.mxu0 0
  %564 = vmatpush1.bf16.msra.mxu0 %v548
  %565 = vmatprep.subr.bf16.mxu0 0
  %566 = vmatpush1.bf16.msra.mxu0 %v547
  %567 = vmatprep.subr.bf16.mxu0 0
  %568 = vmatpush1.bf16.msra.mxu0 %v546
  %569 = vmatprep.subr.bf16.mxu0 0
  %570 = vmatpush1.bf16.msra.mxu0 %v545
  %571 = vmatprep.subr.bf16.mxu0 0
  %572 = vmatpush1.bf16.msra.mxu0 %v544
  %573 = vmatprep.subr.bf16.mxu0 0
  %574 = vmatpush1.bf16.msra.mxu0 %v543
  %575 = vmatprep.subr.bf16.mxu0 0
  %576 = vmatpush2.bf16.msra.mxu0 0
  %577 = vmatprep.subr.bf16.mxu0 0
  %578 = vmatpush2.bf16.msra.mxu0 0
  %579 = vmatprep.subr.bf16.mxu0 0
  %580 = vmatpush2.bf16.msra.mxu0 0
  %581 = vmatprep.subr.bf16.mxu0 0
  %582 = vmatpush2.bf16.msra.mxu0 0
  %583 = vmatprep.subr.bf16.mxu0 0
  %584 = vmatpush2.bf16.msra.mxu0 0
  %585 = vmatprep.subr.bf16.mxu0 0
  %586 = vmatpush2.bf16.msra.mxu0 0
  %587 = vmatprep.subr.bf16.mxu0 0
  %588 = vmatpush2.bf16.msra.mxu0 0
  %589 = vmatprep.subr.bf16.mxu0 0
  %590 = vmatpush2.bf16.msra.mxu0 0
  %591 = vmatprep.mubr.bf16.mxu0 0
  %592 = vmatmul.mubr.bf16.gmra.mxu0 %v488
  %v593 = vpop.f32.mrf.mxu0
  %v594 = vadd.f32 %v509, %v593
  %v595 = vpop.f32.mrf.mxu0
  %v596 = vpop.f32.mrf.mxu0
  %v597 = vpop.f32.mrf.mxu0
  %598 = vdwg.mxu0
  %v599 = vsub.f32 1.0, %v481
  %v601 = vlaneseq
  %v602 = vshrl.u32 %v601, 7
  %v603 = vsub.s32 0, %v602
  %v604 = vrot.slane %v599, %v603
  %v606 = vadd.f32 %v594, %v604
  %v607 = vrcp.pop %v606
  %v608 = vmul.f32 %v487, %v607
  %v609 = vsub.f32 0.0, %v475
  %v610 = vmul.f32 %v609, 1.442695
  %v611 = vpow.pop %v610
  %v612 = vadd.f32 %v611, 1.0
  %v613 = vrcp.pop %v612
  %v614 = vmul.f32 1.0, %v613
  %v615 = vmul.f32 %v509, %v614
  %v616 = vsub.f32 1.0, %v480
  %v618 = vlaneseq
  %v619 = vshrl.u32 %v618, 7
  %v620 = vsub.s32 0, %v619
  %v621 = vrot.slane %v616, %v620
  %v623 = vmul.f32 %v621, %v608
  %v624 = vadd.f32 %v615, %v623
  %v626 = vlaneseq
  %v627 = vshrl.u32 %v626, 7
  %v628 = vsub.s32 0, %v627
  %v629 = vrot.slane %v481, %v628
  %v631 = vmul.f32 %v629, %v624
  %632 = vst [vmem:[%s18] sm:$0xf] %v631
  // Predicated region
  $region74: #{nu_model_forward.7} parent=0 // pred_check
    _
  $region75: #{nu_model_forward.7} parent=0 // pred_check_branch
    %634 = sbr.rel (0) target = $region77
  $region76: #{nu_model_forward.7} parent=0 // pred_region
    _
  $region77: #{nu_model_forward.7} parent=0 // pred_fallthru
    _
  // Predicated region
  $region78: #{nu_model_forward.7} parent=0 // pred_check
    _
  $region79: #{nu_model_forward.7} parent=0 // pred_check_branch
    %636 = sbr.rel (0) target = $region81
  $region80: #{nu_model_forward.7} parent=0 // pred_region
    _
  $region81: #{nu_model_forward.7} parent=0 // pred_fallthru
    _

</llo_original>
